<compile_context>
chip_gen: v7x
topology: tpu7x:2x2x1
jax: 0.10.0
libtpu: 0.0.40
codegen_flags: <defaults>
</compile_context>

<pallas_src>
import jax
import jax.numpy as jnp
from jax.experimental import pallas as pl
from jax.experimental.pallas import tpu as pltpu

# (in_features, out_features) of the 8 PyTorch Linear layers, forward order.
LAYER_DIMS = [
    (784, 128),  # encoder_lin1
    (128, 64),   # encoder_lin2
    (64, 12),    # encoder_lin3
    (12, 3),     # encoder_lin4
    (3, 12),     # decoder_lin1
    (12, 64),    # decoder_lin2
    (64, 128),   # decoder_lin3
    (128, 784),  # decoder_lin4
]
# ReLU after every layer except encoder_lin4 (idx 3) and decoder_lin4 (idx 7).
RELU_AFTER = [True, True, True, False, True, True, True, False]

# After fusing enc_lin4 + dec_lin1 (both linear in between) -> 7 layers.
NUM_FUSED_LAYERS = 7
FUSED_RELU = [True, True, True, True, True, True, False]

FEAT = 784            # input/output feature width (kept un-padded)
HIDDEN_PAD = 128      # interior activation widths padded to one full lane set
DEFAULT_TILE_B = 1024  # batch (M) tile for the MXU / streaming DMA


def _round_up(a, m):
    return ((a + m - 1) // m) * m


def linear_ae_kernel(x_ref, *refs):
    # refs = (w0, b0, w1, b1, ..., w6, b6, out_ref)
    out_ref = refs[-1]
    param_refs = refs[:-1]

    # f32 (tb, 784) tile straight from HBM; cast to bf16 on the VPU (hidden
    # under the DMA) instead of a separate wrapper-side pad/cast pass.
    act = x_ref[...].astype(jnp.bfloat16)
    for i in range(NUM_FUSED_LAYERS):
        w = param_refs[2 * i][...]       # bf16 (in, out), VMEM-resident
        b = param_refs[2 * i + 1][...]   # f32  (1, out)
        acc = jnp.dot(act, w, preferred_element_type=jnp.float32)
        acc = acc + b                    # f32 epilogue (broadcast over batch)
        if FUSED_RELU[i]:
            acc = jnp.maximum(acc, 0.0)
        if i + 1 < NUM_FUSED_LAYERS:
            act = acc.astype(jnp.bfloat16)   # back to bf16 for the next MXU push
        else:
            out_ref[...] = acc.astype(out_ref.dtype)  # bf16 store, lane-dense


def _prepare_params(params):
    """8x (W_t (in,out) f32, b (out,) f32) -> fused/padded flat list:
    [w0_bf16, b0_f32(1,N), ..., w6_bf16, b6_f32(1,N)].

    Fuses enc_lin4+dec_lin1 (exact) and pads every interior activation width
    up to 128 lanes (exact: zero weight rows/cols, zero bias, ReLU keeps 0)."""
    ws = [w for w, _ in params]
    bs = [b for _, b in params]

    # Exact fusion of encoder_lin4 (12->3, no ReLU) with decoder_lin1 (3->12).
    w_fused = ws[3] @ ws[4]           # (12, 3) @ (3, 12) -> (12, 12)
    b_fused = bs[3] @ ws[4] + bs[4]   # (12,)

    fused_ws = [ws[0], ws[1], ws[2], w_fused, ws[5], ws[6], ws[7]]
    fused_bs = [bs[0], bs[1], bs[2], b_fused, bs[5], bs[6], bs[7]]

    flat = []
    for i, (w, b) in enumerate(zip(fused_ws, fused_bs)):
        k, n = w.shape
        k_pad = k if i == 0 else max(k, HIDDEN_PAD)                    # keep 784 input
        n_pad = n if i == NUM_FUSED_LAYERS - 1 else max(n, HIDDEN_PAD)  # keep 784 output
        w = jnp.pad(w, ((0, k_pad - k), (0, n_pad - n)))
        b = jnp.pad(b, (0, n_pad - n))
        flat.append(w.astype(jnp.bfloat16))
        flat.append(b.reshape(1, -1).astype(jnp.float32))
    return flat


def linear_ae_forward(x, params, *, tile_b=DEFAULT_TILE_B):
    """x: (B, 784) float32. params: list of 8 (W_t, b) with W_t shaped (in, out).
    Returns (B, 784) bfloat16."""
    B, F = x.shape
    assert F == FEAT

    # Batch tile: cap at tile_b, multiple of 16 (bf16 sublane packing).
    tb = min(tile_b, _round_up(B, 16))
    # Very large batches: keep >= 4 grid steps so input/output DMA
    # double-buffers and v7x megacore sharding has >= 2 steps per TC.
    if B >= 4 * 256:
        tb = min(tb, max(256, _round_up((B + 3) // 4, 256)))
    tb = max(16, (tb // 16) * 16)
    b_pad = _round_up(B, tb)

    # Only a (small) batch pad when tb does not divide B; no feature pad/cast.
    x_p = x if b_pad == B else jnp.pad(x, ((0, b_pad - B), (0, 0)))
    flat_params = _prepare_params(params)

    # x / out stream through the grid; params use a constant index_map so they
    # are DMA'd once and stay resident in VMEM across grid steps.
    in_specs = [pl.BlockSpec((tb, FEAT), lambda i: (i, 0))]
    in_specs += [pl.BlockSpec(p.shape, lambda i: (0, 0)) for p in flat_params]
    out_spec = pl.BlockSpec((tb, FEAT), lambda i: (i, 0))

    out = pl.pallas_call(
        linear_ae_kernel,
        out_shape=jax.ShapeDtypeStruct((b_pad, FEAT), jnp.bfloat16),
        grid=(b_pad // tb,),
        in_specs=in_specs,
        out_specs=out_spec,
        compiler_params=pltpu.CompilerParams(
            dimension_semantics=("parallel",),       # megacore sharding on v7x
            vmem_limit_bytes=48 * 1024 * 1024,       # above v5e's 16 MiB default,
        ),                                           # well under v7x's 64 MiB
    )(x_p, *flat_params)

    return out if b_pad == B else out[:B]


def init_params(key):
    """Deterministic init with PyTorch Linear shapes: W (out, in), b (out,)."""
    params = []
    for (fan_in, fan_out) in LAYER_DIMS:
        key, kw, kb = jax.random.split(key, 3)
        bound = 1.0 / jnp.sqrt(fan_in)
        w = jax.random.uniform(kw, (fan_out, fan_in), jnp.float32, -bound, bound)
        b = jax.random.uniform(kb, (fan_out,), jnp.float32, -bound, bound)
        params.append((w.T, b))  # kernel consumes W transposed to (in, out)
    return params


def reference_forward_f32(x, params):
    """Exact PyTorch-semantics forward in f32 (unfused, unpadded)."""
    act = x
    for i, (w_t, b) in enumerate(params):
        act = act @ w_t + b
        if RELU_AFTER[i]:
            act = jnp.maximum(act, 0.0)
    return act


def reference_forward_kernel_math(x, params):
    """Pure-JAX mirror of the kernel math: fused, padded, bf16 operands,
    f32 accumulation, bf16 output."""
    flat = _prepare_params(params)
    act = x.astype(jnp.bfloat16)
    for i in range(NUM_FUSED_LAYERS):
        w, b = flat[2 * i], flat[2 * i + 1]
        acc = jnp.dot(act, w, preferred_element_type=jnp.float32) + b
        if FUSED_RELU[i]:
            acc = jnp.maximum(acc, 0.0)
        act = acc.astype(jnp.bfloat16)
    return act


if __name__ == "__main__":
    key = jax.random.PRNGKey(0)
    key, kx = jax.random.split(key)

    B = 160
    x = jax.random.normal(kx, (B, 784), jnp.float32)
    params = init_params(key)

    # Default path (single tile at this small batch).
    out = jax.block_until_ready(jax.jit(linear_ae_forward)(x, params))
    assert out.shape == (B, 784), out.shape
    assert out.dtype == jnp.bfloat16, out.dtype

    # Multi-step grid path: tb=64 -> batch pad 160->192 and a 3-step grid.
    fwd_tiled = jax.jit(lambda xx, pp: linear_ae_forward(xx, pp, tile_b=64))
    out_tiled = jax.block_until_ready(fwd_tiled(x, params))
    assert out_tiled.shape == (B, 784), out_tiled.shape

    o32 = out.astype(jnp.float32)
    o32_tiled = out_tiled.astype(jnp.float32)

    # Tight check vs a pure-JAX mirror of the exact kernel math (bf16).
    ref_exact = reference_forward_kernel_math(x, params).astype(jnp.float32)
    assert jnp.allclose(o32, ref_exact, atol=1e-2, rtol=1e-2), \
        "mismatch vs bf16 kernel-math reference (default tile)"
    assert jnp.allclose(o32_tiled, ref_exact, atol=1e-2, rtol=1e-2), \
        "mismatch vs bf16 kernel-math reference (tiled)"

    # Loose check vs the full-f32 PyTorch-semantics forward (bf16 rounding only).
    ref_f32 = reference_forward_f32(x, params)
    assert jnp.allclose(o32, ref_f32, atol=6e-2, rtol=6e-2), \
        "mismatch vs f32 reference"

    print("KERNEL_OK")
</pallas_src>

<mosaic_0001>
module attributes {stable_mosaic.version = 11 : i64} {
  func.func @linear_ae_kernel(%arg0: i32, %arg1: memref<160x784xf32, #tpu.memory_space<vmem>>, %arg2: memref<784x128xbf16, #tpu.memory_space<vmem>>, %arg3: memref<1x128xf32, #tpu.memory_space<vmem>>, %arg4: memref<128x128xbf16, #tpu.memory_space<vmem>>, %arg5: memref<1x128xf32, #tpu.memory_space<vmem>>, %arg6: memref<128x128xbf16, #tpu.memory_space<vmem>>, %arg7: memref<1x128xf32, #tpu.memory_space<vmem>>, %arg8: memref<128x128xbf16, #tpu.memory_space<vmem>>, %arg9: memref<1x128xf32, #tpu.memory_space<vmem>>, %arg10: memref<128x128xbf16, #tpu.memory_space<vmem>>, %arg11: memref<1x128xf32, #tpu.memory_space<vmem>>, %arg12: memref<128x128xbf16, #tpu.memory_space<vmem>>, %arg13: memref<1x128xf32, #tpu.memory_space<vmem>>, %arg14: memref<128x784xbf16, #tpu.memory_space<vmem>>, %arg15: memref<1x784xf32, #tpu.memory_space<vmem>>, %arg16: memref<160x784xbf16, #tpu.memory_space<vmem>>) attributes {dimension_semantics = [#tpu.dimension_semantics<parallel>], iteration_bounds = array<i64: 1>, scalar_prefetch = 0 : i64, scratch_operands = 0 : i64, tpu.core_type = #tpu.core_type<tc>, window_params = [{transform_indices = @transform_0, window_bounds = array<i64: 160, 784>}, {pipeline_mode = #tpu.pipeline_mode<synchronous>, transform_indices = @transform_1, window_bounds = array<i64: 784, 128>}, {pipeline_mode = #tpu.pipeline_mode<synchronous>, transform_indices = @transform_2, window_bounds = array<i64: 1, 128>}, {pipeline_mode = #tpu.pipeline_mode<synchronous>, transform_indices = @transform_3, window_bounds = array<i64: 128, 128>}, {pipeline_mode = #tpu.pipeline_mode<synchronous>, transform_indices = @transform_4, window_bounds = array<i64: 1, 128>}, {pipeline_mode = #tpu.pipeline_mode<synchronous>, transform_indices = @transform_5, window_bounds = array<i64: 128, 128>}, {pipeline_mode = #tpu.pipeline_mode<synchronous>, transform_indices = @transform_6, window_bounds = array<i64: 1, 128>}, {pipeline_mode = #tpu.pipeline_mode<synchronous>, transform_indices = @transform_7, window_bounds = array<i64: 128, 128>}, {pipeline_mode = #tpu.pipeline_mode<synchronous>, transform_indices = @transform_8, window_bounds = array<i64: 1, 128>}, {pipeline_mode = #tpu.pipeline_mode<synchronous>, transform_indices = @transform_9, window_bounds = array<i64: 128, 128>}, {pipeline_mode = #tpu.pipeline_mode<synchronous>, transform_indices = @transform_10, window_bounds = array<i64: 1, 128>}, {pipeline_mode = #tpu.pipeline_mode<synchronous>, transform_indices = @transform_11, window_bounds = array<i64: 128, 128>}, {pipeline_mode = #tpu.pipeline_mode<synchronous>, transform_indices = @transform_12, window_bounds = array<i64: 1, 128>}, {pipeline_mode = #tpu.pipeline_mode<synchronous>, transform_indices = @transform_13, window_bounds = array<i64: 128, 784>}, {pipeline_mode = #tpu.pipeline_mode<synchronous>, transform_indices = @transform_14, window_bounds = array<i64: 1, 784>}, {transform_indices = @transform_15, window_bounds = array<i64: 160, 784>}]} {
    %c0 = arith.constant 0 : index
    %c0_0 = arith.constant 0 : index
    %0 = vector.load %arg1[%c0, %c0_0] : memref<160x784xf32, #tpu.memory_space<vmem>>, vector<160x784xf32>
    %1 = arith.truncf %0 : vector<160x784xf32> to vector<160x784xbf16>
    %c0_1 = arith.constant 0 : index
    %c0_2 = arith.constant 0 : index
    %2 = vector.load %arg2[%c0_1, %c0_2] : memref<784x128xbf16, #tpu.memory_space<vmem>>, vector<784x128xbf16>
    %c0_3 = arith.constant 0 : index
    %c0_4 = arith.constant 0 : index
    %3 = vector.load %arg3[%c0_3, %c0_4] : memref<1x128xf32, #tpu.memory_space<vmem>>, vector<1x128xf32>
    %cst = arith.constant dense<0.000000e+00> : vector<160x128xf32>
    %4 = tpu.matmul %1, %2, %cst {dimension_numbers = #tpu.dot_dimension_numbers<[1], [0], [0], [1], [0, 0, 1, 1], [], []>} : vector<160x784xbf16>, vector<784x128xbf16>, vector<160x128xf32> -> vector<160x128xf32>
    %5 = vector.broadcast %3 : vector<1x128xf32> to vector<160x128xf32>
    %6 = arith.addf %4, %5 : vector<160x128xf32>
    %cst_5 = arith.constant 0.000000e+00 : f32
    %7 = vector.broadcast %cst_5 : f32 to vector<160x128xf32>
    %8 = arith.maximumf %6, %7 : vector<160x128xf32>
    %9 = arith.truncf %8 : vector<160x128xf32> to vector<160x128xbf16>
    %c0_6 = arith.constant 0 : index
    %c0_7 = arith.constant 0 : index
    %10 = vector.load %arg4[%c0_6, %c0_7] : memref<128x128xbf16, #tpu.memory_space<vmem>>, vector<128x128xbf16>
    %c0_8 = arith.constant 0 : index
    %c0_9 = arith.constant 0 : index
    %11 = vector.load %arg5[%c0_8, %c0_9] : memref<1x128xf32, #tpu.memory_space<vmem>>, vector<1x128xf32>
    %cst_10 = arith.constant dense<0.000000e+00> : vector<160x128xf32>
    %12 = tpu.matmul %9, %10, %cst_10 {dimension_numbers = #tpu.dot_dimension_numbers<[1], [0], [0], [1], [0, 0, 1, 1], [], []>} : vector<160x128xbf16>, vector<128x128xbf16>, vector<160x128xf32> -> vector<160x128xf32>
    %13 = vector.broadcast %11 : vector<1x128xf32> to vector<160x128xf32>
    %14 = arith.addf %12, %13 : vector<160x128xf32>
    %cst_11 = arith.constant 0.000000e+00 : f32
    %15 = vector.broadcast %cst_11 : f32 to vector<160x128xf32>
    %16 = arith.maximumf %14, %15 : vector<160x128xf32>
    %17 = arith.truncf %16 : vector<160x128xf32> to vector<160x128xbf16>
    %c0_12 = arith.constant 0 : index
    %c0_13 = arith.constant 0 : index
    %18 = vector.load %arg6[%c0_12, %c0_13] : memref<128x128xbf16, #tpu.memory_space<vmem>>, vector<128x128xbf16>
    %c0_14 = arith.constant 0 : index
    %c0_15 = arith.constant 0 : index
    %19 = vector.load %arg7[%c0_14, %c0_15] : memref<1x128xf32, #tpu.memory_space<vmem>>, vector<1x128xf32>
    %cst_16 = arith.constant dense<0.000000e+00> : vector<160x128xf32>
    %20 = tpu.matmul %17, %18, %cst_16 {dimension_numbers = #tpu.dot_dimension_numbers<[1], [0], [0], [1], [0, 0, 1, 1], [], []>} : vector<160x128xbf16>, vector<128x128xbf16>, vector<160x128xf32> -> vector<160x128xf32>
    %21 = vector.broadcast %19 : vector<1x128xf32> to vector<160x128xf32>
    %22 = arith.addf %20, %21 : vector<160x128xf32>
    %cst_17 = arith.constant 0.000000e+00 : f32
    %23 = vector.broadcast %cst_17 : f32 to vector<160x128xf32>
    %24 = arith.maximumf %22, %23 : vector<160x128xf32>
    %25 = arith.truncf %24 : vector<160x128xf32> to vector<160x128xbf16>
    %c0_18 = arith.constant 0 : index
    %c0_19 = arith.constant 0 : index
    %26 = vector.load %arg8[%c0_18, %c0_19] : memref<128x128xbf16, #tpu.memory_space<vmem>>, vector<128x128xbf16>
    %c0_20 = arith.constant 0 : index
    %c0_21 = arith.constant 0 : index
    %27 = vector.load %arg9[%c0_20, %c0_21] : memref<1x128xf32, #tpu.memory_space<vmem>>, vector<1x128xf32>
    %cst_22 = arith.constant dense<0.000000e+00> : vector<160x128xf32>
    %28 = tpu.matmul %25, %26, %cst_22 {dimension_numbers = #tpu.dot_dimension_numbers<[1], [0], [0], [1], [0, 0, 1, 1], [], []>} : vector<160x128xbf16>, vector<128x128xbf16>, vector<160x128xf32> -> vector<160x128xf32>
    %29 = vector.broadcast %27 : vector<1x128xf32> to vector<160x128xf32>
    %30 = arith.addf %28, %29 : vector<160x128xf32>
    %cst_23 = arith.constant 0.000000e+00 : f32
    %31 = vector.broadcast %cst_23 : f32 to vector<160x128xf32>
    %32 = arith.maximumf %30, %31 : vector<160x128xf32>
    %33 = arith.truncf %32 : vector<160x128xf32> to vector<160x128xbf16>
    %c0_24 = arith.constant 0 : index
    %c0_25 = arith.constant 0 : index
    %34 = vector.load %arg10[%c0_24, %c0_25] : memref<128x128xbf16, #tpu.memory_space<vmem>>, vector<128x128xbf16>
    %c0_26 = arith.constant 0 : index
    %c0_27 = arith.constant 0 : index
    %35 = vector.load %arg11[%c0_26, %c0_27] : memref<1x128xf32, #tpu.memory_space<vmem>>, vector<1x128xf32>
    %cst_28 = arith.constant dense<0.000000e+00> : vector<160x128xf32>
    %36 = tpu.matmul %33, %34, %cst_28 {dimension_numbers = #tpu.dot_dimension_numbers<[1], [0], [0], [1], [0, 0, 1, 1], [], []>} : vector<160x128xbf16>, vector<128x128xbf16>, vector<160x128xf32> -> vector<160x128xf32>
    %37 = vector.broadcast %35 : vector<1x128xf32> to vector<160x128xf32>
    %38 = arith.addf %36, %37 : vector<160x128xf32>
    %cst_29 = arith.constant 0.000000e+00 : f32
    %39 = vector.broadcast %cst_29 : f32 to vector<160x128xf32>
    %40 = arith.maximumf %38, %39 : vector<160x128xf32>
    %41 = arith.truncf %40 : vector<160x128xf32> to vector<160x128xbf16>
    %c0_30 = arith.constant 0 : index
    %c0_31 = arith.constant 0 : index
    %42 = vector.load %arg12[%c0_30, %c0_31] : memref<128x128xbf16, #tpu.memory_space<vmem>>, vector<128x128xbf16>
    %c0_32 = arith.constant 0 : index
    %c0_33 = arith.constant 0 : index
    %43 = vector.load %arg13[%c0_32, %c0_33] : memref<1x128xf32, #tpu.memory_space<vmem>>, vector<1x128xf32>
    %cst_34 = arith.constant dense<0.000000e+00> : vector<160x128xf32>
    %44 = tpu.matmul %41, %42, %cst_34 {dimension_numbers = #tpu.dot_dimension_numbers<[1], [0], [0], [1], [0, 0, 1, 1], [], []>} : vector<160x128xbf16>, vector<128x128xbf16>, vector<160x128xf32> -> vector<160x128xf32>
    %45 = vector.broadcast %43 : vector<1x128xf32> to vector<160x128xf32>
    %46 = arith.addf %44, %45 : vector<160x128xf32>
    %cst_35 = arith.constant 0.000000e+00 : f32
    %47 = vector.broadcast %cst_35 : f32 to vector<160x128xf32>
    %48 = arith.maximumf %46, %47 : vector<160x128xf32>
    %49 = arith.truncf %48 : vector<160x128xf32> to vector<160x128xbf16>
    %c0_36 = arith.constant 0 : index
    %c0_37 = arith.constant 0 : index
    %50 = vector.load %arg14[%c0_36, %c0_37] : memref<128x784xbf16, #tpu.memory_space<vmem>>, vector<128x784xbf16>
    %c0_38 = arith.constant 0 : index
    %c0_39 = arith.constant 0 : index
    %51 = vector.load %arg15[%c0_38, %c0_39] : memref<1x784xf32, #tpu.memory_space<vmem>>, vector<1x784xf32>
    %cst_40 = arith.constant dense<0.000000e+00> : vector<160x784xf32>
    %52 = tpu.matmul %49, %50, %cst_40 {dimension_numbers = #tpu.dot_dimension_numbers<[1], [0], [0], [1], [0, 0, 1, 1], [], []>} : vector<160x128xbf16>, vector<128x784xbf16>, vector<160x784xf32> -> vector<160x784xf32>
    %53 = vector.broadcast %51 : vector<1x784xf32> to vector<160x784xf32>
    %54 = arith.addf %52, %53 : vector<160x784xf32>
    %55 = arith.truncf %54 : vector<160x784xf32> to vector<160x784xbf16>
    %c0_41 = arith.constant 0 : index
    %c0_42 = arith.constant 0 : index
    %56 = vector.load %arg16[%c0_41, %c0_42] : memref<160x784xbf16, #tpu.memory_space<vmem>>, vector<160x784xbf16>
    tpu.vector_store %arg16[%c0_41, %c0_42], %55 {strides = array<i32>} : memref<160x784xbf16, #tpu.memory_space<vmem>>, vector<160x784xbf16>,
    return
  }
  func.func @transform_0(%arg0: i32) -> (i32, i32) {
    %c0_i32 = arith.constant 0 : i32
    %c0_i32_0 = arith.constant 0 : i32
    return %arg0, %c0_i32 : i32, i32
  }
  func.func @transform_1(%arg0: i32) -> (i32, i32) {
    %c0_i32 = arith.constant 0 : i32
    %c0_i32_0 = arith.constant 0 : i32
    %c0_i32_1 = arith.constant 0 : i32
    return %c0_i32, %c0_i32_0 : i32, i32
  }
  func.func @transform_2(%arg0: i32) -> (i32, i32) {
    %c0_i32 = arith.constant 0 : i32
    %c0_i32_0 = arith.constant 0 : i32
    %c0_i32_1 = arith.constant 0 : i32
    return %c0_i32, %c0_i32_0 : i32, i32
  }
  func.func @transform_3(%arg0: i32) -> (i32, i32) {
    %c0_i32 = arith.constant 0 : i32
    %c0_i32_0 = arith.constant 0 : i32
    %c0_i32_1 = arith.constant 0 : i32
    return %c0_i32, %c0_i32_0 : i32, i32
  }
  func.func @transform_4(%arg0: i32) -> (i32, i32) {
    %c0_i32 = arith.constant 0 : i32
    %c0_i32_0 = arith.constant 0 : i32
    %c0_i32_1 = arith.constant 0 : i32
    return %c0_i32, %c0_i32_0 : i32, i32
  }
  func.func @transform_5(%arg0: i32) -> (i32, i32) {
    %c0_i32 = arith.constant 0 : i32
    %c0_i32_0 = arith.constant 0 : i32
    %c0_i32_1 = arith.constant 0 : i32
    return %c0_i32, %c0_i32_0 : i32, i32
  }
  func.func @transform_6(%arg0: i32) -> (i32, i32) {
    %c0_i32 = arith.constant 0 : i32
    %c0_i32_0 = arith.constant 0 : i32
    %c0_i32_1 = arith.constant 0 : i32
    return %c0_i32, %c0_i32_0 : i32, i32
  }
  func.func @transform_7(%arg0: i32) -> (i32, i32) {
    %c0_i32 = arith.constant 0 : i32
    %c0_i32_0 = arith.constant 0 : i32
    %c0_i32_1 = arith.constant 0 : i32
    return %c0_i32, %c0_i32_0 : i32, i32
  }
  func.func @transform_8(%arg0: i32) -> (i32, i32) {
    %c0_i32 = arith.constant 0 : i32
    %c0_i32_0 = arith.constant 0 : i32
    %c0_i32_1 = arith.constant 0 : i32
    return %c0_i32, %c0_i32_0 : i32, i32
  }
  func.func @transform_9(%arg0: i32) -> (i32, i32) {
    %c0_i32 = arith.constant 0 : i32
    %c0_i32_0 = arith.constant 0 : i32
    %c0_i32_1 = arith.constant 0 : i32
    return %c0_i32, %c0_i32_0 : i32, i32
  }
  func.func @transform_10(%arg0: i32) -> (i32, i32) {
    %c0_i32 = arith.constant 0 : i32
    %c0_i32_0 = arith.constant 0 : i32
    %c0_i32_1 = arith.constant 0 : i32
    return %c0_i32, %c0_i32_0 : i32, i32
  }
  func.func @transform_11(%arg0: i32) -> (i32, i32) {
    %c0_i32 = arith.constant 0 : i32
    %c0_i32_0 = arith.constant 0 : i32
    %c0_i32_1 = arith.constant 0 : i32
    return %c0_i32, %c0_i32_0 : i32, i32
  }
  func.func @transform_12(%arg0: i32) -> (i32, i32) {
    %c0_i32 = arith.constant 0 : i32
    %c0_i32_0 = arith.constant 0 : i32
    %c0_i32_1 = arith.constant 0 : i32
    return %c0_i32, %c0_i32_0 : i32, i32
  }
  func.func @transform_13(%arg0: i32) -> (i32, i32) {
    %c0_i32 = arith.constant 0 : i32
    %c0_i32_0 = arith.constant 0 : i32
    %c0_i32_1 = arith.constant 0 : i32
    return %c0_i32, %c0_i32_0 : i32, i32
  }
  func.func @transform_14(%arg0: i32) -> (i32, i32) {
    %c0_i32 = arith.constant 0 : i32
    %c0_i32_0 = arith.constant 0 : i32
    %c0_i32_1 = arith.constant 0 : i32
    return %c0_i32, %c0_i32_0 : i32, i32
  }
  func.func @transform_15(%arg0: i32) -> (i32, i32) {
    %c0_i32 = arith.constant 0 : i32
    %c0_i32_0 = arith.constant 0 : i32
    return %arg0, %c0_i32 : i32, i32
  }
}

</mosaic_0001>

<llo_original>
// kernel: linear_ae_forward.1
$region0: #{linear_ae_forward.1}
  #allocation0 [shape = 'u32[]', space=smem, size = 0x4, offset = 0x4, fixed_abs, tag = 'smem constant byte address 0x4 - core index']
  #allocation1 [shape = 'u32[144,128]{1,0:T(1,128)}', space=vmem, size = 0x12000, scoped, tag = 'internal scratch']
  %s0 = inlined_call_operand.vmem [shape: f32[160,784], index: 0, kind: input, shape index: {}]
  %s1 = inlined_call_operand.vmem [shape: bf16[784,128], index: 1, kind: input, shape index: {}]
  %s2 = inlined_call_operand.vmem [shape: f32[1,128], index: 2, kind: input, shape index: {}]
  %s3 = inlined_call_operand.vmem [shape: bf16[128,128], index: 3, kind: input, shape index: {}]
  %s4 = inlined_call_operand.vmem [shape: f32[1,128], index: 4, kind: input, shape index: {}]
  %s5 = inlined_call_operand.vmem [shape: bf16[128,128], index: 5, kind: input, shape index: {}]
  %s6 = inlined_call_operand.vmem [shape: f32[1,128], index: 6, kind: input, shape index: {}]
  %s7 = inlined_call_operand.vmem [shape: bf16[128,128], index: 7, kind: input, shape index: {}]
  %s8 = inlined_call_operand.vmem [shape: f32[1,128], index: 8, kind: input, shape index: {}]
  %s9 = inlined_call_operand.vmem [shape: bf16[128,128], index: 9, kind: input, shape index: {}]
  %s10 = inlined_call_operand.vmem [shape: f32[1,128], index: 10, kind: input, shape index: {}]
  %s11 = inlined_call_operand.vmem [shape: bf16[128,128], index: 11, kind: input, shape index: {}]
  %s12 = inlined_call_operand.vmem [shape: f32[1,128], index: 12, kind: input, shape index: {}]
  %s13 = inlined_call_operand.vmem [shape: bf16[128,784], index: 13, kind: input, shape index: {}]
  %s14 = inlined_call_operand.vmem [shape: f32[1,784], index: 14, kind: input, shape index: {}]
  %s15 = inlined_call_operand.hbm [shape: bf16[160,784], index: 15, kind: output, shape index: {}]
  %s16 = sld [smem:[#allocation0]]
  $region70: #{linear_ae_forward.1} parent=0
    _
  %s18 = ssub.s32 1, %s16
  %s19 = scalar_select 0, %s18, %s16
  $region1: #{linear_ae_forward.1} parent=0
    #allocation2 [shape = 'u8[286720]{0}', space=vmem, size = 0x46000, scoped, tag = 'output window, operand 0, single buffered']
    #allocation3 [shape = 's32[1]{0}', space=sflag, size = 0x4, scoped, tag = 'scoped memory for linear_ae_forward.1']
    %20 = vsyncpa [#allocation3], 0
    // Predicated region
    $region2: #{linear_ae_forward.1} parent=1 // pred_check
      _
    $region3: #{linear_ae_forward.1} parent=1 // pred_check_branch
      %22 = sbr.rel (0) target = $region5
    $region4: #{linear_ae_forward.1} parent=1 // pred_region
      _
    $region5: #{linear_ae_forward.1} parent=1 // pred_fallthru
      _
    // Predicated region
    $region6: #{linear_ae_forward.1} parent=1 // pred_check
      _
    $region7: #{linear_ae_forward.1} parent=1 // pred_check_branch
      %24 = sbr.rel (0) target = $region9
    $region8: #{linear_ae_forward.1} parent=1 // pred_region
      _
    $region9: #{linear_ae_forward.1} parent=1 // pred_fallthru
      _
    // Predicated region
    $region10: #{linear_ae_forward.1} parent=1 // pred_check
      _
    $region11: #{linear_ae_forward.1} parent=1 // pred_check_branch
      %26 = sbr.rel (0) target = $region13
    $region12: #{linear_ae_forward.1} parent=1 // pred_region
      _
    $region13: #{linear_ae_forward.1} parent=1 // pred_fallthru
      _
    // Predicated region
    $region14: #{linear_ae_forward.1} parent=1 // pred_check
      _
    $region15: #{linear_ae_forward.1} parent=1 // pred_check_branch
      %28 = sbr.rel (0) target = $region17
    $region16: #{linear_ae_forward.1} parent=1 // pred_region
      _
    $region17: #{linear_ae_forward.1} parent=1 // pred_fallthru
      _
    // Predicated region
    $region18: #{linear_ae_forward.1} parent=1 // pred_check
      _
    $region19: #{linear_ae_forward.1} parent=1 // pred_check_branch
      %30 = sbr.rel (0) target = $region21
    $region20: #{linear_ae_forward.1} parent=1 // pred_region
      _
    $region21: #{linear_ae_forward.1} parent=1 // pred_fallthru
      _
    // Predicated region
    $region22: #{linear_ae_forward.1} parent=1 // pred_check
      _
    $region23: #{linear_ae_forward.1} parent=1 // pred_check_branch
      %32 = sbr.rel (0) target = $region25
    $region24: #{linear_ae_forward.1} parent=1 // pred_region
      _
    $region25: #{linear_ae_forward.1} parent=1 // pred_fallthru
      _
    // Predicated region
    $region26: #{linear_ae_forward.1} parent=1 // pred_check
      _
    $region27: #{linear_ae_forward.1} parent=1 // pred_check_branch
      %34 = sbr.rel (0) target = $region29
    $region28: #{linear_ae_forward.1} parent=1 // pred_region
      _
    $region29: #{linear_ae_forward.1} parent=1 // pred_fallthru
      _
    // Predicated region
    $region30: #{linear_ae_forward.1} parent=1 // pred_check
      _
    $region31: #{linear_ae_forward.1} parent=1 // pred_check_branch
      %36 = sbr.rel (0) target = $region33
    $region32: #{linear_ae_forward.1} parent=1 // pred_region
      _
    $region33: #{linear_ae_forward.1} parent=1 // pred_fallthru
      _
    // Predicated region
    $region34: #{linear_ae_forward.1} parent=1 // pred_check
      _
    $region35: #{linear_ae_forward.1} parent=1 // pred_check_branch
      %38 = sbr.rel (0) target = $region37
    $region36: #{linear_ae_forward.1} parent=1 // pred_region
      _
    $region37: #{linear_ae_forward.1} parent=1 // pred_fallthru
      _
    // Predicated region
    $region38: #{linear_ae_forward.1} parent=1 // pred_check
      _
    $region39: #{linear_ae_forward.1} parent=1 // pred_check_branch
      %40 = sbr.rel (0) target = $region41
    $region40: #{linear_ae_forward.1} parent=1 // pred_region
      _
    $region41: #{linear_ae_forward.1} parent=1 // pred_fallthru
      _
    // Predicated region
    $region42: #{linear_ae_forward.1} parent=1 // pred_check
      _
    $region43: #{linear_ae_forward.1} parent=1 // pred_check_branch
      %42 = sbr.rel (0) target = $region45
    $region44: #{linear_ae_forward.1} parent=1 // pred_region
      _
    $region45: #{linear_ae_forward.1} parent=1 // pred_fallthru
      _
    // Predicated region
    $region46: #{linear_ae_forward.1} parent=1 // pred_check
      _
    $region47: #{linear_ae_forward.1} parent=1 // pred_check_branch
      %44 = sbr.rel (0) target = $region49
    $region48: #{linear_ae_forward.1} parent=1 // pred_region
      _
    $region49: #{linear_ae_forward.1} parent=1 // pred_fallthru
      _
    // Predicated region
    $region50: #{linear_ae_forward.1} parent=1 // pred_check
      _
    $region51: #{linear_ae_forward.1} parent=1 // pred_check_branch
      %46 = sbr.rel (0) target = $region53
    $region52: #{linear_ae_forward.1} parent=1 // pred_region
      _
    $region53: #{linear_ae_forward.1} parent=1 // pred_fallthru
      _
    // Predicated region
    $region54: #{linear_ae_forward.1} parent=1 // pred_check
      _
    $region55: #{linear_ae_forward.1} parent=1 // pred_check_branch
      %48 = sbr.rel (0) target = $region57
    $region56: #{linear_ae_forward.1} parent=1 // pred_region
      _
    $region57: #{linear_ae_forward.1} parent=1 // pred_fallthru
      _
    // Predicated region
    $region58: #{linear_ae_forward.1} parent=1 // pred_check
      _
    $region59: #{linear_ae_forward.1} parent=1 // pred_check_branch
      %50 = sbr.rel (0) target = $region61
    $region60: #{linear_ae_forward.1} parent=1 // pred_region
      _
    $region61: #{linear_ae_forward.1} parent=1 // pred_fallthru
      _
    %v52 = vld [vmem:[%s0] sm:$0xff]
    %v53 = vld [vmem:[%s0 + $0x8] sm:$0xff]
    %v54 = vld [vmem:[%s0 + $0x10] sm:$0xff]
    %v55 = vld [vmem:[%s0 + $0x18] sm:$0xff]
    %v56 = vld [vmem:[%s0 + $0x20] sm:$0xff]
    %v57 = vld [vmem:[%s0 + $0x28] sm:$0xff]
    %v58 = vld [vmem:[%s0 + $0x30] sm:$0xff]
    %v59 = vld [vmem:[%s0 + $0x38] sm:$0xff]
    %v60 = vld [vmem:[%s0 + $0x40] sm:$0xff]
    %v61 = vld [vmem:[%s0 + $0x48] sm:$0xff]
    %v62 = vld [vmem:[%s0 + $0x50] sm:$0xff]
    %v63 = vld [vmem:[%s0 + $0x58] sm:$0xff]
    %v64 = vld [vmem:[%s0 + $0x60] sm:$0xff]
    %v65 = vld [vmem:[%s0 + $0x68] sm:$0xff]
    %v66 = vld [vmem:[%s0 + $0x70] sm:$0xff]
    %v67 = vld [vmem:[%s0 + $0x78] sm:$0xff]
    %v68 = vld [vmem:[%s0 + $0x80] sm:$0xff]
    %v69 = vld [vmem:[%s0 + $0x88] sm:$0xff]
    %v70 = vld [vmem:[%s0 + $0x90] sm:$0xff]
    %v71 = vld [vmem:[%s0 + $0x98] sm:$0xff]
    %v72 = vld [vmem:[%s0 + $0xa0] sm:$0xff]
    %v73 = vld [vmem:[%s0 + $0xa8] sm:$0xff]
    %v74 = vld [vmem:[%s0 + $0xb0] sm:$0xff]
    %v75 = vld [vmem:[%s0 + $0xb8] sm:$0xff]
    %v76 = vld [vmem:[%s0 + $0xc0] sm:$0xff]
    %v77 = vld [vmem:[%s0 + $0xc8] sm:$0xff]
    %v78 = vld [vmem:[%s0 + $0xd0] sm:$0xff]
    %v79 = vld [vmem:[%s0 + $0xd8] sm:$0xff]
    %v80 = vld [vmem:[%s0 + $0xe0] sm:$0xff]
    %v81 = vld [vmem:[%s0 + $0xe8] sm:$0xff]
    %v82 = vld [vmem:[%s0 + $0xf0] sm:$0xff]
    %v83 = vld [vmem:[%s0 + $0xf8] sm:$0xff]
    %v84 = vld [vmem:[%s0 + $0x100] sm:$0xff]
    %v85 = vld [vmem:[%s0 + $0x108] sm:$0xff]
    %v86 = vld [vmem:[%s0 + $0x110] sm:$0xff]
    %v87 = vld [vmem:[%s0 + $0x118] sm:$0xff]
    %v88 = vld [vmem:[%s0 + $0x120] sm:$0xff]
    %v89 = vld [vmem:[%s0 + $0x128] sm:$0xff]
    %v90 = vld [vmem:[%s0 + $0x130] sm:$0xff]
    %v91 = vld [vmem:[%s0 + $0x138] sm:$0xff]
    %v92 = vld [vmem:[%s0 + $0x140] sm:$0xff]
    %v93 = vld [vmem:[%s0 + $0x148] sm:$0xff]
    %v94 = vld [vmem:[%s0 + $0x150] sm:$0xff]
    %v95 = vld [vmem:[%s0 + $0x158] sm:$0xff]
    %v96 = vld [vmem:[%s0 + $0x160] sm:$0xff]
    %v97 = vld [vmem:[%s0 + $0x168] sm:$0xff]
    %v98 = vld [vmem:[%s0 + $0x170] sm:$0xff]
    %v99 = vld [vmem:[%s0 + $0x178] sm:$0xff]
    %v100 = vld [vmem:[%s0 + $0x180] sm:$0xff]
    %v101 = vld [vmem:[%s0 + $0x188] sm:$0xff]
    %v102 = vld [vmem:[%s0 + $0x190] sm:$0xff]
    %v103 = vld [vmem:[%s0 + $0x198] sm:$0xff]
    %v104 = vld [vmem:[%s0 + $0x1a0] sm:$0xff]
    %v105 = vld [vmem:[%s0 + $0x1a8] sm:$0xff]
    %v106 = vld [vmem:[%s0 + $0x1b0] sm:$0xff]
    %v107 = vld [vmem:[%s0 + $0x1b8] sm:$0xff]
    %v108 = vld [vmem:[%s0 + $0x1c0] sm:$0xff]
    %v109 = vld [vmem:[%s0 + $0x1c8] sm:$0xff]
    %v110 = vld [vmem:[%s0 + $0x1d0] sm:$0xff]
    %v111 = vld [vmem:[%s0 + $0x1d8] sm:$0xff]
    %v112 = vld [vmem:[%s0 + $0x1e0] sm:$0xff]
    %v113 = vld [vmem:[%s0 + $0x1e8] sm:$0xff]
    %v114 = vld [vmem:[%s0 + $0x1f0] sm:$0xff]
    %v115 = vld [vmem:[%s0 + $0x1f8] sm:$0xff]
    %v116 = vld [vmem:[%s0 + $0x200] sm:$0xff]
    %v117 = vld [vmem:[%s0 + $0x208] sm:$0xff]
    %v118 = vld [vmem:[%s0 + $0x210] sm:$0xff]
    %v119 = vld [vmem:[%s0 + $0x218] sm:$0xff]
    %v120 = vld [vmem:[%s0 + $0x220] sm:$0xff]
    %v121 = vld [vmem:[%s0 + $0x228] sm:$0xff]
    %v122 = vld [vmem:[%s0 + $0x230] sm:$0xff]
    %v123 = vld [vmem:[%s0 + $0x238] sm:$0xff]
    %v124 = vld [vmem:[%s0 + $0x240] sm:$0xff]
    %v125 = vld [vmem:[%s0 + $0x248] sm:$0xff]
    %v126 = vld [vmem:[%s0 + $0x250] sm:$0xff]
    %v127 = vld [vmem:[%s0 + $0x258] sm:$0xff]
    %v128 = vld [vmem:[%s0 + $0x260] sm:$0xff]
    %v129 = vld [vmem:[%s0 + $0x268] sm:$0xff]
    %v130 = vld [vmem:[%s0 + $0x270] sm:$0xff]
    %v131 = vld [vmem:[%s0 + $0x278] sm:$0xff]
    %v132 = vld [vmem:[%s0 + $0x280] sm:$0xff]
    %v133 = vld [vmem:[%s0 + $0x288] sm:$0xff]
    %v134 = vld [vmem:[%s0 + $0x290] sm:$0xff]
    %v135 = vld [vmem:[%s0 + $0x298] sm:$0xff]
    %v136 = vld [vmem:[%s0 + $0x2a0] sm:$0xff]
    %v137 = vld [vmem:[%s0 + $0x2a8] sm:$0xff]
    %v138 = vld [vmem:[%s0 + $0x2b0] sm:$0xff]
    %v139 = vld [vmem:[%s0 + $0x2b8] sm:$0xff]
    %v140 = vld [vmem:[%s0 + $0x2c0] sm:$0xff]
    %v141 = vld [vmem:[%s0 + $0x2c8] sm:$0xff]
    %v142 = vld [vmem:[%s0 + $0x2d0] sm:$0xff]
    %v143 = vld [vmem:[%s0 + $0x2d8] sm:$0xff]
    %v144 = vld [vmem:[%s0 + $0x2e0] sm:$0xff]
    %v145 = vld [vmem:[%s0 + $0x2e8] sm:$0xff]
    %v146 = vld [vmem:[%s0 + $0x2f0] sm:$0xff]
    %v147 = vld [vmem:[%s0 + $0x2f8] sm:$0xff]
    %v148 = vld [vmem:[%s0 + $0x300] sm:$0xff]
    %v149 = vld [vmem:[%s0 + $0x308] sm:$0xff]
    %v150 = vld [vmem:[%s0 + $0x310] sm:$0xff]
    %v151 = vld [vmem:[%s0 + $0x318] sm:$0xff]
    %v152 = vld [vmem:[%s0 + $0x320] sm:$0xff]
    %v153 = vld [vmem:[%s0 + $0x328] sm:$0xff]
    %v154 = vld [vmem:[%s0 + $0x330] sm:$0xff]
    %v155 = vld [vmem:[%s0 + $0x338] sm:$0xff]
    %v156 = vld [vmem:[%s0 + $0x340] sm:$0xff]
    %v157 = vld [vmem:[%s0 + $0x348] sm:$0xff]
    %v158 = vld [vmem:[%s0 + $0x350] sm:$0xff]
    %v159 = vld [vmem:[%s0 + $0x358] sm:$0xff]
    %v160 = vld [vmem:[%s0 + $0x360] sm:$0xff]
    %v161 = vld [vmem:[%s0 + $0x368] sm:$0xff]
    %v162 = vld [vmem:[%s0 + $0x370] sm:$0xff]
    %v163 = vld [vmem:[%s0 + $0x378] sm:$0xff]
    %v164 = vld [vmem:[%s0 + $0x380] sm:$0xff]
    %v165 = vld [vmem:[%s0 + $0x388] sm:$0xff]
    %v166 = vld [vmem:[%s0 + $0x390] sm:$0xff]
    %v167 = vld [vmem:[%s0 + $0x398] sm:$0xff]
    %v168 = vld [vmem:[%s0 + $0x3a0] sm:$0xff]
    %v169 = vld [vmem:[%s0 + $0x3a8] sm:$0xff]
    %v170 = vld [vmem:[%s0 + $0x3b0] sm:$0xff]
    %v171 = vld [vmem:[%s0 + $0x3b8] sm:$0xff]
    %v172 = vld [vmem:[%s0 + $0x3c0] sm:$0xff]
    %v173 = vld [vmem:[%s0 + $0x3c8] sm:$0xff]
    %v174 = vld [vmem:[%s0 + $0x3d0] sm:$0xff]
    %v175 = vld [vmem:[%s0 + $0x3d8] sm:$0xff]
    %v176 = vld [vmem:[%s0 + $0x3e0] sm:$0xff]
    %v177 = vld [vmem:[%s0 + $0x3e8] sm:$0xff]
    %v178 = vld [vmem:[%s0 + $0x3f0] sm:$0xff]
    %v179 = vld [vmem:[%s0 + $0x3f8] sm:$0xff]
    %v180 = vld [vmem:[%s0 + $0x400] sm:$0xff]
    %v181 = vld [vmem:[%s0 + $0x408] sm:$0xff]
    %v182 = vld [vmem:[%s0 + $0x410] sm:$0xff]
    %v183 = vld [vmem:[%s0 + $0x418] sm:$0xff]
    %v184 = vld [vmem:[%s0 + $0x420] sm:$0xff]
    %v185 = vld [vmem:[%s0 + $0x428] sm:$0xff]
    %v186 = vld [vmem:[%s0 + $0x430] sm:$0xff]
    %v187 = vld [vmem:[%s0 + $0x438] sm:$0xff]
    %v188 = vld [vmem:[%s0 + $0x440] sm:$0xff]
    %v189 = vld [vmem:[%s0 + $0x448] sm:$0xff]
    %v190 = vld [vmem:[%s0 + $0x450] sm:$0xff]
    %v191 = vld [vmem:[%s0 + $0x458] sm:$0xff]
    %v192 = vpack.c.bf16 %v59, %v52
    %v193 = vpack.c.bf16 %v60, %v53
    %v194 = vpack.c.bf16 %v61, %v54
    %v195 = vpack.c.bf16 %v62, %v55
    %v196 = vpack.c.bf16 %v63, %v56
    %v197 = vpack.c.bf16 %v64, %v57
    %v198 = vpack.c.bf16 %v65, %v58
    %v199 = vpack.c.bf16 %v73, %v66
    %v200 = vpack.c.bf16 %v74, %v67
    %v201 = vpack.c.bf16 %v75, %v68
    %v202 = vpack.c.bf16 %v76, %v69
    %v203 = vpack.c.bf16 %v77, %v70
    %v204 = vpack.c.bf16 %v78, %v71
    %v205 = vpack.c.bf16 %v79, %v72
    %v206 = vpack.c.bf16 %v87, %v80
    %v207 = vpack.c.bf16 %v88, %v81
    %v208 = vpack.c.bf16 %v89, %v82
    %v209 = vpack.c.bf16 %v90, %v83
    %v210 = vpack.c.bf16 %v91, %v84
    %v211 = vpack.c.bf16 %v92, %v85
    %v212 = vpack.c.bf16 %v93, %v86
    %v213 = vpack.c.bf16 %v101, %v94
    %v214 = vpack.c.bf16 %v102, %v95
    %v215 = vpack.c.bf16 %v103, %v96
    %v216 = vpack.c.bf16 %v104, %v97
    %v217 = vpack.c.bf16 %v105, %v98
    %v218 = vpack.c.bf16 %v106, %v99
    %v219 = vpack.c.bf16 %v107, %v100
    %v220 = vpack.c.bf16 %v115, %v108
    %v221 = vpack.c.bf16 %v116, %v109
    %v222 = vpack.c.bf16 %v117, %v110
    %v223 = vpack.c.bf16 %v118, %v111
    %v224 = vpack.c.bf16 %v119, %v112
    %v225 = vpack.c.bf16 %v120, %v113
    %v226 = vpack.c.bf16 %v121, %v114
    %v227 = vpack.c.bf16 %v129, %v122
    %v228 = vpack.c.bf16 %v130, %v123
    %v229 = vpack.c.bf16 %v131, %v124
    %v230 = vpack.c.bf16 %v132, %v125
    %v231 = vpack.c.bf16 %v133, %v126
    %v232 = vpack.c.bf16 %v134, %v127
    %v233 = vpack.c.bf16 %v135, %v128
    %v234 = vpack.c.bf16 %v143, %v136
    %v235 = vpack.c.bf16 %v144, %v137
    %v236 = vpack.c.bf16 %v145, %v138
    %v237 = vpack.c.bf16 %v146, %v139
    %v238 = vpack.c.bf16 %v147, %v140
    %v239 = vpack.c.bf16 %v148, %v141
    %v240 = vpack.c.bf16 %v149, %v142
    %v241 = vpack.c.bf16 %v157, %v150
    %v242 = vpack.c.bf16 %v158, %v151
    %v243 = vpack.c.bf16 %v159, %v152
    %v244 = vpack.c.bf16 %v160, %v153
    %v245 = vpack.c.bf16 %v161, %v154
    %v246 = vpack.c.bf16 %v162, %v155
    %v247 = vpack.c.bf16 %v163, %v156
    %v248 = vpack.c.bf16 %v171, %v164
    %v249 = vpack.c.bf16 %v172, %v165
    %v250 = vpack.c.bf16 %v173, %v166
    %v251 = vpack.c.bf16 %v174, %v167
    %v252 = vpack.c.bf16 %v175, %v168
    %v253 = vpack.c.bf16 %v176, %v169
    %v254 = vpack.c.bf16 %v177, %v170
    %v255 = vpack.c.bf16 %v185, %v178
    %v256 = vpack.c.bf16 %v186, %v179
    %v257 = vpack.c.bf16 %v187, %v180
    %v258 = vpack.c.bf16 %v188, %v181
    %v259 = vpack.c.bf16 %v189, %v182
    %v260 = vpack.c.bf16 %v190, %v183
    %v261 = vpack.c.bf16 %v191, %v184
    %v262 = vld [vmem:[%s1] sm:$0xf]
    %v263 = vld [vmem:[%s1 + $0x4] sm:$0xf]
    %v264 = vld [vmem:[%s1 + $0x8] sm:$0xf]
    %v265 = vld [vmem:[%s1 + $0xc] sm:$0xf]
    %v266 = vld [vmem:[%s1 + $0x10] sm:$0xf]
    %v267 = vld [vmem:[%s1 + $0x14] sm:$0xf]
    %v268 = vld [vmem:[%s1 + $0x18] sm:$0xf]
    %v269 = vld [vmem:[%s1 + $0x1c] sm:$0xf]
    %v270 = vld [vmem:[%s1 + $0x20] sm:$0xf]
    %v271 = vld [vmem:[%s1 + $0x24] sm:$0xf]
    %v272 = vld [vmem:[%s1 + $0x28] sm:$0xf]
    %v273 = vld [vmem:[%s1 + $0x2c] sm:$0xf]
    %v274 = vld [vmem:[%s1 + $0x30] sm:$0xf]
    %v275 = vld [vmem:[%s1 + $0x34] sm:$0xf]
    %v276 = vld [vmem:[%s1 + $0x38] sm:$0xf]
    %v277 = vld [vmem:[%s1 + $0x3c] sm:$0xf]
    %v278 = vld [vmem:[%s1 + $0x40] sm:$0xf]
    %v279 = vld [vmem:[%s1 + $0x44] sm:$0xf]
    %v280 = vld [vmem:[%s1 + $0x48] sm:$0xf]
    %v281 = vld [vmem:[%s1 + $0x4c] sm:$0xf]
    %v282 = vld [vmem:[%s1 + $0x50] sm:$0xf]
    %v283 = vld [vmem:[%s1 + $0x54] sm:$0xf]
    %v284 = vld [vmem:[%s1 + $0x58] sm:$0xf]
    %v285 = vld [vmem:[%s1 + $0x5c] sm:$0xf]
    %v286 = vld [vmem:[%s1 + $0x60] sm:$0xf]
    %v287 = vld [vmem:[%s1 + $0x64] sm:$0xf]
    %v288 = vld [vmem:[%s1 + $0x68] sm:$0xf]
    %v289 = vld [vmem:[%s1 + $0x6c] sm:$0xf]
    %v290 = vld [vmem:[%s1 + $0x70] sm:$0xf]
    %v291 = vld [vmem:[%s1 + $0x74] sm:$0xf]
    %v292 = vld [vmem:[%s1 + $0x78] sm:$0xf]
    %v293 = vld [vmem:[%s1 + $0x7c] sm:$0xf]
    %v294 = vld [vmem:[%s1 + $0x80] sm:$0xf]
    %v295 = vld [vmem:[%s1 + $0x84] sm:$0xf]
    %v296 = vld [vmem:[%s1 + $0x88] sm:$0xf]
    %v297 = vld [vmem:[%s1 + $0x8c] sm:$0xf]
    %v298 = vld [vmem:[%s1 + $0x90] sm:$0xf]
    %v299 = vld [vmem:[%s1 + $0x94] sm:$0xf]
    %v300 = vld [vmem:[%s1 + $0x98] sm:$0xf]
    %v301 = vld [vmem:[%s1 + $0x9c] sm:$0xf]
    %v302 = vld [vmem:[%s1 + $0xa0] sm:$0xf]
    %v303 = vld [vmem:[%s1 + $0xa4] sm:$0xf]
    %v304 = vld [vmem:[%s1 + $0xa8] sm:$0xf]
    %v305 = vld [vmem:[%s1 + $0xac] sm:$0xf]
    %v306 = vld [vmem:[%s1 + $0xb0] sm:$0xf]
    %v307 = vld [vmem:[%s1 + $0xb4] sm:$0xf]
    %v308 = vld [vmem:[%s1 + $0xb8] sm:$0xf]
    %v309 = vld [vmem:[%s1 + $0xbc] sm:$0xf]
    %v310 = vld [vmem:[%s1 + $0xc0] sm:$0xf]
    %v311 = vld [vmem:[%s1 + $0xc4] sm:$0xf]
    %v312 = vld [vmem:[%s1 + $0xc8] sm:$0xf]
    %v313 = vld [vmem:[%s1 + $0xcc] sm:$0xf]
    %v314 = vld [vmem:[%s1 + $0xd0] sm:$0xf]
    %v315 = vld [vmem:[%s1 + $0xd4] sm:$0xf]
    %v316 = vld [vmem:[%s1 + $0xd8] sm:$0xf]
    %v317 = vld [vmem:[%s1 + $0xdc] sm:$0xf]
    %v318 = vld [vmem:[%s1 + $0xe0] sm:$0xf]
    %v319 = vld [vmem:[%s1 + $0xe4] sm:$0xf]
    %v320 = vld [vmem:[%s1 + $0xe8] sm:$0xf]
    %v321 = vld [vmem:[%s1 + $0xec] sm:$0xf]
    %v322 = vld [vmem:[%s1 + $0xf0] sm:$0xf]
    %v323 = vld [vmem:[%s1 + $0xf4] sm:$0xf]
    %v324 = vld [vmem:[%s1 + $0xf8] sm:$0xf]
    %v325 = vld [vmem:[%s1 + $0xfc] sm:$0xf]
    %v326 = vld [vmem:[%s1 + $0x100] sm:$0xf]
    %v327 = vld [vmem:[%s1 + $0x104] sm:$0xf]
    %v328 = vld [vmem:[%s1 + $0x108] sm:$0xf]
    %v329 = vld [vmem:[%s1 + $0x10c] sm:$0xf]
    %v330 = vld [vmem:[%s1 + $0x110] sm:$0xf]
    %v331 = vld [vmem:[%s1 + $0x114] sm:$0xf]
    %v332 = vld [vmem:[%s1 + $0x118] sm:$0xf]
    %v333 = vld [vmem:[%s1 + $0x11c] sm:$0xf]
    %v334 = vld [vmem:[%s1 + $0x120] sm:$0xf]
    %v335 = vld [vmem:[%s1 + $0x124] sm:$0xf]
    %v336 = vld [vmem:[%s1 + $0x128] sm:$0xf]
    %v337 = vld [vmem:[%s1 + $0x12c] sm:$0xf]
    %v338 = vld [vmem:[%s1 + $0x130] sm:$0xf]
    %v339 = vld [vmem:[%s1 + $0x134] sm:$0xf]
    %v340 = vld [vmem:[%s1 + $0x138] sm:$0xf]
    %v341 = vld [vmem:[%s1 + $0x13c] sm:$0xf]
    %v342 = vld [vmem:[%s1 + $0x140] sm:$0xf]
    %v343 = vld [vmem:[%s1 + $0x144] sm:$0xf]
    %v344 = vld [vmem:[%s1 + $0x148] sm:$0xf]
    %v345 = vld [vmem:[%s1 + $0x14c] sm:$0xf]
    %v346 = vld [vmem:[%s1 + $0x150] sm:$0xf]
    %v347 = vld [vmem:[%s1 + $0x154] sm:$0xf]
    %v348 = vld [vmem:[%s1 + $0x158] sm:$0xf]
    %v349 = vld [vmem:[%s1 + $0x15c] sm:$0xf]
    %v350 = vld [vmem:[%s1 + $0x160] sm:$0xf]
    %v351 = vld [vmem:[%s1 + $0x164] sm:$0xf]
    %v352 = vld [vmem:[%s1 + $0x168] sm:$0xf]
    %v353 = vld [vmem:[%s1 + $0x16c] sm:$0xf]
    %v354 = vld [vmem:[%s1 + $0x170] sm:$0xf]
    %v355 = vld [vmem:[%s1 + $0x174] sm:$0xf]
    %v356 = vld [vmem:[%s1 + $0x178] sm:$0xf]
    %v357 = vld [vmem:[%s1 + $0x17c] sm:$0xf]
    %v358 = vld [vmem:[%s1 + $0x180] sm:$0xf]
    %v359 = vld [vmem:[%s1 + $0x184] sm:$0xf]
    %v360 = vld [vmem:[%s2] sm:$0x1]
    %v362 = vlaneseq
    %v363 = vshrl.u32 %v362, 7
    %v364 = vsub.s32 0, %v363
    %v365 = vrot.slane %v360, %v364
    %v465 = vunpack.c.l.b16 %v262
    %v466 = vunpack.c.l.b16 %v263
    %v467 = vunpack.c.l.b16 %v264
    %v468 = vunpack.c.l.b16 %v265
    %v469 = vunpack.c.l.b16 %v266
    %v470 = vunpack.c.l.b16 %v267
    %v471 = vunpack.c.l.b16 %v268
    %v472 = vunpack.c.l.b16 %v269
    %v473 = vunpack.c.l.b16 %v270
    %v474 = vunpack.c.l.b16 %v271
    %v475 = vunpack.c.l.b16 %v272
    %v476 = vunpack.c.l.b16 %v273
    %v477 = vunpack.c.l.b16 %v274
    %v478 = vunpack.c.l.b16 %v275
    %v479 = vunpack.c.l.b16 %v276
    %v480 = vunpack.c.l.b16 %v277
    %v481 = vunpack.c.l.b16 %v278
    %v482 = vunpack.c.l.b16 %v279
    %v483 = vunpack.c.l.b16 %v280
    %v484 = vunpack.c.l.b16 %v281
    %v485 = vunpack.c.l.b16 %v282
    %v486 = vunpack.c.l.b16 %v283
    %v487 = vunpack.c.l.b16 %v284
    %v488 = vunpack.c.l.b16 %v285
    %v489 = vunpack.c.l.b16 %v286
    %v490 = vunpack.c.l.b16 %v287
    %v491 = vunpack.c.l.b16 %v288
    %v492 = vunpack.c.l.b16 %v289
    %v493 = vunpack.c.l.b16 %v290
    %v494 = vunpack.c.l.b16 %v291
    %v495 = vunpack.c.l.b16 %v292
    %v496 = vunpack.c.l.b16 %v293
    %v497 = vunpack.c.l.b16 %v294
    %v498 = vunpack.c.l.b16 %v295
    %v499 = vunpack.c.l.b16 %v296
    %v500 = vunpack.c.l.b16 %v297
    %v501 = vunpack.c.l.b16 %v298
    %v502 = vunpack.c.l.b16 %v299
    %v503 = vunpack.c.l.b16 %v300
    %v504 = vunpack.c.l.b16 %v301
    %v505 = vunpack.c.l.b16 %v302
    %v506 = vunpack.c.l.b16 %v303
    %v507 = vunpack.c.l.b16 %v304
    %v508 = vunpack.c.l.b16 %v305
    %v509 = vunpack.c.l.b16 %v306
    %v510 = vunpack.c.l.b16 %v307
    %v511 = vunpack.c.l.b16 %v308
    %v512 = vunpack.c.l.b16 %v309
    %v513 = vunpack.c.l.b16 %v310
    %v514 = vunpack.c.l.b16 %v311
    %v515 = vunpack.c.l.b16 %v312
    %v516 = vunpack.c.l.b16 %v313
    %v517 = vunpack.c.l.b16 %v314
    %v518 = vunpack.c.l.b16 %v315
    %v519 = vunpack.c.l.b16 %v316
    %v520 = vunpack.c.l.b16 %v317
    %v521 = vunpack.c.l.b16 %v318
    %v522 = vunpack.c.l.b16 %v319
    %v523 = vunpack.c.l.b16 %v320
    %v524 = vunpack.c.l.b16 %v321
    %v525 = vunpack.c.l.b16 %v322
    %v526 = vunpack.c.l.b16 %v323
    %v527 = vunpack.c.l.b16 %v324
    %v528 = vunpack.c.l.b16 %v325
    %v529 = vunpack.c.l.b16 %v326
    %v530 = vunpack.c.l.b16 %v327
    %v531 = vunpack.c.l.b16 %v328
    %v532 = vunpack.c.l.b16 %v329
    %v533 = vunpack.c.l.b16 %v330
    %v534 = vunpack.c.l.b16 %v331
    %v535 = vunpack.c.l.b16 %v332
    %v536 = vunpack.c.l.b16 %v333
    %v537 = vunpack.c.l.b16 %v334
    %v538 = vunpack.c.l.b16 %v335
    %v539 = vunpack.c.l.b16 %v336
    %v540 = vunpack.c.l.b16 %v337
    %v541 = vunpack.c.l.b16 %v338
    %v542 = vunpack.c.l.b16 %v339
    %v543 = vunpack.c.l.b16 %v340
    %v544 = vunpack.c.l.b16 %v341
    %v545 = vunpack.c.l.b16 %v342
    %v546 = vunpack.c.l.b16 %v343
    %v547 = vunpack.c.l.b16 %v344
    %v548 = vunpack.c.l.b16 %v345
    %v549 = vunpack.c.l.b16 %v346
    %v550 = vunpack.c.l.b16 %v347
    %v551 = vunpack.c.l.b16 %v348
    %v552 = vunpack.c.l.b16 %v349
    %v553 = vunpack.c.l.b16 %v350
    %v554 = vunpack.c.l.b16 %v351
    %v555 = vunpack.c.l.b16 %v352
    %v556 = vunpack.c.l.b16 %v353
    %v557 = vunpack.c.l.b16 %v354
    %v558 = vunpack.c.l.b16 %v355
    %v559 = vunpack.c.l.b16 %v356
    %v560 = vunpack.c.l.b16 %v357
    %v561 = vunpack.c.l.b16 %v358
    %v562 = vunpack.c.l.b16 %v359
    %v563 = vpack.c.b16 %v466, %v465
    %v564 = vpack.c.b16 %v468, %v467
    %v565 = vpack.c.b16 %v470, %v469
    %v566 = vpack.c.b16 %v472, %v471
    %v567 = vpack.c.b16 %v474, %v473
    %v568 = vpack.c.b16 %v476, %v475
    %v569 = vpack.c.b16 %v478, %v477
    %v570 = vpack.c.b16 %v480, %v479
    %v571 = vpack.c.b16 %v482, %v481
    %v572 = vpack.c.b16 %v484, %v483
    %v573 = vpack.c.b16 %v486, %v485
    %v574 = vpack.c.b16 %v488, %v487
    %v575 = vpack.c.b16 %v490, %v489
    %v576 = vpack.c.b16 %v492, %v491
    %v577 = vpack.c.b16 %v494, %v493
    %v578 = vpack.c.b16 %v496, %v495
    %v579 = vpack.c.b16 %v498, %v497
    %v580 = vpack.c.b16 %v500, %v499
    %v581 = vpack.c.b16 %v502, %v501
    %v582 = vpack.c.b16 %v504, %v503
    %v583 = vpack.c.b16 %v506, %v505
    %v584 = vpack.c.b16 %v508, %v507
    %v585 = vpack.c.b16 %v510, %v509
    %v586 = vpack.c.b16 %v512, %v511
    %v587 = vpack.c.b16 %v514, %v513
    %v588 = vpack.c.b16 %v516, %v515
    %v589 = vpack.c.b16 %v518, %v517
    %v590 = vpack.c.b16 %v520, %v519
    %v591 = vpack.c.b16 %v522, %v521
    %v592 = vpack.c.b16 %v524, %v523
    %v593 = vpack.c.b16 %v526, %v525
    %v594 = vpack.c.b16 %v528, %v527
    %v595 = vpack.c.b16 %v530, %v529
    %v596 = vpack.c.b16 %v532, %v531
    %v597 = vpack.c.b16 %v534, %v533
    %v598 = vpack.c.b16 %v536, %v535
    %v599 = vpack.c.b16 %v538, %v537
    %v600 = vpack.c.b16 %v540, %v539
    %v601 = vpack.c.b16 %v542, %v541
    %v602 = vpack.c.b16 %v544, %v543
    %v603 = vpack.c.b16 %v546, %v545
    %v604 = vpack.c.b16 %v548, %v547
    %v605 = vpack.c.b16 %v550, %v549
    %v606 = vpack.c.b16 %v552, %v551
    %v607 = vpack.c.b16 %v554, %v553
    %v608 = vpack.c.b16 %v556, %v555
    %v609 = vpack.c.b16 %v558, %v557
    %v610 = vpack.c.b16 %v560, %v559
    %v611 = vpack.c.b16 %v562, %v561
    %vm661 = vcmask 130048
    %v663 = vsel %vm661, %v198, 0
    %v666 = vsel %vm661, %v205, 0
    %v669 = vsel %vm661, %v212, 0
    %v672 = vsel %vm661, %v219, 0
    %v675 = vsel %vm661, %v226, 0
    %v678 = vsel %vm661, %v233, 0
    %v681 = vsel %vm661, %v240, 0
    %v684 = vsel %vm661, %v247, 0
    %v687 = vsel %vm661, %v254, 0
    %v690 = vsel %vm661, %v261, 0
    %692 = vmatprep.subr.bf16.mxu0 0
    %693 = vmatpush1.bf16.msra.mxu0 %v563
    %694 = vmatprep.subr.bf16.mxu0 0
    %695 = vmatpush1.bf16.msra.mxu0 %v564
    %696 = vmatprep.subr.bf16.mxu0 0
    %697 = vmatpush1.bf16.msra.mxu0 %v565
    %698 = vmatprep.subr.bf16.mxu0 0
    %699 = vmatpush1.bf16.msra.mxu0 %v566
    %700 = vmatprep.subr.bf16.mxu0 0
    %701 = vmatpush1.bf16.msra.mxu0 %v567
    %702 = vmatprep.subr.bf16.mxu0 0
    %703 = vmatpush1.bf16.msra.mxu0 %v568
    %704 = vmatprep.subr.bf16.mxu0 0
    %705 = vmatpush1.bf16.msra.mxu0 %v569
    %706 = vmatprep.subr.bf16.mxu0 0
    %707 = vmatpush1.bf16.msra.mxu0 %v570
    %708 = vmatprep.subr.bf16.mxu0 0
    %709 = vmatpush1.bf16.msra.mxu0 %v571
    %710 = vmatprep.subr.bf16.mxu0 0
    %711 = vmatpush1.bf16.msra.mxu0 %v572
    %712 = vmatprep.subr.bf16.mxu0 0
    %713 = vmatpush1.bf16.msra.mxu0 %v573
    %714 = vmatprep.subr.bf16.mxu0 0
    %715 = vmatpush1.bf16.msra.mxu0 %v574
    %716 = vmatprep.subr.bf16.mxu0 0
    %717 = vmatpush1.bf16.msra.mxu0 %v575
    %718 = vmatprep.subr.bf16.mxu0 0
    %719 = vmatpush1.bf16.msra.mxu0 %v576
    %720 = vmatprep.subr.bf16.mxu0 0
    %721 = vmatpush1.bf16.msra.mxu0 %v577
    %722 = vmatprep.subr.bf16.mxu0 0
    %723 = vmatpush1.bf16.msra.mxu0 %v578
    %724 = vmatprep.mubr.bf16.mxu0 %v193
    %725 = vmatmul.mubr.bf16.gmra.mrb[0].mxu0 %v192
    %v726 = vpop.f32.mrb[0].mxu0
    %v727 = vadd.f32 %v365, %v726
    %v728 = vpop.f32.mrb[0].mxu0
    %v729 = vpop.f32.mrb[0].mxu0
    %v730 = vadd.f32 %v365, %v729
    %v731 = vpop.f32.mrb[0].mxu0
    %732 = vmatprep.mubr.bf16.mxu0 %v200
    %733 = vmatmul.mubr.bf16.gmra.mrb[0].mxu0 %v199
    %v734 = vpop.f32.mrb[0].mxu0
    %v735 = vadd.f32 %v365, %v734
    %v736 = vpop.f32.mrb[0].mxu0
    %v737 = vpop.f32.mrb[0].mxu0
    %v738 = vadd.f32 %v365, %v737
    %v739 = vpop.f32.mrb[0].mxu0
    %740 = vmatprep.mubr.bf16.mxu0 %v207
    %741 = vmatmul.mubr.bf16.gmra.mrb[0].mxu0 %v206
    %v742 = vpop.f32.mrb[0].mxu0
    %v743 = vadd.f32 %v365, %v742
    %v744 = vpop.f32.mrb[0].mxu0
    %v745 = vpop.f32.mrb[0].mxu0
    %v746 = vadd.f32 %v365, %v745
    %v747 = vpop.f32.mrb[0].mxu0
    %748 = vmatprep.mubr.bf16.mxu0 %v214
    %749 = vmatmul.mubr.bf16.gmra.mrb[0].mxu0 %v213
    %v750 = vpop.f32.mrb[0].mxu0
    %v751 = vadd.f32 %v365, %v750
    %v752 = vpop.f32.mrb[0].mxu0
    %v753 = vpop.f32.mrb[0].mxu0
    %v754 = vadd.f32 %v365, %v753
    %v755 = vpop.f32.mrb[0].mxu0
    %756 = vmatprep.mubr.bf16.mxu0 %v221
    %757 = vmatmul.mubr.bf16.gmra.mrb[0].mxu0 %v220
    %v758 = vpop.f32.mrb[0].mxu0
    %v759 = vadd.f32 %v365, %v758
    %v760 = vpop.f32.mrb[0].mxu0
    %v761 = vpop.f32.mrb[0].mxu0
    %v762 = vadd.f32 %v365, %v761
    %v763 = vpop.f32.mrb[0].mxu0
    %764 = vmatprep.mubr.bf16.mxu0 %v228
    %765 = vmatmul.mubr.bf16.gmra.mrb[0].mxu0 %v227
    %v766 = vpop.f32.mrb[0].mxu0
    %v767 = vadd.f32 %v365, %v766
    %v768 = vpop.f32.mrb[0].mxu0
    %v769 = vpop.f32.mrb[0].mxu0
    %v770 = vadd.f32 %v365, %v769
    %v771 = vpop.f32.mrb[0].mxu0
    %772 = vmatprep.mubr.bf16.mxu0 %v235
    %773 = vmatmul.mubr.bf16.gmra.mrb[0].mxu0 %v234
    %v774 = vpop.f32.mrb[0].mxu0
    %v775 = vadd.f32 %v365, %v774
    %v776 = vpop.f32.mrb[0].mxu0
    %v777 = vpop.f32.mrb[0].mxu0
    %v778 = vadd.f32 %v365, %v777
    %v779 = vpop.f32.mrb[0].mxu0
    %780 = vmatprep.mubr.bf16.mxu0 %v242
    %781 = vmatmul.mubr.bf16.gmra.mrb[0].mxu0 %v241
    %v782 = vpop.f32.mrb[0].mxu0
    %v783 = vadd.f32 %v365, %v782
    %v784 = vpop.f32.mrb[0].mxu0
    %v785 = vpop.f32.mrb[0].mxu0
    %v786 = vadd.f32 %v365, %v785
    %v787 = vpop.f32.mrb[0].mxu0
    %788 = vmatprep.mubr.bf16.mxu0 %v249
    %789 = vmatmul.mubr.bf16.gmra.mrb[0].mxu0 %v248
    %v790 = vpop.f32.mrb[0].mxu0
    %v791 = vadd.f32 %v365, %v790
    %v792 = vpop.f32.mrb[0].mxu0
    %v793 = vpop.f32.mrb[0].mxu0
    %v794 = vadd.f32 %v365, %v793
    %v795 = vpop.f32.mrb[0].mxu0
    %796 = vmatprep.mubr.bf16.mxu0 %v256
    %797 = vmatmul.mubr.bf16.gmra.mrb[0].mxu0 %v255
    %v798 = vpop.f32.mrb[0].mxu0
    %v799 = vadd.f32 %v365, %v798
    %v800 = vpop.f32.mrb[0].mxu0
    %v801 = vpop.f32.mrb[0].mxu0
    %v802 = vadd.f32 %v365, %v801
    %v803 = vpop.f32.mrb[0].mxu0
    %804 = vdwg.mxu0
    %805 = vmatprep.subr.bf16.mxu0 0
    %806 = vmatpush1.bf16.msra.mxu0 %v579
    %807 = vmatprep.subr.bf16.mxu0 0
    %808 = vmatpush1.bf16.msra.mxu0 %v580
    %809 = vmatprep.subr.bf16.mxu0 0
    %810 = vmatpush1.bf16.msra.mxu0 %v581
    %811 = vmatprep.subr.bf16.mxu0 0
    %812 = vmatpush1.bf16.msra.mxu0 %v582
    %813 = vmatprep.subr.bf16.mxu0 0
    %814 = vmatpush1.bf16.msra.mxu0 %v583
    %815 = vmatprep.subr.bf16.mxu0 0
    %816 = vmatpush1.bf16.msra.mxu0 %v584
    %817 = vmatprep.subr.bf16.mxu0 0
    %818 = vmatpush1.bf16.msra.mxu0 %v585
    %819 = vmatprep.subr.bf16.mxu0 0
    %820 = vmatpush1.bf16.msra.mxu0 %v586
    %821 = vmatprep.subr.bf16.mxu0 0
    %822 = vmatpush1.bf16.msra.mxu0 %v587
    %823 = vmatprep.subr.bf16.mxu0 0
    %824 = vmatpush1.bf16.msra.mxu0 %v588
    %825 = vmatprep.subr.bf16.mxu0 0
    %826 = vmatpush1.bf16.msra.mxu0 %v589
    %827 = vmatprep.subr.bf16.mxu0 0
    %828 = vmatpush1.bf16.msra.mxu0 %v590
    %829 = vmatprep.subr.bf16.mxu0 0
    %830 = vmatpush1.bf16.msra.mxu0 %v591
    %831 = vmatprep.subr.bf16.mxu0 0
    %832 = vmatpush1.bf16.msra.mxu0 %v592
    %833 = vmatprep.subr.bf16.mxu0 0
    %834 = vmatpush1.bf16.msra.mxu0 %v593
    %835 = vmatprep.subr.bf16.mxu0 0
    %836 = vmatpush1.bf16.msra.mxu0 %v594
    %837 = vmatprep.mubr.bf16.mxu0 %v195
    %838 = vmatmul.mubr.bf16.gmra.mrb[0].mxu0 %v194
    %v839 = vpop.f32.mrb[0].mxu0
    %v840 = vadd.f32 %v727, %v839
    %v841 = vpop.f32.mrb[0].mxu0
    %v842 = vpop.f32.mrb[0].mxu0
    %v843 = vadd.f32 %v730, %v842
    %v844 = vpop.f32.mrb[0].mxu0
    %845 = vmatprep.mubr.bf16.mxu0 %v202
    %846 = vmatmul.mubr.bf16.gmra.mrb[0].mxu0 %v201
    %v847 = vpop.f32.mrb[0].mxu0
    %v848 = vadd.f32 %v735, %v847
    %v849 = vpop.f32.mrb[0].mxu0
    %v850 = vpop.f32.mrb[0].mxu0
    %v851 = vadd.f32 %v738, %v850
    %v852 = vpop.f32.mrb[0].mxu0
    %853 = vmatprep.mubr.bf16.mxu0 %v209
    %854 = vmatmul.mubr.bf16.gmra.mrb[0].mxu0 %v208
    %v855 = vpop.f32.mrb[0].mxu0
    %v856 = vadd.f32 %v743, %v855
    %v857 = vpop.f32.mrb[0].mxu0
    %v858 = vpop.f32.mrb[0].mxu0
    %v859 = vadd.f32 %v746, %v858
    %v860 = vpop.f32.mrb[0].mxu0
    %861 = vmatprep.mubr.bf16.mxu0 %v216
    %862 = vmatmul.mubr.bf16.gmra.mrb[0].mxu0 %v215
    %v863 = vpop.f32.mrb[0].mxu0
    %v864 = vadd.f32 %v751, %v863
    %v865 = vpop.f32.mrb[0].mxu0
    %v866 = vpop.f32.mrb[0].mxu0
    %v867 = vadd.f32 %v754, %v866
    %v868 = vpop.f32.mrb[0].mxu0
    %869 = vmatprep.mubr.bf16.mxu0 %v223
    %870 = vmatmul.mubr.bf16.gmra.mrb[0].mxu0 %v222
    %v871 = vpop.f32.mrb[0].mxu0
    %v872 = vadd.f32 %v759, %v871
    %v873 = vpop.f32.mrb[0].mxu0
    %v874 = vpop.f32.mrb[0].mxu0
    %v875 = vadd.f32 %v762, %v874
    %v876 = vpop.f32.mrb[0].mxu0
    %877 = vmatprep.mubr.bf16.mxu0 %v230
    %878 = vmatmul.mubr.bf16.gmra.mrb[0].mxu0 %v229
    %v879 = vpop.f32.mrb[0].mxu0
    %v880 = vadd.f32 %v767, %v879
    %v881 = vpop.f32.mrb[0].mxu0
    %v882 = vpop.f32.mrb[0].mxu0
    %v883 = vadd.f32 %v770, %v882
    %v884 = vpop.f32.mrb[0].mxu0
    %885 = vmatprep.mubr.bf16.mxu0 %v237
    %886 = vmatmul.mubr.bf16.gmra.mrb[0].mxu0 %v236
    %v887 = vpop.f32.mrb[0].mxu0
    %v888 = vadd.f32 %v775, %v887
    %v889 = vpop.f32.mrb[0].mxu0
    %v890 = vpop.f32.mrb[0].mxu0
    %v891 = vadd.f32 %v778, %v890
    %v892 = vpop.f32.mrb[0].mxu0
    %893 = vmatprep.mubr.bf16.mxu0 %v244
    %894 = vmatmul.mubr.bf16.gmra.mrb[0].mxu0 %v243
    %v895 = vpop.f32.mrb[0].mxu0
    %v896 = vadd.f32 %v783, %v895
    %v897 = vpop.f32.mrb[0].mxu0
    %v898 = vpop.f32.mrb[0].mxu0
    %v899 = vadd.f32 %v786, %v898
    %v900 = vpop.f32.mrb[0].mxu0
    %901 = vmatprep.mubr.bf16.mxu0 %v251
    %902 = vmatmul.mubr.bf16.gmra.mrb[0].mxu0 %v250
    %v903 = vpop.f32.mrb[0].mxu0
    %v904 = vadd.f32 %v791, %v903
    %v905 = vpop.f32.mrb[0].mxu0
    %v906 = vpop.f32.mrb[0].mxu0
    %v907 = vadd.f32 %v794, %v906
    %v908 = vpop.f32.mrb[0].mxu0
    %909 = vmatprep.mubr.bf16.mxu0 %v258
    %910 = vmatmul.mubr.bf16.gmra.mrb[0].mxu0 %v257
    %v911 = vpop.f32.mrb[0].mxu0
    %v912 = vadd.f32 %v799, %v911
    %v913 = vpop.f32.mrb[0].mxu0
    %v914 = vpop.f32.mrb[0].mxu0
    %v915 = vadd.f32 %v802, %v914
    %v916 = vpop.f32.mrb[0].mxu0
    %917 = vdwg.mxu0
    %918 = vmatprep.subr.bf16.mxu0 0
    %919 = vmatpush1.bf16.msra.mxu0 %v595
    %920 = vmatprep.subr.bf16.mxu0 0
    %921 = vmatpush1.bf16.msra.mxu0 %v596
    %922 = vmatprep.subr.bf16.mxu0 0
    %923 = vmatpush1.bf16.msra.mxu0 %v597
    %924 = vmatprep.subr.bf16.mxu0 0
    %925 = vmatpush1.bf16.msra.mxu0 %v598
    %926 = vmatprep.subr.bf16.mxu0 0
    %927 = vmatpush1.bf16.msra.mxu0 %v599
    %928 = vmatprep.subr.bf16.mxu0 0
    %929 = vmatpush1.bf16.msra.mxu0 %v600
    %930 = vmatprep.subr.bf16.mxu0 0
    %931 = vmatpush1.bf16.msra.mxu0 %v601
    %932 = vmatprep.subr.bf16.mxu0 0
    %933 = vmatpush1.bf16.msra.mxu0 %v602
    %934 = vmatprep.subr.bf16.mxu0 0
    %935 = vmatpush1.bf16.msra.mxu0 %v603
    %936 = vmatprep.subr.bf16.mxu0 0
    %937 = vmatpush1.bf16.msra.mxu0 %v604
    %938 = vmatprep.subr.bf16.mxu0 0
    %939 = vmatpush1.bf16.msra.mxu0 %v605
    %940 = vmatprep.subr.bf16.mxu0 0
    %941 = vmatpush1.bf16.msra.mxu0 %v606
    %942 = vmatprep.subr.bf16.mxu0 0
    %943 = vmatpush1.bf16.msra.mxu0 %v607
    %944 = vmatprep.subr.bf16.mxu0 0
    %945 = vmatpush1.bf16.msra.mxu0 %v608
    %946 = vmatprep.subr.bf16.mxu0 0
    %947 = vmatpush1.bf16.msra.mxu0 %v609
    %948 = vmatprep.subr.bf16.mxu0 0
    %949 = vmatpush1.bf16.msra.mxu0 %v610
    %950 = vmatprep.mubr.bf16.mxu0 %v197
    %951 = vmatmul.mubr.bf16.gmra.mrb[0].mxu0 %v196
    %v952 = vpop.f32.mrb[0].mxu0
    %v953 = vadd.f32 %v840, %v952
    %v954 = vpop.f32.mrb[0].mxu0
    %v955 = vpop.f32.mrb[0].mxu0
    %v956 = vadd.f32 %v843, %v955
    %v957 = vpop.f32.mrb[0].mxu0
    %958 = vmatprep.mubr.bf16.mxu0 %v204
    %959 = vmatmul.mubr.bf16.gmra.mrb[0].mxu0 %v203
    %v960 = vpop.f32.mrb[0].mxu0
    %v961 = vadd.f32 %v848, %v960
    %v962 = vpop.f32.mrb[0].mxu0
    %v963 = vpop.f32.mrb[0].mxu0
    %v964 = vadd.f32 %v851, %v963
    %v965 = vpop.f32.mrb[0].mxu0
    %966 = vmatprep.mubr.bf16.mxu0 %v211
    %967 = vmatmul.mubr.bf16.gmra.mrb[0].mxu0 %v210
    %v968 = vpop.f32.mrb[0].mxu0
    %v969 = vadd.f32 %v856, %v968
    %v970 = vpop.f32.mrb[0].mxu0
    %v971 = vpop.f32.mrb[0].mxu0
    %v972 = vadd.f32 %v859, %v971
    %v973 = vpop.f32.mrb[0].mxu0
    %974 = vmatprep.mubr.bf16.mxu0 %v218
    %975 = vmatmul.mubr.bf16.gmra.mrb[0].mxu0 %v217
    %v976 = vpop.f32.mrb[0].mxu0
    %v977 = vadd.f32 %v864, %v976
    %v978 = vpop.f32.mrb[0].mxu0
    %v979 = vpop.f32.mrb[0].mxu0
    %v980 = vadd.f32 %v867, %v979
    %v981 = vpop.f32.mrb[0].mxu0
    %982 = vmatprep.mubr.bf16.mxu0 %v225
    %983 = vmatmul.mubr.bf16.gmra.mrb[0].mxu0 %v224
    %v984 = vpop.f32.mrb[0].mxu0
    %v985 = vadd.f32 %v872, %v984
    %v986 = vpop.f32.mrb[0].mxu0
    %v987 = vpop.f32.mrb[0].mxu0
    %v988 = vadd.f32 %v875, %v987
    %v989 = vpop.f32.mrb[0].mxu0
    %990 = vmatprep.mubr.bf16.mxu0 %v232
    %991 = vmatmul.mubr.bf16.gmra.mrb[0].mxu0 %v231
    %v992 = vpop.f32.mrb[0].mxu0
    %v993 = vadd.f32 %v880, %v992
    %v994 = vpop.f32.mrb[0].mxu0
    %v995 = vpop.f32.mrb[0].mxu0
    %v996 = vadd.f32 %v883, %v995
    %v997 = vpop.f32.mrb[0].mxu0
    %998 = vmatprep.mubr.bf16.mxu0 %v239
    %999 = vmatmul.mubr.bf16.gmra.mrb[0].mxu0 %v238
    %v1000 = vpop.f32.mrb[0].mxu0
    %v1001 = vadd.f32 %v888, %v1000
    %v1002 = vpop.f32.mrb[0].mxu0
    %v1003 = vpop.f32.mrb[0].mxu0
    %v1004 = vadd.f32 %v891, %v1003
    %v1005 = vpop.f32.mrb[0].mxu0
    %1006 = vmatprep.mubr.bf16.mxu0 %v246
    %1007 = vmatmul.mubr.bf16.gmra.mrb[0].mxu0 %v245
    %v1008 = vpop.f32.mrb[0].mxu0
    %v1009 = vadd.f32 %v896, %v1008
    %v1010 = vpop.f32.mrb[0].mxu0
    %v1011 = vpop.f32.mrb[0].mxu0
    %v1012 = vadd.f32 %v899, %v1011
    %v1013 = vpop.f32.mrb[0].mxu0
    %1014 = vmatprep.mubr.bf16.mxu0 %v253
    %1015 = vmatmul.mubr.bf16.gmra.mrb[0].mxu0 %v252
    %v1016 = vpop.f32.mrb[0].mxu0
    %v1017 = vadd.f32 %v904, %v1016
    %v1018 = vpop.f32.mrb[0].mxu0
    %v1019 = vpop.f32.mrb[0].mxu0
    %v1020 = vadd.f32 %v907, %v1019
    %v1021 = vpop.f32.mrb[0].mxu0
    %1022 = vmatprep.mubr.bf16.mxu0 %v260
    %1023 = vmatmul.mubr.bf16.gmra.mrb[0].mxu0 %v259
    %v1024 = vpop.f32.mrb[0].mxu0
    %v1025 = vadd.f32 %v912, %v1024
    %v1026 = vpop.f32.mrb[0].mxu0
    %v1027 = vpop.f32.mrb[0].mxu0
    %v1028 = vadd.f32 %v915, %v1027
    %v1029 = vpop.f32.mrb[0].mxu0
    %1030 = vdwg.mxu0
    %1031 = vmatprep.subr.bf16.mxu0 0
    %1032 = vmatpush1.bf16.msra.mxu0 %v611
    %1033 = vmatprep.subr.bf16.mxu0 0
    %1034 = vmatpush1.bf16.msra.mxu0 0
    %1035 = vmatprep.subr.bf16.mxu0 0
    %1036 = vmatpush1.bf16.msra.mxu0 0
    %1037 = vmatprep.subr.bf16.mxu0 0
    %1038 = vmatpush1.bf16.msra.mxu0 0
    %1039 = vmatprep.subr.bf16.mxu0 0
    %1040 = vmatpush1.bf16.msra.mxu0 0
    %1041 = vmatprep.subr.bf16.mxu0 0
    %1042 = vmatpush1.bf16.msra.mxu0 0
    %1043 = vmatprep.subr.bf16.mxu0 0
    %1044 = vmatpush1.bf16.msra.mxu0 0
    %1045 = vmatprep.subr.bf16.mxu0 0
    %1046 = vmatpush1.bf16.msra.mxu0 0
    %1047 = vmatprep.subr.bf16.mxu0 0
    %1048 = vmatpush1.bf16.msra.mxu0 0
    %1049 = vmatprep.subr.bf16.mxu0 0
    %1050 = vmatpush1.bf16.msra.mxu0 0
    %1051 = vmatprep.subr.bf16.mxu0 0
    %1052 = vmatpush1.bf16.msra.mxu0 0
    %1053 = vmatprep.subr.bf16.mxu0 0
    %1054 = vmatpush1.bf16.msra.mxu0 0
    %1055 = vmatprep.subr.bf16.mxu0 0
    %1056 = vmatpush1.bf16.msra.mxu0 0
    %1057 = vmatprep.subr.bf16.mxu0 0
    %1058 = vmatpush1.bf16.msra.mxu0 0
    %1059 = vmatprep.subr.bf16.mxu0 0
    %1060 = vmatpush1.bf16.msra.mxu0 0
    %1061 = vmatprep.subr.bf16.mxu0 0
    %1062 = vmatpush1.bf16.msra.mxu0 0
    %1063 = vmatprep.mubr.bf16.mxu0 0
    %1064 = vmatmul.mubr.bf16.gmra.mrb[0].mxu0 %v663
    %v1065 = vpop.f32.mrb[0].mxu0
    %v1066 = vadd.f32 %v953, %v1065
    %v1067 = vpop.f32.mrb[0].mxu0
    %v1068 = vpop.f32.mrb[0].mxu0
    %v1069 = vadd.f32 %v956, %v1068
    %v1070 = vpop.f32.mrb[0].mxu0
    %1071 = vmatprep.mubr.bf16.mxu0 0
    %1072 = vmatmul.mubr.bf16.gmra.mrb[0].mxu0 %v666
    %v1073 = vpop.f32.mrb[0].mxu0
    %v1074 = vadd.f32 %v961, %v1073
    %v1075 = vpop.f32.mrb[0].mxu0
    %v1076 = vpop.f32.mrb[0].mxu0
    %v1077 = vadd.f32 %v964, %v1076
    %v1078 = vpop.f32.mrb[0].mxu0
    %1079 = vmatprep.mubr.bf16.mxu0 0
    %1080 = vmatmul.mubr.bf16.gmra.mrb[0].mxu0 %v669
    %v1081 = vpop.f32.mrb[0].mxu0
    %v1082 = vadd.f32 %v969, %v1081
    %v1083 = vpop.f32.mrb[0].mxu0
    %v1084 = vpop.f32.mrb[0].mxu0
    %v1085 = vadd.f32 %v972, %v1084
    %v1086 = vpop.f32.mrb[0].mxu0
    %1087 = vmatprep.mubr.bf16.mxu0 0
    %1088 = vmatmul.mubr.bf16.gmra.mrb[0].mxu0 %v672
    %v1089 = vpop.f32.mrb[0].mxu0
    %v1090 = vadd.f32 %v977, %v1089
    %v1091 = vpop.f32.mrb[0].mxu0
    %v1092 = vpop.f32.mrb[0].mxu0
    %v1093 = vadd.f32 %v980, %v1092
    %v1094 = vpop.f32.mrb[0].mxu0
    %1095 = vmatprep.mubr.bf16.mxu0 0
    %1096 = vmatmul.mubr.bf16.gmra.mrb[0].mxu0 %v675
    %v1097 = vpop.f32.mrb[0].mxu0
    %v1098 = vadd.f32 %v985, %v1097
    %v1099 = vpop.f32.mrb[0].mxu0
    %v1100 = vpop.f32.mrb[0].mxu0
    %v1101 = vadd.f32 %v988, %v1100
    %v1102 = vpop.f32.mrb[0].mxu0
    %1103 = vmatprep.mubr.bf16.mxu0 0
    %1104 = vmatmul.mubr.bf16.gmra.mrb[0].mxu0 %v678
    %v1105 = vpop.f32.mrb[0].mxu0
    %v1106 = vadd.f32 %v993, %v1105
    %v1107 = vpop.f32.mrb[0].mxu0
    %v1108 = vpop.f32.mrb[0].mxu0
    %v1109 = vadd.f32 %v996, %v1108
    %v1110 = vpop.f32.mrb[0].mxu0
    %1111 = vmatprep.mubr.bf16.mxu0 0
    %1112 = vmatmul.mubr.bf16.gmra.mrb[0].mxu0 %v681
    %v1113 = vpop.f32.mrb[0].mxu0
    %v1114 = vadd.f32 %v1001, %v1113
    %v1115 = vpop.f32.mrb[0].mxu0
    %v1116 = vpop.f32.mrb[0].mxu0
    %v1117 = vadd.f32 %v1004, %v1116
    %v1118 = vpop.f32.mrb[0].mxu0
    %1119 = vmatprep.mubr.bf16.mxu0 0
    %1120 = vmatmul.mubr.bf16.gmra.mrb[0].mxu0 %v684
    %v1121 = vpop.f32.mrb[0].mxu0
    %v1122 = vadd.f32 %v1009, %v1121
    %v1123 = vpop.f32.mrb[0].mxu0
    %v1124 = vpop.f32.mrb[0].mxu0
    %v1125 = vadd.f32 %v1012, %v1124
    %v1126 = vpop.f32.mrb[0].mxu0
    %1127 = vmatprep.mubr.bf16.mxu0 0
    %1128 = vmatmul.mubr.bf16.gmra.mrb[0].mxu0 %v687
    %v1129 = vpop.f32.mrb[0].mxu0
    %v1130 = vadd.f32 %v1017, %v1129
    %v1131 = vpop.f32.mrb[0].mxu0
    %v1132 = vpop.f32.mrb[0].mxu0
    %v1133 = vadd.f32 %v1020, %v1132
    %v1134 = vpop.f32.mrb[0].mxu0
    %1135 = vmatprep.mubr.bf16.mxu0 0
    %1136 = vmatmul.mubr.bf16.gmra.mrb[0].mxu0 %v690
    %v1137 = vpop.f32.mrb[0].mxu0
    %v1138 = vadd.f32 %v1025, %v1137
    %v1139 = vpop.f32.mrb[0].mxu0
    %v1140 = vpop.f32.mrb[0].mxu0
    %v1141 = vadd.f32 %v1028, %v1140
    %v1142 = vpop.f32.mrb[0].mxu0
    %1143 = vdwg.mxu0
    %v1144 = vmax.f32 %v1066, 0.0
    %v1145 = vmax.f32 %v1069, 0.0
    %v1146 = vmax.f32 %v1074, 0.0
    %v1147 = vmax.f32 %v1077, 0.0
    %v1148 = vmax.f32 %v1082, 0.0
    %v1149 = vmax.f32 %v1085, 0.0
    %v1150 = vmax.f32 %v1090, 0.0
    %v1151 = vmax.f32 %v1093, 0.0
    %v1152 = vmax.f32 %v1098, 0.0
    %v1153 = vmax.f32 %v1101, 0.0
    %v1154 = vmax.f32 %v1106, 0.0
    %v1155 = vmax.f32 %v1109, 0.0
    %v1156 = vmax.f32 %v1114, 0.0
    %v1157 = vmax.f32 %v1117, 0.0
    %v1158 = vmax.f32 %v1122, 0.0
    %v1159 = vmax.f32 %v1125, 0.0
    %v1160 = vmax.f32 %v1130, 0.0
    %v1161 = vmax.f32 %v1133, 0.0
    %v1162 = vmax.f32 %v1138, 0.0
    %v1163 = vmax.f32 %v1141, 0.0
    %v1164 = vpack.c.bf16 %v1145, %v1144
    %v1165 = vpack.c.bf16 %v1147, %v1146
    %v1166 = vpack.c.bf16 %v1149, %v1148
    %v1167 = vpack.c.bf16 %v1151, %v1150
    %v1168 = vpack.c.bf16 %v1153, %v1152
    %v1169 = vpack.c.bf16 %v1155, %v1154
    %v1170 = vpack.c.bf16 %v1157, %v1156
    %v1171 = vpack.c.bf16 %v1159, %v1158
    %v1172 = vpack.c.bf16 %v1161, %v1160
    %v1173 = vpack.c.bf16 %v1163, %v1162
    %v1174 = vld [vmem:[%s3] sm:$0xf]
    %v1175 = vld [vmem:[%s3 + $0x4] sm:$0xf]
    %v1176 = vld [vmem:[%s3 + $0x8] sm:$0xf]
    %v1177 = vld [vmem:[%s3 + $0xc] sm:$0xf]
    %v1178 = vld [vmem:[%s3 + $0x10] sm:$0xf]
    %v1179 = vld [vmem:[%s3 + $0x14] sm:$0xf]
    %v1180 = vld [vmem:[%s3 + $0x18] sm:$0xf]
    %v1181 = vld [vmem:[%s3 + $0x1c] sm:$0xf]
    %v1182 = vld [vmem:[%s3 + $0x20] sm:$0xf]
    %v1183 = vld [vmem:[%s3 + $0x24] sm:$0xf]
    %v1184 = vld [vmem:[%s3 + $0x28] sm:$0xf]
    %v1185 = vld [vmem:[%s3 + $0x2c] sm:$0xf]
    %v1186 = vld [vmem:[%s3 + $0x30] sm:$0xf]
    %v1187 = vld [vmem:[%s3 + $0x34] sm:$0xf]
    %v1188 = vld [vmem:[%s3 + $0x38] sm:$0xf]
    %v1189 = vld [vmem:[%s3 + $0x3c] sm:$0xf]
    %v1190 = vld [vmem:[%s4] sm:$0x1]
    %v1192 = vlaneseq
    %v1193 = vshrl.u32 %v1192, 7
    %v1194 = vsub.s32 0, %v1193
    %v1195 = vrot.slane %v1190, %v1194
    %v1213 = vunpack.c.l.b16 %v1174
    %v1214 = vunpack.c.l.b16 %v1175
    %v1215 = vunpack.c.l.b16 %v1176
    %v1216 = vunpack.c.l.b16 %v1177
    %v1217 = vunpack.c.l.b16 %v1178
    %v1218 = vunpack.c.l.b16 %v1179
    %v1219 = vunpack.c.l.b16 %v1180
    %v1220 = vunpack.c.l.b16 %v1181
    %v1221 = vunpack.c.l.b16 %v1182
    %v1222 = vunpack.c.l.b16 %v1183
    %v1223 = vunpack.c.l.b16 %v1184
    %v1224 = vunpack.c.l.b16 %v1185
    %v1225 = vunpack.c.l.b16 %v1186
    %v1226 = vunpack.c.l.b16 %v1187
    %v1227 = vunpack.c.l.b16 %v1188
    %v1228 = vunpack.c.l.b16 %v1189
    %v1229 = vpack.c.b16 %v1214, %v1213
    %v1230 = vpack.c.b16 %v1216, %v1215
    %v1231 = vpack.c.b16 %v1218, %v1217
    %v1232 = vpack.c.b16 %v1220, %v1219
    %v1233 = vpack.c.b16 %v1222, %v1221
    %v1234 = vpack.c.b16 %v1224, %v1223
    %v1235 = vpack.c.b16 %v1226, %v1225
    %v1236 = vpack.c.b16 %v1228, %v1227
    %1245 = vmatprep.subr.bf16.mxu0 0
    %1246 = vmatpush1.bf16.msra.mxu0 %v1229
    %1247 = vmatprep.subr.bf16.mxu0 0
    %1248 = vmatpush1.bf16.msra.mxu0 %v1230
    %1249 = vmatprep.subr.bf16.mxu0 0
    %1250 = vmatpush1.bf16.msra.mxu0 %v1231
    %1251 = vmatprep.subr.bf16.mxu0 0
    %1252 = vmatpush1.bf16.msra.mxu0 %v1232
    %1253 = vmatprep.subr.bf16.mxu0 0
    %1254 = vmatpush1.bf16.msra.mxu0 %v1233
    %1255 = vmatprep.subr.bf16.mxu0 0
    %1256 = vmatpush1.bf16.msra.mxu0 %v1234
    %1257 = vmatprep.subr.bf16.mxu0 0
    %1258 = vmatpush1.bf16.msra.mxu0 %v1235
    %1259 = vmatprep.subr.bf16.mxu0 0
    %1260 = vmatpush1.bf16.msra.mxu0 %v1236
    %1261 = vmatprep.subr.bf16.mxu0 0
    %1262 = vmatpush1.bf16.msra.mxu0 0
    %1263 = vmatprep.subr.bf16.mxu0 0
    %1264 = vmatpush1.bf16.msra.mxu0 0
    %1265 = vmatprep.subr.bf16.mxu0 0
    %1266 = vmatpush1.bf16.msra.mxu0 0
    %1267 = vmatprep.subr.bf16.mxu0 0
    %1268 = vmatpush1.bf16.msra.mxu0 0
    %1269 = vmatprep.subr.bf16.mxu0 0
    %1270 = vmatpush1.bf16.msra.mxu0 0
    %1271 = vmatprep.subr.bf16.mxu0 0
    %1272 = vmatpush1.bf16.msra.mxu0 0
    %1273 = vmatprep.subr.bf16.mxu0 0
    %1274 = vmatpush1.bf16.msra.mxu0 0
    %1275 = vmatprep.subr.bf16.mxu0 0
    %1276 = vmatpush1.bf16.msra.mxu0 0
    %1277 = vmatprep.mubr.bf16.mxu0 0
    %1278 = vmatmul.mubr.bf16.gmra.mrb[0].mxu0 %v1164
    %v1279 = vpop.f32.mrb[0].mxu0
    %v1280 = vadd.f32 %v1195, %v1279
    %v1281 = vpop.f32.mrb[0].mxu0
    %v1282 = vpop.f32.mrb[0].mxu0
    %v1283 = vadd.f32 %v1195, %v1282
    %v1284 = vpop.f32.mrb[0].mxu0
    %1285 = vmatprep.mubr.bf16.mxu0 0
    %1286 = vmatmul.mubr.bf16.gmra.mrb[0].mxu0 %v1165
    %v1287 = vpop.f32.mrb[0].mxu0
    %v1288 = vadd.f32 %v1195, %v1287
    %v1289 = vpop.f32.mrb[0].mxu0
    %v1290 = vpop.f32.mrb[0].mxu0
    %v1291 = vadd.f32 %v1195, %v1290
    %v1292 = vpop.f32.mrb[0].mxu0
    %1293 = vmatprep.mubr.bf16.mxu0 0
    %1294 = vmatmul.mubr.bf16.gmra.mrb[0].mxu0 %v1166
    %v1295 = vpop.f32.mrb[0].mxu0
    %v1296 = vadd.f32 %v1195, %v1295
    %v1297 = vpop.f32.mrb[0].mxu0
    %v1298 = vpop.f32.mrb[0].mxu0
    %v1299 = vadd.f32 %v1195, %v1298
    %v1300 = vpop.f32.mrb[0].mxu0
    %1301 = vmatprep.mubr.bf16.mxu0 0
    %1302 = vmatmul.mubr.bf16.gmra.mrb[0].mxu0 %v1167
    %v1303 = vpop.f32.mrb[0].mxu0
    %v1304 = vadd.f32 %v1195, %v1303
    %v1305 = vpop.f32.mrb[0].mxu0
    %v1306 = vpop.f32.mrb[0].mxu0
    %v1307 = vadd.f32 %v1195, %v1306
    %v1308 = vpop.f32.mrb[0].mxu0
    %1309 = vmatprep.mubr.bf16.mxu0 0
    %1310 = vmatmul.mubr.bf16.gmra.mrb[0].mxu0 %v1168
    %v1311 = vpop.f32.mrb[0].mxu0
    %v1312 = vadd.f32 %v1195, %v1311
    %v1313 = vpop.f32.mrb[0].mxu0
    %v1314 = vpop.f32.mrb[0].mxu0
    %v1315 = vadd.f32 %v1195, %v1314
    %v1316 = vpop.f32.mrb[0].mxu0
    %1317 = vmatprep.mubr.bf16.mxu0 0
    %1318 = vmatmul.mubr.bf16.gmra.mrb[0].mxu0 %v1169
    %v1319 = vpop.f32.mrb[0].mxu0
    %v1320 = vadd.f32 %v1195, %v1319
    %v1321 = vpop.f32.mrb[0].mxu0
    %v1322 = vpop.f32.mrb[0].mxu0
    %v1323 = vadd.f32 %v1195, %v1322
    %v1324 = vpop.f32.mrb[0].mxu0
    %1325 = vmatprep.mubr.bf16.mxu0 0
    %1326 = vmatmul.mubr.bf16.gmra.mrb[0].mxu0 %v1170
    %v1327 = vpop.f32.mrb[0].mxu0
    %v1328 = vadd.f32 %v1195, %v1327
    %v1329 = vpop.f32.mrb[0].mxu0
    %v1330 = vpop.f32.mrb[0].mxu0
    %v1331 = vadd.f32 %v1195, %v1330
    %v1332 = vpop.f32.mrb[0].mxu0
    %1333 = vmatprep.mubr.bf16.mxu0 0
    %1334 = vmatmul.mubr.bf16.gmra.mrb[0].mxu0 %v1171
    %v1335 = vpop.f32.mrb[0].mxu0
    %v1336 = vadd.f32 %v1195, %v1335
    %v1337 = vpop.f32.mrb[0].mxu0
    %v1338 = vpop.f32.mrb[0].mxu0
    %v1339 = vadd.f32 %v1195, %v1338
    %v1340 = vpop.f32.mrb[0].mxu0
    %1341 = vmatprep.mubr.bf16.mxu0 0
    %1342 = vmatmul.mubr.bf16.gmra.mrb[0].mxu0 %v1172
    %v1343 = vpop.f32.mrb[0].mxu0
    %v1344 = vadd.f32 %v1195, %v1343
    %v1345 = vpop.f32.mrb[0].mxu0
    %v1346 = vpop.f32.mrb[0].mxu0
    %v1347 = vadd.f32 %v1195, %v1346
    %v1348 = vpop.f32.mrb[0].mxu0
    %1349 = vmatprep.mubr.bf16.mxu0 0
    %1350 = vmatmul.mubr.bf16.gmra.mrb[0].mxu0 %v1173
    %v1351 = vpop.f32.mrb[0].mxu0
    %v1352 = vadd.f32 %v1195, %v1351
    %v1353 = vpop.f32.mrb[0].mxu0
    %v1354 = vpop.f32.mrb[0].mxu0
    %v1355 = vadd.f32 %v1195, %v1354
    %v1356 = vpop.f32.mrb[0].mxu0
    %1357 = vdwg.mxu0
    %v1358 = vmax.f32 %v1280, 0.0
    %v1359 = vmax.f32 %v1283, 0.0
    %v1360 = vmax.f32 %v1288, 0.0
    %v1361 = vmax.f32 %v1291, 0.0
    %v1362 = vmax.f32 %v1296, 0.0
    %v1363 = vmax.f32 %v1299, 0.0
    %v1364 = vmax.f32 %v1304, 0.0
    %v1365 = vmax.f32 %v1307, 0.0
    %v1366 = vmax.f32 %v1312, 0.0
    %v1367 = vmax.f32 %v1315, 0.0
    %v1368 = vmax.f32 %v1320, 0.0
    %v1369 = vmax.f32 %v1323, 0.0
    %v1370 = vmax.f32 %v1328, 0.0
    %v1371 = vmax.f32 %v1331, 0.0
    %v1372 = vmax.f32 %v1336, 0.0
    %v1373 = vmax.f32 %v1339, 0.0
    %v1374 = vmax.f32 %v1344, 0.0
    %v1375 = vmax.f32 %v1347, 0.0
    %v1376 = vmax.f32 %v1352, 0.0
    %v1377 = vmax.f32 %v1355, 0.0
    %v1378 = vpack.c.bf16 %v1359, %v1358
    %v1379 = vpack.c.bf16 %v1361, %v1360
    %v1380 = vpack.c.bf16 %v1363, %v1362
    %v1381 = vpack.c.bf16 %v1365, %v1364
    %v1382 = vpack.c.bf16 %v1367, %v1366
    %v1383 = vpack.c.bf16 %v1369, %v1368
    %v1384 = vpack.c.bf16 %v1371, %v1370
    %v1385 = vpack.c.bf16 %v1373, %v1372
    %v1386 = vpack.c.bf16 %v1375, %v1374
    %v1387 = vpack.c.bf16 %v1377, %v1376
    %v1388 = vld [vmem:[%s5] sm:$0xf]
    %v1389 = vld [vmem:[%s5 + $0x4] sm:$0xf]
    %v1390 = vld [vmem:[%s5 + $0x8] sm:$0xf]
    %v1391 = vld [vmem:[%s5 + $0xc] sm:$0xf]
    %v1392 = vld [vmem:[%s5 + $0x10] sm:$0xf]
    %v1393 = vld [vmem:[%s5 + $0x14] sm:$0xf]
    %v1394 = vld [vmem:[%s5 + $0x18] sm:$0xf]
    %v1395 = vld [vmem:[%s5 + $0x1c] sm:$0xf]
    %v1396 = vld [vmem:[%s5 + $0x20] sm:$0xf]
    %v1397 = vld [vmem:[%s5 + $0x24] sm:$0xf]
    %v1398 = vld [vmem:[%s5 + $0x28] sm:$0xf]
    %v1399 = vld [vmem:[%s5 + $0x2c] sm:$0xf]
    %v1400 = vld [vmem:[%s5 + $0x30] sm:$0xf]
    %v1401 = vld [vmem:[%s5 + $0x34] sm:$0xf]
    %v1402 = vld [vmem:[%s5 + $0x38] sm:$0xf]
    %v1403 = vld [vmem:[%s5 + $0x3c] sm:$0xf]
    %v1404 = vld [vmem:[%s6] sm:$0x1]
    %v1406 = vlaneseq
    %v1407 = vshrl.u32 %v1406, 7
    %v1408 = vsub.s32 0, %v1407
    %v1409 = vrot.slane %v1404, %v1408
    %v1427 = vunpack.c.l.b16 %v1388
    %v1428 = vunpack.c.l.b16 %v1389
    %v1429 = vunpack.c.l.b16 %v1390
    %v1430 = vunpack.c.l.b16 %v1391
    %v1431 = vunpack.c.l.b16 %v1392
    %v1432 = vunpack.c.l.b16 %v1393
    %v1433 = vunpack.c.l.b16 %v1394
    %v1434 = vunpack.c.l.b16 %v1395
    %v1435 = vunpack.c.l.b16 %v1396
    %v1436 = vunpack.c.l.b16 %v1397
    %v1437 = vunpack.c.l.b16 %v1398
    %v1438 = vunpack.c.l.b16 %v1399
    %v1439 = vunpack.c.l.b16 %v1400
    %v1440 = vunpack.c.l.b16 %v1401
    %v1441 = vunpack.c.l.b16 %v1402
    %v1442 = vunpack.c.l.b16 %v1403
    %v1443 = vpack.c.b16 %v1428, %v1427
    %v1444 = vpack.c.b16 %v1430, %v1429
    %v1445 = vpack.c.b16 %v1432, %v1431
    %v1446 = vpack.c.b16 %v1434, %v1433
    %v1447 = vpack.c.b16 %v1436, %v1435
    %v1448 = vpack.c.b16 %v1438, %v1437
    %v1449 = vpack.c.b16 %v1440, %v1439
    %v1450 = vpack.c.b16 %v1442, %v1441
    %1459 = vmatprep.subr.bf16.mxu0 0
    %1460 = vmatpush1.bf16.msra.mxu0 %v1443
    %1461 = vmatprep.subr.bf16.mxu0 0
    %1462 = vmatpush1.bf16.msra.mxu0 %v1444
    %1463 = vmatprep.subr.bf16.mxu0 0
    %1464 = vmatpush1.bf16.msra.mxu0 %v1445
    %1465 = vmatprep.subr.bf16.mxu0 0
    %1466 = vmatpush1.bf16.msra.mxu0 %v1446
    %1467 = vmatprep.subr.bf16.mxu0 0
    %1468 = vmatpush1.bf16.msra.mxu0 %v1447
    %1469 = vmatprep.subr.bf16.mxu0 0
    %1470 = vmatpush1.bf16.msra.mxu0 %v1448
    %1471 = vmatprep.subr.bf16.mxu0 0
    %1472 = vmatpush1.bf16.msra.mxu0 %v1449
    %1473 = vmatprep.subr.bf16.mxu0 0
    %1474 = vmatpush1.bf16.msra.mxu0 %v1450
    %1475 = vmatprep.subr.bf16.mxu0 0
    %1476 = vmatpush1.bf16.msra.mxu0 0
    %1477 = vmatprep.subr.bf16.mxu0 0
    %1478 = vmatpush1.bf16.msra.mxu0 0
    %1479 = vmatprep.subr.bf16.mxu0 0
    %1480 = vmatpush1.bf16.msra.mxu0 0
    %1481 = vmatprep.subr.bf16.mxu0 0
    %1482 = vmatpush1.bf16.msra.mxu0 0
    %1483 = vmatprep.subr.bf16.mxu0 0
    %1484 = vmatpush1.bf16.msra.mxu0 0
    %1485 = vmatprep.subr.bf16.mxu0 0
    %1486 = vmatpush1.bf16.msra.mxu0 0
    %1487 = vmatprep.subr.bf16.mxu0 0
    %1488 = vmatpush1.bf16.msra.mxu0 0
    %1489 = vmatprep.subr.bf16.mxu0 0
    %1490 = vmatpush1.bf16.msra.mxu0 0
    %1491 = vmatprep.mubr.bf16.mxu0 0
    %1492 = vmatmul.mubr.bf16.gmra.mrb[0].mxu0 %v1378
    %v1493 = vpop.f32.mrb[0].mxu0
    %v1494 = vadd.f32 %v1409, %v1493
    %v1495 = vpop.f32.mrb[0].mxu0
    %v1496 = vpop.f32.mrb[0].mxu0
    %v1497 = vadd.f32 %v1409, %v1496
    %v1498 = vpop.f32.mrb[0].mxu0
    %1499 = vmatprep.mubr.bf16.mxu0 0
    %1500 = vmatmul.mubr.bf16.gmra.mrb[0].mxu0 %v1379
    %v1501 = vpop.f32.mrb[0].mxu0
    %v1502 = vadd.f32 %v1409, %v1501
    %v1503 = vpop.f32.mrb[0].mxu0
    %v1504 = vpop.f32.mrb[0].mxu0
    %v1505 = vadd.f32 %v1409, %v1504
    %v1506 = vpop.f32.mrb[0].mxu0
    %1507 = vmatprep.mubr.bf16.mxu0 0
    %1508 = vmatmul.mubr.bf16.gmra.mrb[0].mxu0 %v1380
    %v1509 = vpop.f32.mrb[0].mxu0
    %v1510 = vadd.f32 %v1409, %v1509
    %v1511 = vpop.f32.mrb[0].mxu0
    %v1512 = vpop.f32.mrb[0].mxu0
    %v1513 = vadd.f32 %v1409, %v1512
    %v1514 = vpop.f32.mrb[0].mxu0
    %1515 = vmatprep.mubr.bf16.mxu0 0
    %1516 = vmatmul.mubr.bf16.gmra.mrb[0].mxu0 %v1381
    %v1517 = vpop.f32.mrb[0].mxu0
    %v1518 = vadd.f32 %v1409, %v1517
    %v1519 = vpop.f32.mrb[0].mxu0
    %v1520 = vpop.f32.mrb[0].mxu0
    %v1521 = vadd.f32 %v1409, %v1520
    %v1522 = vpop.f32.mrb[0].mxu0
    %1523 = vmatprep.mubr.bf16.mxu0 0
    %1524 = vmatmul.mubr.bf16.gmra.mrb[0].mxu0 %v1382
    %v1525 = vpop.f32.mrb[0].mxu0
    %v1526 = vadd.f32 %v1409, %v1525
    %v1527 = vpop.f32.mrb[0].mxu0
    %v1528 = vpop.f32.mrb[0].mxu0
    %v1529 = vadd.f32 %v1409, %v1528
    %v1530 = vpop.f32.mrb[0].mxu0
    %1531 = vmatprep.mubr.bf16.mxu0 0
    %1532 = vmatmul.mubr.bf16.gmra.mrb[0].mxu0 %v1383
    %v1533 = vpop.f32.mrb[0].mxu0
    %v1534 = vadd.f32 %v1409, %v1533
    %v1535 = vpop.f32.mrb[0].mxu0
    %v1536 = vpop.f32.mrb[0].mxu0
    %v1537 = vadd.f32 %v1409, %v1536
    %v1538 = vpop.f32.mrb[0].mxu0
    %1539 = vmatprep.mubr.bf16.mxu0 0
    %1540 = vmatmul.mubr.bf16.gmra.mrb[0].mxu0 %v1384
    %v1541 = vpop.f32.mrb[0].mxu0
    %v1542 = vadd.f32 %v1409, %v1541
    %v1543 = vpop.f32.mrb[0].mxu0
    %v1544 = vpop.f32.mrb[0].mxu0
    %v1545 = vadd.f32 %v1409, %v1544
    %v1546 = vpop.f32.mrb[0].mxu0
    %1547 = vmatprep.mubr.bf16.mxu0 0
    %1548 = vmatmul.mubr.bf16.gmra.mrb[0].mxu0 %v1385
    %v1549 = vpop.f32.mrb[0].mxu0
    %v1550 = vadd.f32 %v1409, %v1549
    %v1551 = vpop.f32.mrb[0].mxu0
    %v1552 = vpop.f32.mrb[0].mxu0
    %v1553 = vadd.f32 %v1409, %v1552
    %v1554 = vpop.f32.mrb[0].mxu0
    %1555 = vmatprep.mubr.bf16.mxu0 0
    %1556 = vmatmul.mubr.bf16.gmra.mrb[0].mxu0 %v1386
    %v1557 = vpop.f32.mrb[0].mxu0
    %v1558 = vadd.f32 %v1409, %v1557
    %v1559 = vpop.f32.mrb[0].mxu0
    %v1560 = vpop.f32.mrb[0].mxu0
    %v1561 = vadd.f32 %v1409, %v1560
    %v1562 = vpop.f32.mrb[0].mxu0
    %1563 = vmatprep.mubr.bf16.mxu0 0
    %1564 = vmatmul.mubr.bf16.gmra.mrb[0].mxu0 %v1387
    %v1565 = vpop.f32.mrb[0].mxu0
    %v1566 = vadd.f32 %v1409, %v1565
    %v1567 = vpop.f32.mrb[0].mxu0
    %v1568 = vpop.f32.mrb[0].mxu0
    %v1569 = vadd.f32 %v1409, %v1568
    %v1570 = vpop.f32.mrb[0].mxu0
    %1571 = vdwg.mxu0
    %v1572 = vmax.f32 %v1494, 0.0
    %v1573 = vmax.f32 %v1497, 0.0
    %v1574 = vmax.f32 %v1502, 0.0
    %v1575 = vmax.f32 %v1505, 0.0
    %v1576 = vmax.f32 %v1510, 0.0
    %v1577 = vmax.f32 %v1513, 0.0
    %v1578 = vmax.f32 %v1518, 0.0
    %v1579 = vmax.f32 %v1521, 0.0
    %v1580 = vmax.f32 %v1526, 0.0
    %v1581 = vmax.f32 %v1529, 0.0
    %v1582 = vmax.f32 %v1534, 0.0
    %v1583 = vmax.f32 %v1537, 0.0
    %v1584 = vmax.f32 %v1542, 0.0
    %v1585 = vmax.f32 %v1545, 0.0
    %v1586 = vmax.f32 %v1550, 0.0
    %v1587 = vmax.f32 %v1553, 0.0
    %v1588 = vmax.f32 %v1558, 0.0
    %v1589 = vmax.f32 %v1561, 0.0
    %v1590 = vmax.f32 %v1566, 0.0
    %v1591 = vmax.f32 %v1569, 0.0
    %v1592 = vpack.c.bf16 %v1573, %v1572
    %v1593 = vpack.c.bf16 %v1575, %v1574
    %v1594 = vpack.c.bf16 %v1577, %v1576
    %v1595 = vpack.c.bf16 %v1579, %v1578
    %v1596 = vpack.c.bf16 %v1581, %v1580
    %v1597 = vpack.c.bf16 %v1583, %v1582
    %v1598 = vpack.c.bf16 %v1585, %v1584
    %v1599 = vpack.c.bf16 %v1587, %v1586
    %v1600 = vpack.c.bf16 %v1589, %v1588
    %v1601 = vpack.c.bf16 %v1591, %v1590
    %v1602 = vld [vmem:[%s7] sm:$0xf]
    %v1603 = vld [vmem:[%s7 + $0x4] sm:$0xf]
    %v1604 = vld [vmem:[%s7 + $0x8] sm:$0xf]
    %v1605 = vld [vmem:[%s7 + $0xc] sm:$0xf]
    %v1606 = vld [vmem:[%s7 + $0x10] sm:$0xf]
    %v1607 = vld [vmem:[%s7 + $0x14] sm:$0xf]
    %v1608 = vld [vmem:[%s7 + $0x18] sm:$0xf]
    %v1609 = vld [vmem:[%s7 + $0x1c] sm:$0xf]
    %v1610 = vld [vmem:[%s7 + $0x20] sm:$0xf]
    %v1611 = vld [vmem:[%s7 + $0x24] sm:$0xf]
    %v1612 = vld [vmem:[%s7 + $0x28] sm:$0xf]
    %v1613 = vld [vmem:[%s7 + $0x2c] sm:$0xf]
    %v1614 = vld [vmem:[%s7 + $0x30] sm:$0xf]
    %v1615 = vld [vmem:[%s7 + $0x34] sm:$0xf]
    %v1616 = vld [vmem:[%s7 + $0x38] sm:$0xf]
    %v1617 = vld [vmem:[%s7 + $0x3c] sm:$0xf]
    %v1618 = vld [vmem:[%s8] sm:$0x1]
    %v1620 = vlaneseq
    %v1621 = vshrl.u32 %v1620, 7
    %v1622 = vsub.s32 0, %v1621
    %v1623 = vrot.slane %v1618, %v1622
    %v1641 = vunpack.c.l.b16 %v1602
    %v1642 = vunpack.c.l.b16 %v1603
    %v1643 = vunpack.c.l.b16 %v1604
    %v1644 = vunpack.c.l.b16 %v1605
    %v1645 = vunpack.c.l.b16 %v1606
    %v1646 = vunpack.c.l.b16 %v1607
    %v1647 = vunpack.c.l.b16 %v1608
    %v1648 = vunpack.c.l.b16 %v1609
    %v1649 = vunpack.c.l.b16 %v1610
    %v1650 = vunpack.c.l.b16 %v1611
    %v1651 = vunpack.c.l.b16 %v1612
    %v1652 = vunpack.c.l.b16 %v1613
    %v1653 = vunpack.c.l.b16 %v1614
    %v1654 = vunpack.c.l.b16 %v1615
    %v1655 = vunpack.c.l.b16 %v1616
    %v1656 = vunpack.c.l.b16 %v1617
    %v1657 = vpack.c.b16 %v1642, %v1641
    %v1658 = vpack.c.b16 %v1644, %v1643
    %v1659 = vpack.c.b16 %v1646, %v1645
    %v1660 = vpack.c.b16 %v1648, %v1647
    %v1661 = vpack.c.b16 %v1650, %v1649
    %v1662 = vpack.c.b16 %v1652, %v1651
    %v1663 = vpack.c.b16 %v1654, %v1653
    %v1664 = vpack.c.b16 %v1656, %v1655
    %1673 = vmatprep.subr.bf16.mxu0 0
    %1674 = vmatpush1.bf16.msra.mxu0 %v1657
    %1675 = vmatprep.subr.bf16.mxu0 0
    %1676 = vmatpush1.bf16.msra.mxu0 %v1658
    %1677 = vmatprep.subr.bf16.mxu0 0
    %1678 = vmatpush1.bf16.msra.mxu0 %v1659
    %1679 = vmatprep.subr.bf16.mxu0 0
    %1680 = vmatpush1.bf16.msra.mxu0 %v1660
    %1681 = vmatprep.subr.bf16.mxu0 0
    %1682 = vmatpush1.bf16.msra.mxu0 %v1661
    %1683 = vmatprep.subr.bf16.mxu0 0
    %1684 = vmatpush1.bf16.msra.mxu0 %v1662
    %1685 = vmatprep.subr.bf16.mxu0 0
    %1686 = vmatpush1.bf16.msra.mxu0 %v1663
    %1687 = vmatprep.subr.bf16.mxu0 0
    %1688 = vmatpush1.bf16.msra.mxu0 %v1664
    %1689 = vmatprep.subr.bf16.mxu0 0
    %1690 = vmatpush1.bf16.msra.mxu0 0
    %1691 = vmatprep.subr.bf16.mxu0 0
    %1692 = vmatpush1.bf16.msra.mxu0 0
    %1693 = vmatprep.subr.bf16.mxu0 0
    %1694 = vmatpush1.bf16.msra.mxu0 0
    %1695 = vmatprep.subr.bf16.mxu0 0
    %1696 = vmatpush1.bf16.msra.mxu0 0
    %1697 = vmatprep.subr.bf16.mxu0 0
    %1698 = vmatpush1.bf16.msra.mxu0 0
    %1699 = vmatprep.subr.bf16.mxu0 0
    %1700 = vmatpush1.bf16.msra.mxu0 0
    %1701 = vmatprep.subr.bf16.mxu0 0
    %1702 = vmatpush1.bf16.msra.mxu0 0
    %1703 = vmatprep.subr.bf16.mxu0 0
    %1704 = vmatpush1.bf16.msra.mxu0 0
    %1705 = vmatprep.mubr.bf16.mxu0 0
    %1706 = vmatmul.mubr.bf16.gmra.mrb[0].mxu0 %v1592
    %v1707 = vpop.f32.mrb[0].mxu0
    %v1708 = vadd.f32 %v1623, %v1707
    %v1709 = vpop.f32.mrb[0].mxu0
    %v1710 = vpop.f32.mrb[0].mxu0
    %v1711 = vadd.f32 %v1623, %v1710
    %v1712 = vpop.f32.mrb[0].mxu0
    %1713 = vmatprep.mubr.bf16.mxu0 0
    %1714 = vmatmul.mubr.bf16.gmra.mrb[0].mxu0 %v1593
    %v1715 = vpop.f32.mrb[0].mxu0
    %v1716 = vadd.f32 %v1623, %v1715
    %v1717 = vpop.f32.mrb[0].mxu0
    %v1718 = vpop.f32.mrb[0].mxu0
    %v1719 = vadd.f32 %v1623, %v1718
    %v1720 = vpop.f32.mrb[0].mxu0
    %1721 = vmatprep.mubr.bf16.mxu0 0
    %1722 = vmatmul.mubr.bf16.gmra.mrb[0].mxu0 %v1594
    %v1723 = vpop.f32.mrb[0].mxu0
    %v1724 = vadd.f32 %v1623, %v1723
    %v1725 = vpop.f32.mrb[0].mxu0
    %v1726 = vpop.f32.mrb[0].mxu0
    %v1727 = vadd.f32 %v1623, %v1726
    %v1728 = vpop.f32.mrb[0].mxu0
    %1729 = vmatprep.mubr.bf16.mxu0 0
    %1730 = vmatmul.mubr.bf16.gmra.mrb[0].mxu0 %v1595
    %v1731 = vpop.f32.mrb[0].mxu0
    %v1732 = vadd.f32 %v1623, %v1731
    %v1733 = vpop.f32.mrb[0].mxu0
    %v1734 = vpop.f32.mrb[0].mxu0
    %v1735 = vadd.f32 %v1623, %v1734
    %v1736 = vpop.f32.mrb[0].mxu0
    %1737 = vmatprep.mubr.bf16.mxu0 0
    %1738 = vmatmul.mubr.bf16.gmra.mrb[0].mxu0 %v1596
    %v1739 = vpop.f32.mrb[0].mxu0
    %v1740 = vadd.f32 %v1623, %v1739
    %v1741 = vpop.f32.mrb[0].mxu0
    %v1742 = vpop.f32.mrb[0].mxu0
    %v1743 = vadd.f32 %v1623, %v1742
    %v1744 = vpop.f32.mrb[0].mxu0
    %1745 = vmatprep.mubr.bf16.mxu0 0
    %1746 = vmatmul.mubr.bf16.gmra.mrb[0].mxu0 %v1597
    %v1747 = vpop.f32.mrb[0].mxu0
    %v1748 = vadd.f32 %v1623, %v1747
    %v1749 = vpop.f32.mrb[0].mxu0
    %v1750 = vpop.f32.mrb[0].mxu0
    %v1751 = vadd.f32 %v1623, %v1750
    %v1752 = vpop.f32.mrb[0].mxu0
    %1753 = vmatprep.mubr.bf16.mxu0 0
    %1754 = vmatmul.mubr.bf16.gmra.mrb[0].mxu0 %v1598
    %v1755 = vpop.f32.mrb[0].mxu0
    %v1756 = vadd.f32 %v1623, %v1755
    %v1757 = vpop.f32.mrb[0].mxu0
    %v1758 = vpop.f32.mrb[0].mxu0
    %v1759 = vadd.f32 %v1623, %v1758
    %v1760 = vpop.f32.mrb[0].mxu0
    %1761 = vmatprep.mubr.bf16.mxu0 0
    %1762 = vmatmul.mubr.bf16.gmra.mrb[0].mxu0 %v1599
    %v1763 = vpop.f32.mrb[0].mxu0
    %v1764 = vadd.f32 %v1623, %v1763
    %v1765 = vpop.f32.mrb[0].mxu0
    %v1766 = vpop.f32.mrb[0].mxu0
    %v1767 = vadd.f32 %v1623, %v1766
    %v1768 = vpop.f32.mrb[0].mxu0
    %1769 = vmatprep.mubr.bf16.mxu0 0
    %1770 = vmatmul.mubr.bf16.gmra.mrb[0].mxu0 %v1600
    %v1771 = vpop.f32.mrb[0].mxu0
    %v1772 = vadd.f32 %v1623, %v1771
    %v1773 = vpop.f32.mrb[0].mxu0
    %v1774 = vpop.f32.mrb[0].mxu0
    %v1775 = vadd.f32 %v1623, %v1774
    %v1776 = vpop.f32.mrb[0].mxu0
    %1777 = vmatprep.mubr.bf16.mxu0 0
    %1778 = vmatmul.mubr.bf16.gmra.mrb[0].mxu0 %v1601
    %v1779 = vpop.f32.mrb[0].mxu0
    %v1780 = vadd.f32 %v1623, %v1779
    %v1781 = vpop.f32.mrb[0].mxu0
    %v1782 = vpop.f32.mrb[0].mxu0
    %v1783 = vadd.f32 %v1623, %v1782
    %v1784 = vpop.f32.mrb[0].mxu0
    %1785 = vdwg.mxu0
    %v1786 = vmax.f32 %v1708, 0.0
    %v1787 = vmax.f32 %v1711, 0.0
    %v1788 = vmax.f32 %v1716, 0.0
    %v1789 = vmax.f32 %v1719, 0.0
    %v1790 = vmax.f32 %v1724, 0.0
    %v1791 = vmax.f32 %v1727, 0.0
    %v1792 = vmax.f32 %v1732, 0.0
    %v1793 = vmax.f32 %v1735, 0.0
    %v1794 = vmax.f32 %v1740, 0.0
    %v1795 = vmax.f32 %v1743, 0.0
    %v1796 = vmax.f32 %v1748, 0.0
    %v1797 = vmax.f32 %v1751, 0.0
    %v1798 = vmax.f32 %v1756, 0.0
    %v1799 = vmax.f32 %v1759, 0.0
    %v1800 = vmax.f32 %v1764, 0.0
    %v1801 = vmax.f32 %v1767, 0.0
    %v1802 = vmax.f32 %v1772, 0.0
    %v1803 = vmax.f32 %v1775, 0.0
    %v1804 = vmax.f32 %v1780, 0.0
    %v1805 = vmax.f32 %v1783, 0.0
    %v1806 = vpack.c.bf16 %v1787, %v1786
    %v1807 = vpack.c.bf16 %v1789, %v1788
    %v1808 = vpack.c.bf16 %v1791, %v1790
    %v1809 = vpack.c.bf16 %v1793, %v1792
    %v1810 = vpack.c.bf16 %v1795, %v1794
    %v1811 = vpack.c.bf16 %v1797, %v1796
    %v1812 = vpack.c.bf16 %v1799, %v1798
    %v1813 = vpack.c.bf16 %v1801, %v1800
    %v1814 = vpack.c.bf16 %v1803, %v1802
    %v1815 = vpack.c.bf16 %v1805, %v1804
    %v1816 = vld [vmem:[%s9] sm:$0xf]
    %v1817 = vld [vmem:[%s9 + $0x4] sm:$0xf]
    %v1818 = vld [vmem:[%s9 + $0x8] sm:$0xf]
    %v1819 = vld [vmem:[%s9 + $0xc] sm:$0xf]
    %v1820 = vld [vmem:[%s9 + $0x10] sm:$0xf]
    %v1821 = vld [vmem:[%s9 + $0x14] sm:$0xf]
    %v1822 = vld [vmem:[%s9 + $0x18] sm:$0xf]
    %v1823 = vld [vmem:[%s9 + $0x1c] sm:$0xf]
    %v1824 = vld [vmem:[%s9 + $0x20] sm:$0xf]
    %v1825 = vld [vmem:[%s9 + $0x24] sm:$0xf]
    %v1826 = vld [vmem:[%s9 + $0x28] sm:$0xf]
    %v1827 = vld [vmem:[%s9 + $0x2c] sm:$0xf]
    %v1828 = vld [vmem:[%s9 + $0x30] sm:$0xf]
    %v1829 = vld [vmem:[%s9 + $0x34] sm:$0xf]
    %v1830 = vld [vmem:[%s9 + $0x38] sm:$0xf]
    %v1831 = vld [vmem:[%s9 + $0x3c] sm:$0xf]
    %v1832 = vld [vmem:[%s10] sm:$0x1]
    %v1834 = vlaneseq
    %v1835 = vshrl.u32 %v1834, 7
    %v1836 = vsub.s32 0, %v1835
    %v1837 = vrot.slane %v1832, %v1836
    %v1855 = vunpack.c.l.b16 %v1816
    %v1856 = vunpack.c.l.b16 %v1817
    %v1857 = vunpack.c.l.b16 %v1818
    %v1858 = vunpack.c.l.b16 %v1819
    %v1859 = vunpack.c.l.b16 %v1820
    %v1860 = vunpack.c.l.b16 %v1821
    %v1861 = vunpack.c.l.b16 %v1822
    %v1862 = vunpack.c.l.b16 %v1823
    %v1863 = vunpack.c.l.b16 %v1824
    %v1864 = vunpack.c.l.b16 %v1825
    %v1865 = vunpack.c.l.b16 %v1826
    %v1866 = vunpack.c.l.b16 %v1827
    %v1867 = vunpack.c.l.b16 %v1828
    %v1868 = vunpack.c.l.b16 %v1829
    %v1869 = vunpack.c.l.b16 %v1830
    %v1870 = vunpack.c.l.b16 %v1831
    %v1871 = vpack.c.b16 %v1856, %v1855
    %v1872 = vpack.c.b16 %v1858, %v1857
    %v1873 = vpack.c.b16 %v1860, %v1859
    %v1874 = vpack.c.b16 %v1862, %v1861
    %v1875 = vpack.c.b16 %v1864, %v1863
    %v1876 = vpack.c.b16 %v1866, %v1865
    %v1877 = vpack.c.b16 %v1868, %v1867
    %v1878 = vpack.c.b16 %v1870, %v1869
    %1887 = vmatprep.subr.bf16.mxu0 0
    %1888 = vmatpush1.bf16.msra.mxu0 %v1871
    %1889 = vmatprep.subr.bf16.mxu0 0
    %1890 = vmatpush1.bf16.msra.mxu0 %v1872
    %1891 = vmatprep.subr.bf16.mxu0 0
    %1892 = vmatpush1.bf16.msra.mxu0 %v1873
    %1893 = vmatprep.subr.bf16.mxu0 0
    %1894 = vmatpush1.bf16.msra.mxu0 %v1874
    %1895 = vmatprep.subr.bf16.mxu0 0
    %1896 = vmatpush1.bf16.msra.mxu0 %v1875
    %1897 = vmatprep.subr.bf16.mxu0 0
    %1898 = vmatpush1.bf16.msra.mxu0 %v1876
    %1899 = vmatprep.subr.bf16.mxu0 0
    %1900 = vmatpush1.bf16.msra.mxu0 %v1877
    %1901 = vmatprep.subr.bf16.mxu0 0
    %1902 = vmatpush1.bf16.msra.mxu0 %v1878
    %1903 = vmatprep.subr.bf16.mxu0 0
    %1904 = vmatpush1.bf16.msra.mxu0 0
    %1905 = vmatprep.subr.bf16.mxu0 0
    %1906 = vmatpush1.bf16.msra.mxu0 0
    %1907 = vmatprep.subr.bf16.mxu0 0
    %1908 = vmatpush1.bf16.msra.mxu0 0
    %1909 = vmatprep.subr.bf16.mxu0 0
    %1910 = vmatpush1.bf16.msra.mxu0 0
    %1911 = vmatprep.subr.bf16.mxu0 0
    %1912 = vmatpush1.bf16.msra.mxu0 0
    %1913 = vmatprep.subr.bf16.mxu0 0
    %1914 = vmatpush1.bf16.msra.mxu0 0
    %1915 = vmatprep.subr.bf16.mxu0 0
    %1916 = vmatpush1.bf16.msra.mxu0 0
    %1917 = vmatprep.subr.bf16.mxu0 0
    %1918 = vmatpush1.bf16.msra.mxu0 0
    %1919 = vmatprep.mubr.bf16.mxu0 0
    %1920 = vmatmul.mubr.bf16.gmra.mrb[0].mxu0 %v1806
    %v1921 = vpop.f32.mrb[0].mxu0
    %v1922 = vadd.f32 %v1837, %v1921
    %v1923 = vpop.f32.mrb[0].mxu0
    %v1924 = vpop.f32.mrb[0].mxu0
    %v1925 = vadd.f32 %v1837, %v1924
    %v1926 = vpop.f32.mrb[0].mxu0
    %1927 = vmatprep.mubr.bf16.mxu0 0
    %1928 = vmatmul.mubr.bf16.gmra.mrb[0].mxu0 %v1807
    %v1929 = vpop.f32.mrb[0].mxu0
    %v1930 = vadd.f32 %v1837, %v1929
    %v1931 = vpop.f32.mrb[0].mxu0
    %v1932 = vpop.f32.mrb[0].mxu0
    %v1933 = vadd.f32 %v1837, %v1932
    %v1934 = vpop.f32.mrb[0].mxu0
    %1935 = vmatprep.mubr.bf16.mxu0 0
    %1936 = vmatmul.mubr.bf16.gmra.mrb[0].mxu0 %v1808
    %v1937 = vpop.f32.mrb[0].mxu0
    %v1938 = vadd.f32 %v1837, %v1937
    %v1939 = vpop.f32.mrb[0].mxu0
    %v1940 = vpop.f32.mrb[0].mxu0
    %v1941 = vadd.f32 %v1837, %v1940
    %v1942 = vpop.f32.mrb[0].mxu0
    %1943 = vmatprep.mubr.bf16.mxu0 0
    %1944 = vmatmul.mubr.bf16.gmra.mrb[0].mxu0 %v1809
    %v1945 = vpop.f32.mrb[0].mxu0
    %v1946 = vadd.f32 %v1837, %v1945
    %v1947 = vpop.f32.mrb[0].mxu0
    %v1948 = vpop.f32.mrb[0].mxu0
    %v1949 = vadd.f32 %v1837, %v1948
    %v1950 = vpop.f32.mrb[0].mxu0
    %1951 = vmatprep.mubr.bf16.mxu0 0
    %1952 = vmatmul.mubr.bf16.gmra.mrb[0].mxu0 %v1810
    %v1953 = vpop.f32.mrb[0].mxu0
    %v1954 = vadd.f32 %v1837, %v1953
    %v1955 = vpop.f32.mrb[0].mxu0
    %v1956 = vpop.f32.mrb[0].mxu0
    %v1957 = vadd.f32 %v1837, %v1956
    %v1958 = vpop.f32.mrb[0].mxu0
    %1959 = vmatprep.mubr.bf16.mxu0 0
    %1960 = vmatmul.mubr.bf16.gmra.mrb[0].mxu0 %v1811
    %v1961 = vpop.f32.mrb[0].mxu0
    %v1962 = vadd.f32 %v1837, %v1961
    %v1963 = vpop.f32.mrb[0].mxu0
    %v1964 = vpop.f32.mrb[0].mxu0
    %v1965 = vadd.f32 %v1837, %v1964
    %v1966 = vpop.f32.mrb[0].mxu0
    %1967 = vmatprep.mubr.bf16.mxu0 0
    %1968 = vmatmul.mubr.bf16.gmra.mrb[0].mxu0 %v1812
    %v1969 = vpop.f32.mrb[0].mxu0
    %v1970 = vadd.f32 %v1837, %v1969
    %v1971 = vpop.f32.mrb[0].mxu0
    %v1972 = vpop.f32.mrb[0].mxu0
    %v1973 = vadd.f32 %v1837, %v1972
    %v1974 = vpop.f32.mrb[0].mxu0
    %1975 = vmatprep.mubr.bf16.mxu0 0
    %1976 = vmatmul.mubr.bf16.gmra.mrb[0].mxu0 %v1813
    %v1977 = vpop.f32.mrb[0].mxu0
    %v1978 = vadd.f32 %v1837, %v1977
    %v1979 = vpop.f32.mrb[0].mxu0
    %v1980 = vpop.f32.mrb[0].mxu0
    %v1981 = vadd.f32 %v1837, %v1980
    %v1982 = vpop.f32.mrb[0].mxu0
    %1983 = vmatprep.mubr.bf16.mxu0 0
    %1984 = vmatmul.mubr.bf16.gmra.mrb[0].mxu0 %v1814
    %v1985 = vpop.f32.mrb[0].mxu0
    %v1986 = vadd.f32 %v1837, %v1985
    %v1987 = vpop.f32.mrb[0].mxu0
    %v1988 = vpop.f32.mrb[0].mxu0
    %v1989 = vadd.f32 %v1837, %v1988
    %v1990 = vpop.f32.mrb[0].mxu0
    %1991 = vmatprep.mubr.bf16.mxu0 0
    %1992 = vmatmul.mubr.bf16.gmra.mrb[0].mxu0 %v1815
    %v1993 = vpop.f32.mrb[0].mxu0
    %v1994 = vadd.f32 %v1837, %v1993
    %v1995 = vpop.f32.mrb[0].mxu0
    %v1996 = vpop.f32.mrb[0].mxu0
    %v1997 = vadd.f32 %v1837, %v1996
    %v1998 = vpop.f32.mrb[0].mxu0
    %1999 = vdwg.mxu0
    %v2000 = vmax.f32 %v1922, 0.0
    %v2001 = vmax.f32 %v1925, 0.0
    %v2002 = vmax.f32 %v1930, 0.0
    %v2003 = vmax.f32 %v1933, 0.0
    %v2004 = vmax.f32 %v1938, 0.0
    %v2005 = vmax.f32 %v1941, 0.0
    %v2006 = vmax.f32 %v1946, 0.0
    %v2007 = vmax.f32 %v1949, 0.0
    %v2008 = vmax.f32 %v1954, 0.0
    %v2009 = vmax.f32 %v1957, 0.0
    %v2010 = vmax.f32 %v1962, 0.0
    %v2011 = vmax.f32 %v1965, 0.0
    %v2012 = vmax.f32 %v1970, 0.0
    %v2013 = vmax.f32 %v1973, 0.0
    %v2014 = vmax.f32 %v1978, 0.0
    %v2015 = vmax.f32 %v1981, 0.0
    %v2016 = vmax.f32 %v1986, 0.0
    %v2017 = vmax.f32 %v1989, 0.0
    %v2018 = vmax.f32 %v1994, 0.0
    %v2019 = vmax.f32 %v1997, 0.0
    %v2020 = vpack.c.bf16 %v2001, %v2000
    %v2021 = vpack.c.bf16 %v2003, %v2002
    %v2022 = vpack.c.bf16 %v2005, %v2004
    %v2023 = vpack.c.bf16 %v2007, %v2006
    %v2024 = vpack.c.bf16 %v2009, %v2008
    %v2025 = vpack.c.bf16 %v2011, %v2010
    %v2026 = vpack.c.bf16 %v2013, %v2012
    %v2027 = vpack.c.bf16 %v2015, %v2014
    %v2028 = vpack.c.bf16 %v2017, %v2016
    %v2029 = vpack.c.bf16 %v2019, %v2018
    %v2030 = vld [vmem:[%s11] sm:$0xf]
    %v2031 = vld [vmem:[%s11 + $0x4] sm:$0xf]
    %v2032 = vld [vmem:[%s11 + $0x8] sm:$0xf]
    %v2033 = vld [vmem:[%s11 + $0xc] sm:$0xf]
    %v2034 = vld [vmem:[%s11 + $0x10] sm:$0xf]
    %v2035 = vld [vmem:[%s11 + $0x14] sm:$0xf]
    %v2036 = vld [vmem:[%s11 + $0x18] sm:$0xf]
    %v2037 = vld [vmem:[%s11 + $0x1c] sm:$0xf]
    %v2038 = vld [vmem:[%s11 + $0x20] sm:$0xf]
    %v2039 = vld [vmem:[%s11 + $0x24] sm:$0xf]
    %v2040 = vld [vmem:[%s11 + $0x28] sm:$0xf]
    %v2041 = vld [vmem:[%s11 + $0x2c] sm:$0xf]
    %v2042 = vld [vmem:[%s11 + $0x30] sm:$0xf]
    %v2043 = vld [vmem:[%s11 + $0x34] sm:$0xf]
    %v2044 = vld [vmem:[%s11 + $0x38] sm:$0xf]
    %v2045 = vld [vmem:[%s11 + $0x3c] sm:$0xf]
    %v2046 = vld [vmem:[%s12] sm:$0x1]
    %v2048 = vlaneseq
    %v2049 = vshrl.u32 %v2048, 7
    %v2050 = vsub.s32 0, %v2049
    %v2051 = vrot.slane %v2046, %v2050
    %v2069 = vunpack.c.l.b16 %v2030
    %v2070 = vunpack.c.l.b16 %v2031
    %v2071 = vunpack.c.l.b16 %v2032
    %v2072 = vunpack.c.l.b16 %v2033
    %v2073 = vunpack.c.l.b16 %v2034
    %v2074 = vunpack.c.l.b16 %v2035
    %v2075 = vunpack.c.l.b16 %v2036
    %v2076 = vunpack.c.l.b16 %v2037
    %v2077 = vunpack.c.l.b16 %v2038
    %v2078 = vunpack.c.l.b16 %v2039
    %v2079 = vunpack.c.l.b16 %v2040
    %v2080 = vunpack.c.l.b16 %v2041
    %v2081 = vunpack.c.l.b16 %v2042
    %v2082 = vunpack.c.l.b16 %v2043
    %v2083 = vunpack.c.l.b16 %v2044
    %v2084 = vunpack.c.l.b16 %v2045
    %v2085 = vpack.c.b16 %v2070, %v2069
    %v2086 = vpack.c.b16 %v2072, %v2071
    %v2087 = vpack.c.b16 %v2074, %v2073
    %v2088 = vpack.c.b16 %v2076, %v2075
    %v2089 = vpack.c.b16 %v2078, %v2077
    %v2090 = vpack.c.b16 %v2080, %v2079
    %v2091 = vpack.c.b16 %v2082, %v2081
    %v2092 = vpack.c.b16 %v2084, %v2083
    %2101 = vmatprep.subr.bf16.mxu0 0
    %2102 = vmatpush1.bf16.msra.mxu0 %v2085
    %2103 = vmatprep.subr.bf16.mxu0 0
    %2104 = vmatpush1.bf16.msra.mxu0 %v2086
    %2105 = vmatprep.subr.bf16.mxu0 0
    %2106 = vmatpush1.bf16.msra.mxu0 %v2087
    %2107 = vmatprep.subr.bf16.mxu0 0
    %2108 = vmatpush1.bf16.msra.mxu0 %v2088
    %2109 = vmatprep.subr.bf16.mxu0 0
    %2110 = vmatpush1.bf16.msra.mxu0 %v2089
    %2111 = vmatprep.subr.bf16.mxu0 0
    %2112 = vmatpush1.bf16.msra.mxu0 %v2090
    %2113 = vmatprep.subr.bf16.mxu0 0
    %2114 = vmatpush1.bf16.msra.mxu0 %v2091
    %2115 = vmatprep.subr.bf16.mxu0 0
    %2116 = vmatpush1.bf16.msra.mxu0 %v2092
    %2117 = vmatprep.subr.bf16.mxu0 0
    %2118 = vmatpush1.bf16.msra.mxu0 0
    %2119 = vmatprep.subr.bf16.mxu0 0
    %2120 = vmatpush1.bf16.msra.mxu0 0
    %2121 = vmatprep.subr.bf16.mxu0 0
    %2122 = vmatpush1.bf16.msra.mxu0 0
    %2123 = vmatprep.subr.bf16.mxu0 0
    %2124 = vmatpush1.bf16.msra.mxu0 0
    %2125 = vmatprep.subr.bf16.mxu0 0
    %2126 = vmatpush1.bf16.msra.mxu0 0
    %2127 = vmatprep.subr.bf16.mxu0 0
    %2128 = vmatpush1.bf16.msra.mxu0 0
    %2129 = vmatprep.subr.bf16.mxu0 0
    %2130 = vmatpush1.bf16.msra.mxu0 0
    %2131 = vmatprep.subr.bf16.mxu0 0
    %2132 = vmatpush1.bf16.msra.mxu0 0
    %2133 = vmatprep.mubr.bf16.mxu0 0
    %2134 = vmatmul.mubr.bf16.gmra.mrb[0].mxu0 %v2020
    %v2135 = vpop.f32.mrb[0].mxu0
    %v2136 = vadd.f32 %v2051, %v2135
    %v2137 = vpop.f32.mrb[0].mxu0
    %v2138 = vpop.f32.mrb[0].mxu0
    %v2139 = vadd.f32 %v2051, %v2138
    %v2140 = vpop.f32.mrb[0].mxu0
    %2141 = vmatprep.mubr.bf16.mxu0 0
    %2142 = vmatmul.mubr.bf16.gmra.mrb[0].mxu0 %v2021
    %v2143 = vpop.f32.mrb[0].mxu0
    %v2144 = vadd.f32 %v2051, %v2143
    %v2145 = vpop.f32.mrb[0].mxu0
    %v2146 = vpop.f32.mrb[0].mxu0
    %v2147 = vadd.f32 %v2051, %v2146
    %v2148 = vpop.f32.mrb[0].mxu0
    %2149 = vmatprep.mubr.bf16.mxu0 0
    %2150 = vmatmul.mubr.bf16.gmra.mrb[0].mxu0 %v2022
    %v2151 = vpop.f32.mrb[0].mxu0
    %v2152 = vadd.f32 %v2051, %v2151
    %v2153 = vpop.f32.mrb[0].mxu0
    %v2154 = vpop.f32.mrb[0].mxu0
    %v2155 = vadd.f32 %v2051, %v2154
    %v2156 = vpop.f32.mrb[0].mxu0
    %2157 = vmatprep.mubr.bf16.mxu0 0
    %2158 = vmatmul.mubr.bf16.gmra.mrb[0].mxu0 %v2023
    %v2159 = vpop.f32.mrb[0].mxu0
    %v2160 = vadd.f32 %v2051, %v2159
    %v2161 = vpop.f32.mrb[0].mxu0
    %v2162 = vpop.f32.mrb[0].mxu0
    %v2163 = vadd.f32 %v2051, %v2162
    %v2164 = vpop.f32.mrb[0].mxu0
    %2165 = vmatprep.mubr.bf16.mxu0 0
    %2166 = vmatmul.mubr.bf16.gmra.mrb[0].mxu0 %v2024
    %v2167 = vpop.f32.mrb[0].mxu0
    %v2168 = vadd.f32 %v2051, %v2167
    %v2169 = vpop.f32.mrb[0].mxu0
    %v2170 = vpop.f32.mrb[0].mxu0
    %v2171 = vadd.f32 %v2051, %v2170
    %v2172 = vpop.f32.mrb[0].mxu0
    %2173 = vmatprep.mubr.bf16.mxu0 0
    %2174 = vmatmul.mubr.bf16.gmra.mrb[0].mxu0 %v2025
    %v2175 = vpop.f32.mrb[0].mxu0
    %v2176 = vadd.f32 %v2051, %v2175
    %v2177 = vpop.f32.mrb[0].mxu0
    %v2178 = vpop.f32.mrb[0].mxu0
    %v2179 = vadd.f32 %v2051, %v2178
    %v2180 = vpop.f32.mrb[0].mxu0
    %2181 = vmatprep.mubr.bf16.mxu0 0
    %2182 = vmatmul.mubr.bf16.gmra.mrb[0].mxu0 %v2026
    %v2183 = vpop.f32.mrb[0].mxu0
    %v2184 = vadd.f32 %v2051, %v2183
    %v2185 = vpop.f32.mrb[0].mxu0
    %v2186 = vpop.f32.mrb[0].mxu0
    %v2187 = vadd.f32 %v2051, %v2186
    %v2188 = vpop.f32.mrb[0].mxu0
    %2189 = vmatprep.mubr.bf16.mxu0 0
    %2190 = vmatmul.mubr.bf16.gmra.mrb[0].mxu0 %v2027
    %v2191 = vpop.f32.mrb[0].mxu0
    %v2192 = vadd.f32 %v2051, %v2191
    %v2193 = vpop.f32.mrb[0].mxu0
    %v2194 = vpop.f32.mrb[0].mxu0
    %v2195 = vadd.f32 %v2051, %v2194
    %v2196 = vpop.f32.mrb[0].mxu0
    %2197 = vmatprep.mubr.bf16.mxu0 0
    %2198 = vmatmul.mubr.bf16.gmra.mrb[0].mxu0 %v2028
    %v2199 = vpop.f32.mrb[0].mxu0
    %v2200 = vadd.f32 %v2051, %v2199
    %v2201 = vpop.f32.mrb[0].mxu0
    %v2202 = vpop.f32.mrb[0].mxu0
    %v2203 = vadd.f32 %v2051, %v2202
    %v2204 = vpop.f32.mrb[0].mxu0
    %2205 = vmatprep.mubr.bf16.mxu0 0
    %2206 = vmatmul.mubr.bf16.gmra.mrb[0].mxu0 %v2029
    %v2207 = vpop.f32.mrb[0].mxu0
    %v2208 = vadd.f32 %v2051, %v2207
    %v2209 = vpop.f32.mrb[0].mxu0
    %v2210 = vpop.f32.mrb[0].mxu0
    %v2211 = vadd.f32 %v2051, %v2210
    %v2212 = vpop.f32.mrb[0].mxu0
    %2213 = vdwg.mxu0
    %v2214 = vmax.f32 %v2136, 0.0
    %v2215 = vmax.f32 %v2139, 0.0
    %v2216 = vmax.f32 %v2144, 0.0
    %v2217 = vmax.f32 %v2147, 0.0
    %v2218 = vmax.f32 %v2152, 0.0
    %v2219 = vmax.f32 %v2155, 0.0
    %v2220 = vmax.f32 %v2160, 0.0
    %v2221 = vmax.f32 %v2163, 0.0
    %v2222 = vmax.f32 %v2168, 0.0
    %v2223 = vmax.f32 %v2171, 0.0
    %v2224 = vmax.f32 %v2176, 0.0
    %v2225 = vmax.f32 %v2179, 0.0
    %v2226 = vmax.f32 %v2184, 0.0
    %v2227 = vmax.f32 %v2187, 0.0
    %v2228 = vmax.f32 %v2192, 0.0
    %v2229 = vmax.f32 %v2195, 0.0
    %v2230 = vmax.f32 %v2200, 0.0
    %v2231 = vmax.f32 %v2203, 0.0
    %v2232 = vmax.f32 %v2208, 0.0
    %v2233 = vmax.f32 %v2211, 0.0
    %v2234 = vpack.c.bf16 %v2215, %v2214
    %v2235 = vpack.c.bf16 %v2217, %v2216
    %v2236 = vpack.c.bf16 %v2219, %v2218
    %v2237 = vpack.c.bf16 %v2221, %v2220
    %v2238 = vpack.c.bf16 %v2223, %v2222
    %v2239 = vpack.c.bf16 %v2225, %v2224
    %v2240 = vpack.c.bf16 %v2227, %v2226
    %v2241 = vpack.c.bf16 %v2229, %v2228
    %v2242 = vpack.c.bf16 %v2231, %v2230
    %v2243 = vpack.c.bf16 %v2233, %v2232
    %v2244 = vld [vmem:[%s13] sm:$0xff]
    %v2245 = vld [vmem:[%s13 + $0x8] sm:$0xff]
    %v2246 = vld [vmem:[%s13 + $0x10] sm:$0xff]
    %v2247 = vld [vmem:[%s13 + $0x18] sm:$0xf]
    %v2248 = vld [vmem:[%s13 + $0x1c] sm:$0xff]
    %v2249 = vld [vmem:[%s13 + $0x24] sm:$0xff]
    %v2250 = vld [vmem:[%s13 + $0x2c] sm:$0xff]
    %v2251 = vld [vmem:[%s13 + $0x34] sm:$0xf]
    %v2252 = vld [vmem:[%s13 + $0x38] sm:$0xff]
    %v2253 = vld [vmem:[%s13 + $0x40] sm:$0xff]
    %v2254 = vld [vmem:[%s13 + $0x48] sm:$0xff]
    %v2255 = vld [vmem:[%s13 + $0x50] sm:$0xf]
    %v2256 = vld [vmem:[%s13 + $0x54] sm:$0xff]
    %v2257 = vld [vmem:[%s13 + $0x5c] sm:$0xff]
    %v2258 = vld [vmem:[%s13 + $0x64] sm:$0xff]
    %v2259 = vld [vmem:[%s13 + $0x6c] sm:$0xf]
    %v2260 = vld [vmem:[%s13 + $0x70] sm:$0xff]
    %v2261 = vld [vmem:[%s13 + $0x78] sm:$0xff]
    %v2262 = vld [vmem:[%s13 + $0x80] sm:$0xff]
    %v2263 = vld [vmem:[%s13 + $0x88] sm:$0xf]
    %v2264 = vld [vmem:[%s13 + $0x8c] sm:$0xff]
    %v2265 = vld [vmem:[%s13 + $0x94] sm:$0xff]
    %v2266 = vld [vmem:[%s13 + $0x9c] sm:$0xff]
    %v2267 = vld [vmem:[%s13 + $0xa4] sm:$0xf]
    %v2268 = vld [vmem:[%s13 + $0xa8] sm:$0xff]
    %v2269 = vld [vmem:[%s13 + $0xb0] sm:$0xff]
    %v2270 = vld [vmem:[%s13 + $0xb8] sm:$0xff]
    %v2271 = vld [vmem:[%s13 + $0xc0] sm:$0xf]
    %v2272 = vld [vmem:[%s13 + $0xc4] sm:$0xff]
    %v2273 = vld [vmem:[%s13 + $0xcc] sm:$0xff]
    %v2274 = vld [vmem:[%s13 + $0xd4] sm:$0xff]
    %v2275 = vld [vmem:[%s13 + $0xdc] sm:$0xf]
    %v2276 = vld [vmem:[%s13 + $0xe0] sm:$0xff]
    %v2277 = vld [vmem:[%s13 + $0xe8] sm:$0xff]
    %v2278 = vld [vmem:[%s13 + $0xf0] sm:$0xff]
    %v2279 = vld [vmem:[%s13 + $0xf8] sm:$0xf]
    %v2280 = vld [vmem:[%s13 + $0xfc] sm:$0xff]
    %v2281 = vld [vmem:[%s13 + $0x104] sm:$0xff]
    %v2282 = vld [vmem:[%s13 + $0x10c] sm:$0xff]
    %v2283 = vld [vmem:[%s13 + $0x114] sm:$0xf]
    %v2284 = vld [vmem:[%s13 + $0x118] sm:$0xff]
    %v2285 = vld [vmem:[%s13 + $0x120] sm:$0xff]
    %v2286 = vld [vmem:[%s13 + $0x128] sm:$0xff]
    %v2287 = vld [vmem:[%s13 + $0x130] sm:$0xf]
    %v2288 = vld [vmem:[%s13 + $0x134] sm:$0xff]
    %v2289 = vld [vmem:[%s13 + $0x13c] sm:$0xff]
    %v2290 = vld [vmem:[%s13 + $0x144] sm:$0xff]
    %v2291 = vld [vmem:[%s13 + $0x14c] sm:$0xf]
    %v2292 = vld [vmem:[%s13 + $0x150] sm:$0xff]
    %v2293 = vld [vmem:[%s13 + $0x158] sm:$0xff]
    %v2294 = vld [vmem:[%s13 + $0x160] sm:$0xff]
    %v2295 = vld [vmem:[%s13 + $0x168] sm:$0xf]
    %v2296 = vld [vmem:[%s13 + $0x16c] sm:$0xff]
    %v2297 = vld [vmem:[%s13 + $0x174] sm:$0xff]
    %v2298 = vld [vmem:[%s13 + $0x17c] sm:$0xff]
    %v2299 = vld [vmem:[%s13 + $0x184] sm:$0xf]
    %v2300 = vld [vmem:[%s13 + $0x188] sm:$0xff]
    %v2301 = vld [vmem:[%s13 + $0x190] sm:$0xff]
    %v2302 = vld [vmem:[%s13 + $0x198] sm:$0xff]
    %v2303 = vld [vmem:[%s13 + $0x1a0] sm:$0xf]
    %v2304 = vld [vmem:[%s13 + $0x1a4] sm:$0xff]
    %v2305 = vld [vmem:[%s13 + $0x1ac] sm:$0xff]
    %v2306 = vld [vmem:[%s13 + $0x1b4] sm:$0xff]
    %v2307 = vld [vmem:[%s13 + $0x1bc] sm:$0xf]
    %v2308 = vld [vmem:[%s14] sm:$0x7f]
    %v2310 = vlaneseq
    %v2311 = vshrl.u32 %v2310, 7
    %v2312 = vsub.s32 0, %v2311
    %v2313 = vrot.slane %v2308, %v2312
    %v2314 = vlaneseq
    %v2315 = vshrl.u32 %v2314, 7
    %v2316 = vsub.s32 1, %v2315
    %v2317 = vrot.slane %v2308, %v2316
    %v2318 = vlaneseq
    %v2319 = vshrl.u32 %v2318, 7
    %v2320 = vsub.s32 2, %v2319
    %v2321 = vrot.slane %v2308, %v2320
    %v2322 = vlaneseq
    %v2323 = vshrl.u32 %v2322, 7
    %v2324 = vsub.s32 3, %v2323
    %v2325 = vrot.slane %v2308, %v2324
    %v2326 = vlaneseq
    %v2327 = vshrl.u32 %v2326, 7
    %v2328 = vsub.s32 4, %v2327
    %v2329 = vrot.slane %v2308, %v2328
    %v2330 = vlaneseq
    %v2331 = vshrl.u32 %v2330, 7
    %v2332 = vsub.s32 5, %v2331
    %v2333 = vrot.slane %v2308, %v2332
    %v2334 = vlaneseq
    %v2335 = vshrl.u32 %v2334, 7
    %v2336 = vsub.s32 6, %v2335
    %v2337 = vrot.slane %v2308, %v2336
    %v2409 = vunpack.c.l.b16 %v2244
    %v2410 = vunpack.c.h.b16 %v2244
    %v2411 = vunpack.c.l.b16 %v2245
    %v2412 = vunpack.c.h.b16 %v2245
    %v2413 = vunpack.c.l.b16 %v2246
    %v2414 = vunpack.c.h.b16 %v2246
    %v2415 = vunpack.c.l.b16 %v2247
    %v2416 = vunpack.c.l.b16 %v2248
    %v2417 = vunpack.c.h.b16 %v2248
    %v2418 = vunpack.c.l.b16 %v2249
    %v2419 = vunpack.c.h.b16 %v2249
    %v2420 = vunpack.c.l.b16 %v2250
    %v2421 = vunpack.c.h.b16 %v2250
    %v2422 = vunpack.c.l.b16 %v2251
    %v2423 = vunpack.c.l.b16 %v2252
    %v2424 = vunpack.c.h.b16 %v2252
    %v2425 = vunpack.c.l.b16 %v2253
    %v2426 = vunpack.c.h.b16 %v2253
    %v2427 = vunpack.c.l.b16 %v2254
    %v2428 = vunpack.c.h.b16 %v2254
    %v2429 = vunpack.c.l.b16 %v2255
    %v2430 = vunpack.c.l.b16 %v2256
    %v2431 = vunpack.c.h.b16 %v2256
    %v2432 = vunpack.c.l.b16 %v2257
    %v2433 = vunpack.c.h.b16 %v2257
    %v2434 = vunpack.c.l.b16 %v2258
    %v2435 = vunpack.c.h.b16 %v2258
    %v2436 = vunpack.c.l.b16 %v2259
    %v2437 = vunpack.c.l.b16 %v2260
    %v2438 = vunpack.c.h.b16 %v2260
    %v2439 = vunpack.c.l.b16 %v2261
    %v2440 = vunpack.c.h.b16 %v2261
    %v2441 = vunpack.c.l.b16 %v2262
    %v2442 = vunpack.c.h.b16 %v2262
    %v2443 = vunpack.c.l.b16 %v2263
    %v2444 = vunpack.c.l.b16 %v2264
    %v2445 = vunpack.c.h.b16 %v2264
    %v2446 = vunpack.c.l.b16 %v2265
    %v2447 = vunpack.c.h.b16 %v2265
    %v2448 = vunpack.c.l.b16 %v2266
    %v2449 = vunpack.c.h.b16 %v2266
    %v2450 = vunpack.c.l.b16 %v2267
    %v2451 = vunpack.c.l.b16 %v2268
    %v2452 = vunpack.c.h.b16 %v2268
    %v2453 = vunpack.c.l.b16 %v2269
    %v2454 = vunpack.c.h.b16 %v2269
    %v2455 = vunpack.c.l.b16 %v2270
    %v2456 = vunpack.c.h.b16 %v2270
    %v2457 = vunpack.c.l.b16 %v2271
    %v2458 = vunpack.c.l.b16 %v2272
    %v2459 = vunpack.c.h.b16 %v2272
    %v2460 = vunpack.c.l.b16 %v2273
    %v2461 = vunpack.c.h.b16 %v2273
    %v2462 = vunpack.c.l.b16 %v2274
    %v2463 = vunpack.c.h.b16 %v2274
    %v2464 = vunpack.c.l.b16 %v2275
    %v2465 = vunpack.c.l.b16 %v2276
    %v2466 = vunpack.c.h.b16 %v2276
    %v2467 = vunpack.c.l.b16 %v2277
    %v2468 = vunpack.c.h.b16 %v2277
    %v2469 = vunpack.c.l.b16 %v2278
    %v2470 = vunpack.c.h.b16 %v2278
    %v2471 = vunpack.c.l.b16 %v2279
    %v2472 = vunpack.c.l.b16 %v2280
    %v2473 = vunpack.c.h.b16 %v2280
    %v2474 = vunpack.c.l.b16 %v2281
    %v2475 = vunpack.c.h.b16 %v2281
    %v2476 = vunpack.c.l.b16 %v2282
    %v2477 = vunpack.c.h.b16 %v2282
    %v2478 = vunpack.c.l.b16 %v2283
    %v2479 = vunpack.c.l.b16 %v2284
    %v2480 = vunpack.c.h.b16 %v2284
    %v2481 = vunpack.c.l.b16 %v2285
    %v2482 = vunpack.c.h.b16 %v2285
    %v2483 = vunpack.c.l.b16 %v2286
    %v2484 = vunpack.c.h.b16 %v2286
    %v2485 = vunpack.c.l.b16 %v2287
    %v2486 = vunpack.c.l.b16 %v2288
    %v2487 = vunpack.c.h.b16 %v2288
    %v2488 = vunpack.c.l.b16 %v2289
    %v2489 = vunpack.c.h.b16 %v2289
    %v2490 = vunpack.c.l.b16 %v2290
    %v2491 = vunpack.c.h.b16 %v2290
    %v2492 = vunpack.c.l.b16 %v2291
    %v2493 = vunpack.c.l.b16 %v2292
    %v2494 = vunpack.c.h.b16 %v2292
    %v2495 = vunpack.c.l.b16 %v2293
    %v2496 = vunpack.c.h.b16 %v2293
    %v2497 = vunpack.c.l.b16 %v2294
    %v2498 = vunpack.c.h.b16 %v2294
    %v2499 = vunpack.c.l.b16 %v2295
    %v2500 = vunpack.c.l.b16 %v2296
    %v2501 = vunpack.c.h.b16 %v2296
    %v2502 = vunpack.c.l.b16 %v2297
    %v2503 = vunpack.c.h.b16 %v2297
    %v2504 = vunpack.c.l.b16 %v2298
    %v2505 = vunpack.c.h.b16 %v2298
    %v2506 = vunpack.c.l.b16 %v2299
    %v2507 = vunpack.c.l.b16 %v2300
    %v2508 = vunpack.c.h.b16 %v2300
    %v2509 = vunpack.c.l.b16 %v2301
    %v2510 = vunpack.c.h.b16 %v2301
    %v2511 = vunpack.c.l.b16 %v2302
    %v2512 = vunpack.c.h.b16 %v2302
    %v2513 = vunpack.c.l.b16 %v2303
    %v2514 = vunpack.c.l.b16 %v2304
    %v2515 = vunpack.c.h.b16 %v2304
    %v2516 = vunpack.c.l.b16 %v2305
    %v2517 = vunpack.c.h.b16 %v2305
    %v2518 = vunpack.c.l.b16 %v2306
    %v2519 = vunpack.c.h.b16 %v2306
    %v2520 = vunpack.c.l.b16 %v2307
    %v2521 = vpack.c.b16 %v2416, %v2409
    %v2522 = vpack.c.b16 %v2417, %v2410
    %v2523 = vpack.c.b16 %v2418, %v2411
    %v2524 = vpack.c.b16 %v2419, %v2412
    %v2525 = vpack.c.b16 %v2420, %v2413
    %v2526 = vpack.c.b16 %v2421, %v2414
    %v2527 = vpack.c.b16 %v2422, %v2415
    %v2528 = vpack.c.b16 %v2430, %v2423
    %v2529 = vpack.c.b16 %v2431, %v2424
    %v2530 = vpack.c.b16 %v2432, %v2425
    %v2531 = vpack.c.b16 %v2433, %v2426
    %v2532 = vpack.c.b16 %v2434, %v2427
    %v2533 = vpack.c.b16 %v2435, %v2428
    %v2534 = vpack.c.b16 %v2436, %v2429
    %v2535 = vpack.c.b16 %v2444, %v2437
    %v2536 = vpack.c.b16 %v2445, %v2438
    %v2537 = vpack.c.b16 %v2446, %v2439
    %v2538 = vpack.c.b16 %v2447, %v2440
    %v2539 = vpack.c.b16 %v2448, %v2441
    %v2540 = vpack.c.b16 %v2449, %v2442
    %v2541 = vpack.c.b16 %v2450, %v2443
    %v2542 = vpack.c.b16 %v2458, %v2451
    %v2543 = vpack.c.b16 %v2459, %v2452
    %v2544 = vpack.c.b16 %v2460, %v2453
    %v2545 = vpack.c.b16 %v2461, %v2454
    %v2546 = vpack.c.b16 %v2462, %v2455
    %v2547 = vpack.c.b16 %v2463, %v2456
    %v2548 = vpack.c.b16 %v2464, %v2457
    %v2549 = vpack.c.b16 %v2472, %v2465
    %v2550 = vpack.c.b16 %v2473, %v2466
    %v2551 = vpack.c.b16 %v2474, %v2467
    %v2552 = vpack.c.b16 %v2475, %v2468
    %v2553 = vpack.c.b16 %v2476, %v2469
    %v2554 = vpack.c.b16 %v2477, %v2470
    %v2555 = vpack.c.b16 %v2478, %v2471
    %v2556 = vpack.c.b16 %v2486, %v2479
    %v2557 = vpack.c.b16 %v2487, %v2480
    %v2558 = vpack.c.b16 %v2488, %v2481
    %v2559 = vpack.c.b16 %v2489, %v2482
    %v2560 = vpack.c.b16 %v2490, %v2483
    %v2561 = vpack.c.b16 %v2491, %v2484
    %v2562 = vpack.c.b16 %v2492, %v2485
    %v2563 = vpack.c.b16 %v2500, %v2493
    %v2564 = vpack.c.b16 %v2501, %v2494
    %v2565 = vpack.c.b16 %v2502, %v2495
    %v2566 = vpack.c.b16 %v2503, %v2496
    %v2567 = vpack.c.b16 %v2504, %v2497
    %v2568 = vpack.c.b16 %v2505, %v2498
    %v2569 = vpack.c.b16 %v2506, %v2499
    %v2570 = vpack.c.b16 %v2514, %v2507
    %v2571 = vpack.c.b16 %v2515, %v2508
    %v2572 = vpack.c.b16 %v2516, %v2509
    %v2573 = vpack.c.b16 %v2517, %v2510
    %v2574 = vpack.c.b16 %v2518, %v2511
    %v2575 = vpack.c.b16 %v2519, %v2512
    %v2576 = vpack.c.b16 %v2520, %v2513
    %2633 = vmatprep.subr.bf16.mxu0 %v2522
    %2634 = vmatpush1.bf16.msra.mxu0 %v2521
    %2635 = vmatprep.subr.bf16.mxu0 %v2529
    %2636 = vmatpush1.bf16.msra.mxu0 %v2528
    %2637 = vmatprep.subr.bf16.mxu0 %v2536
    %2638 = vmatpush1.bf16.msra.mxu0 %v2535
    %2639 = vmatprep.subr.bf16.mxu0 %v2543
    %2640 = vmatpush1.bf16.msra.mxu0 %v2542
    %2641 = vmatprep.subr.bf16.mxu0 %v2550
    %2642 = vmatpush1.bf16.msra.mxu0 %v2549
    %2643 = vmatprep.subr.bf16.mxu0 %v2557
    %2644 = vmatpush1.bf16.msra.mxu0 %v2556
    %2645 = vmatprep.subr.bf16.mxu0 %v2564
    %2646 = vmatpush1.bf16.msra.mxu0 %v2563
    %2647 = vmatprep.subr.bf16.mxu0 %v2571
    %2648 = vmatpush1.bf16.msra.mxu0 %v2570
    %2649 = vmatprep.subr.bf16.mxu0 0
    %2650 = vmatpush1.bf16.msra.mxu0 0
    %2651 = vmatprep.subr.bf16.mxu0 0
    %2652 = vmatpush1.bf16.msra.mxu0 0
    %2653 = vmatprep.subr.bf16.mxu0 0
    %2654 = vmatpush1.bf16.msra.mxu0 0
    %2655 = vmatprep.subr.bf16.mxu0 0
    %2656 = vmatpush1.bf16.msra.mxu0 0
    %2657 = vmatprep.subr.bf16.mxu0 0
    %2658 = vmatpush1.bf16.msra.mxu0 0
    %2659 = vmatprep.subr.bf16.mxu0 0
    %2660 = vmatpush1.bf16.msra.mxu0 0
    %2661 = vmatprep.subr.bf16.mxu0 0
    %2662 = vmatpush1.bf16.msra.mxu0 0
    %2663 = vmatprep.subr.bf16.mxu0 0
    %2664 = vmatpush1.bf16.msra.mxu0 0
    %2665 = vmatprep.mubr.bf16.mxu0 0
    %2666 = vmatmul.mubr.bf16.gmra.mrb[0].mxu0 %v2234
    %v2667 = vpop.f32.mrb[0].mxu0
    %v2668 = vadd.f32 %v2313, %v2667
    %v2669 = vpop.f32.mrb[0].mxu0
    %v2670 = vadd.f32 %v2317, %v2669
    %v2671 = vpop.f32.mrb[0].mxu0
    %v2672 = vadd.f32 %v2313, %v2671
    %v2673 = vpop.f32.mrb[0].mxu0
    %v2674 = vadd.f32 %v2317, %v2673
    %2675 = vmatprep.mubr.bf16.mxu0 0
    %2676 = vmatmul.mubr.bf16.gmra.mrb[0].mxu0 %v2235
    %v2677 = vpop.f32.mrb[0].mxu0
    %v2678 = vadd.f32 %v2313, %v2677
    %v2679 = vpop.f32.mrb[0].mxu0
    %v2680 = vadd.f32 %v2317, %v2679
    %v2681 = vpop.f32.mrb[0].mxu0
    %v2682 = vadd.f32 %v2313, %v2681
    %v2683 = vpop.f32.mrb[0].mxu0
    %v2684 = vadd.f32 %v2317, %v2683
    %2685 = vmatprep.mubr.bf16.mxu0 0
    %2686 = vmatmul.mubr.bf16.gmra.mrb[0].mxu0 %v2236
    %v2687 = vpop.f32.mrb[0].mxu0
    %v2688 = vadd.f32 %v2313, %v2687
    %v2689 = vpop.f32.mrb[0].mxu0
    %v2690 = vadd.f32 %v2317, %v2689
    %v2691 = vpop.f32.mrb[0].mxu0
    %v2692 = vadd.f32 %v2313, %v2691
    %v2693 = vpop.f32.mrb[0].mxu0
    %v2694 = vadd.f32 %v2317, %v2693
    %2695 = vmatprep.mubr.bf16.mxu0 0
    %2696 = vmatmul.mubr.bf16.gmra.mrb[0].mxu0 %v2237
    %v2697 = vpop.f32.mrb[0].mxu0
    %v2698 = vadd.f32 %v2313, %v2697
    %v2699 = vpop.f32.mrb[0].mxu0
    %v2700 = vadd.f32 %v2317, %v2699
    %v2701 = vpop.f32.mrb[0].mxu0
    %v2702 = vadd.f32 %v2313, %v2701
    %v2703 = vpop.f32.mrb[0].mxu0
    %v2704 = vadd.f32 %v2317, %v2703
    %2705 = vmatprep.mubr.bf16.mxu0 0
    %2706 = vmatmul.mubr.bf16.gmra.mrb[0].mxu0 %v2238
    %v2707 = vpop.f32.mrb[0].mxu0
    %v2708 = vadd.f32 %v2313, %v2707
    %v2709 = vpop.f32.mrb[0].mxu0
    %v2710 = vadd.f32 %v2317, %v2709
    %v2711 = vpop.f32.mrb[0].mxu0
    %v2712 = vadd.f32 %v2313, %v2711
    %v2713 = vpop.f32.mrb[0].mxu0
    %v2714 = vadd.f32 %v2317, %v2713
    %2715 = vmatprep.mubr.bf16.mxu0 0
    %2716 = vmatmul.mubr.bf16.gmra.mrb[0].mxu0 %v2239
    %v2717 = vpop.f32.mrb[0].mxu0
    %v2718 = vadd.f32 %v2313, %v2717
    %v2719 = vpop.f32.mrb[0].mxu0
    %v2720 = vadd.f32 %v2317, %v2719
    %v2721 = vpop.f32.mrb[0].mxu0
    %v2722 = vadd.f32 %v2313, %v2721
    %v2723 = vpop.f32.mrb[0].mxu0
    %v2724 = vadd.f32 %v2317, %v2723
    %2725 = vmatprep.mubr.bf16.mxu0 0
    %2726 = vmatmul.mubr.bf16.gmra.mrb[0].mxu0 %v2240
    %v2727 = vpop.f32.mrb[0].mxu0
    %v2728 = vadd.f32 %v2313, %v2727
    %v2729 = vpop.f32.mrb[0].mxu0
    %v2730 = vadd.f32 %v2317, %v2729
    %v2731 = vpop.f32.mrb[0].mxu0
    %v2732 = vadd.f32 %v2313, %v2731
    %v2733 = vpop.f32.mrb[0].mxu0
    %v2734 = vadd.f32 %v2317, %v2733
    %2735 = vmatprep.mubr.bf16.mxu0 0
    %2736 = vmatmul.mubr.bf16.gmra.mrb[0].mxu0 %v2241
    %v2737 = vpop.f32.mrb[0].mxu0
    %v2738 = vadd.f32 %v2313, %v2737
    %v2739 = vpop.f32.mrb[0].mxu0
    %v2740 = vadd.f32 %v2317, %v2739
    %v2741 = vpop.f32.mrb[0].mxu0
    %v2742 = vadd.f32 %v2313, %v2741
    %v2743 = vpop.f32.mrb[0].mxu0
    %v2744 = vadd.f32 %v2317, %v2743
    %2745 = vmatprep.mubr.bf16.mxu0 0
    %2746 = vmatmul.mubr.bf16.gmra.mrb[0].mxu0 %v2242
    %v2747 = vpop.f32.mrb[0].mxu0
    %v2748 = vadd.f32 %v2313, %v2747
    %v2749 = vpop.f32.mrb[0].mxu0
    %v2750 = vadd.f32 %v2317, %v2749
    %v2751 = vpop.f32.mrb[0].mxu0
    %v2752 = vadd.f32 %v2313, %v2751
    %v2753 = vpop.f32.mrb[0].mxu0
    %v2754 = vadd.f32 %v2317, %v2753
    %2755 = vmatprep.mubr.bf16.mxu0 0
    %2756 = vmatmul.mubr.bf16.gmra.mrb[0].mxu0 %v2243
    %v2757 = vpop.f32.mrb[0].mxu0
    %v2758 = vadd.f32 %v2313, %v2757
    %v2759 = vpop.f32.mrb[0].mxu0
    %v2760 = vadd.f32 %v2317, %v2759
    %v2761 = vpop.f32.mrb[0].mxu0
    %v2762 = vadd.f32 %v2313, %v2761
    %v2763 = vpop.f32.mrb[0].mxu0
    %v2764 = vadd.f32 %v2317, %v2763
    %2765 = vdwg.mxu0
    %2766 = vmatprep.subr.bf16.mxu0 %v2524
    %2767 = vmatpush1.bf16.msra.mxu0 %v2523
    %2768 = vmatprep.subr.bf16.mxu0 %v2531
    %2769 = vmatpush1.bf16.msra.mxu0 %v2530
    %2770 = vmatprep.subr.bf16.mxu0 %v2538
    %2771 = vmatpush1.bf16.msra.mxu0 %v2537
    %2772 = vmatprep.subr.bf16.mxu0 %v2545
    %2773 = vmatpush1.bf16.msra.mxu0 %v2544
    %2774 = vmatprep.subr.bf16.mxu0 %v2552
    %2775 = vmatpush1.bf16.msra.mxu0 %v2551
    %2776 = vmatprep.subr.bf16.mxu0 %v2559
    %2777 = vmatpush1.bf16.msra.mxu0 %v2558
    %2778 = vmatprep.subr.bf16.mxu0 %v2566
    %2779 = vmatpush1.bf16.msra.mxu0 %v2565
    %2780 = vmatprep.subr.bf16.mxu0 %v2573
    %2781 = vmatpush1.bf16.msra.mxu0 %v2572
    %2782 = vmatprep.subr.bf16.mxu0 0
    %2783 = vmatpush1.bf16.msra.mxu0 0
    %2784 = vmatprep.subr.bf16.mxu0 0
    %2785 = vmatpush1.bf16.msra.mxu0 0
    %2786 = vmatprep.subr.bf16.mxu0 0
    %2787 = vmatpush1.bf16.msra.mxu0 0
    %2788 = vmatprep.subr.bf16.mxu0 0
    %2789 = vmatpush1.bf16.msra.mxu0 0
    %2790 = vmatprep.subr.bf16.mxu0 0
    %2791 = vmatpush1.bf16.msra.mxu0 0
    %2792 = vmatprep.subr.bf16.mxu0 0
    %2793 = vmatpush1.bf16.msra.mxu0 0
    %2794 = vmatprep.subr.bf16.mxu0 0
    %2795 = vmatpush1.bf16.msra.mxu0 0
    %2796 = vmatprep.subr.bf16.mxu0 0
    %2797 = vmatpush1.bf16.msra.mxu0 0
    %2798 = vmatprep.mubr.bf16.mxu0 0
    %2799 = vmatmul.mubr.bf16.gmra.mrb[0].mxu0 %v2234
    %v2800 = vpop.f32.mrb[0].mxu0
    %v2801 = vadd.f32 %v2321, %v2800
    %v2802 = vpop.f32.mrb[0].mxu0
    %v2803 = vadd.f32 %v2325, %v2802
    %v2804 = vpop.f32.mrb[0].mxu0
    %v2805 = vadd.f32 %v2321, %v2804
    %v2806 = vpop.f32.mrb[0].mxu0
    %v2807 = vadd.f32 %v2325, %v2806
    %2808 = vmatprep.mubr.bf16.mxu0 0
    %2809 = vmatmul.mubr.bf16.gmra.mrb[0].mxu0 %v2235
    %v2810 = vpop.f32.mrb[0].mxu0
    %v2811 = vadd.f32 %v2321, %v2810
    %v2812 = vpop.f32.mrb[0].mxu0
    %v2813 = vadd.f32 %v2325, %v2812
    %v2814 = vpop.f32.mrb[0].mxu0
    %v2815 = vadd.f32 %v2321, %v2814
    %v2816 = vpop.f32.mrb[0].mxu0
    %v2817 = vadd.f32 %v2325, %v2816
    %2818 = vmatprep.mubr.bf16.mxu0 0
    %2819 = vmatmul.mubr.bf16.gmra.mrb[0].mxu0 %v2236
    %v2820 = vpop.f32.mrb[0].mxu0
    %v2821 = vadd.f32 %v2321, %v2820
    %v2822 = vpop.f32.mrb[0].mxu0
    %v2823 = vadd.f32 %v2325, %v2822
    %v2824 = vpop.f32.mrb[0].mxu0
    %v2825 = vadd.f32 %v2321, %v2824
    %v2826 = vpop.f32.mrb[0].mxu0
    %v2827 = vadd.f32 %v2325, %v2826
    %2828 = vmatprep.mubr.bf16.mxu0 0
    %2829 = vmatmul.mubr.bf16.gmra.mrb[0].mxu0 %v2237
    %v2830 = vpop.f32.mrb[0].mxu0
    %v2831 = vadd.f32 %v2321, %v2830
    %v2832 = vpop.f32.mrb[0].mxu0
    %v2833 = vadd.f32 %v2325, %v2832
    %v2834 = vpop.f32.mrb[0].mxu0
    %v2835 = vadd.f32 %v2321, %v2834
    %v2836 = vpop.f32.mrb[0].mxu0
    %v2837 = vadd.f32 %v2325, %v2836
    %2838 = vmatprep.mubr.bf16.mxu0 0
    %2839 = vmatmul.mubr.bf16.gmra.mrb[0].mxu0 %v2238
    %v2840 = vpop.f32.mrb[0].mxu0
    %v2841 = vadd.f32 %v2321, %v2840
    %v2842 = vpop.f32.mrb[0].mxu0
    %v2843 = vadd.f32 %v2325, %v2842
    %v2844 = vpop.f32.mrb[0].mxu0
    %v2845 = vadd.f32 %v2321, %v2844
    %v2846 = vpop.f32.mrb[0].mxu0
    %v2847 = vadd.f32 %v2325, %v2846
    %2848 = vmatprep.mubr.bf16.mxu0 0
    %2849 = vmatmul.mubr.bf16.gmra.mrb[0].mxu0 %v2239
    %v2850 = vpop.f32.mrb[0].mxu0
    %v2851 = vadd.f32 %v2321, %v2850
    %v2852 = vpop.f32.mrb[0].mxu0
    %v2853 = vadd.f32 %v2325, %v2852
    %v2854 = vpop.f32.mrb[0].mxu0
    %v2855 = vadd.f32 %v2321, %v2854
    %v2856 = vpop.f32.mrb[0].mxu0
    %v2857 = vadd.f32 %v2325, %v2856
    %2858 = vmatprep.mubr.bf16.mxu0 0
    %2859 = vmatmul.mubr.bf16.gmra.mrb[0].mxu0 %v2240
    %v2860 = vpop.f32.mrb[0].mxu0
    %v2861 = vadd.f32 %v2321, %v2860
    %v2862 = vpop.f32.mrb[0].mxu0
    %v2863 = vadd.f32 %v2325, %v2862
    %v2864 = vpop.f32.mrb[0].mxu0
    %v2865 = vadd.f32 %v2321, %v2864
    %v2866 = vpop.f32.mrb[0].mxu0
    %v2867 = vadd.f32 %v2325, %v2866
    %2868 = vmatprep.mubr.bf16.mxu0 0
    %2869 = vmatmul.mubr.bf16.gmra.mrb[0].mxu0 %v2241
    %v2870 = vpop.f32.mrb[0].mxu0
    %v2871 = vadd.f32 %v2321, %v2870
    %v2872 = vpop.f32.mrb[0].mxu0
    %v2873 = vadd.f32 %v2325, %v2872
    %v2874 = vpop.f32.mrb[0].mxu0
    %v2875 = vadd.f32 %v2321, %v2874
    %v2876 = vpop.f32.mrb[0].mxu0
    %v2877 = vadd.f32 %v2325, %v2876
    %2878 = vmatprep.mubr.bf16.mxu0 0
    %2879 = vmatmul.mubr.bf16.gmra.mrb[0].mxu0 %v2242
    %v2880 = vpop.f32.mrb[0].mxu0
    %v2881 = vadd.f32 %v2321, %v2880
    %v2882 = vpop.f32.mrb[0].mxu0
    %v2883 = vadd.f32 %v2325, %v2882
    %v2884 = vpop.f32.mrb[0].mxu0
    %v2885 = vadd.f32 %v2321, %v2884
    %v2886 = vpop.f32.mrb[0].mxu0
    %v2887 = vadd.f32 %v2325, %v2886
    %2888 = vmatprep.mubr.bf16.mxu0 0
    %2889 = vmatmul.mubr.bf16.gmra.mrb[0].mxu0 %v2243
    %v2890 = vpop.f32.mrb[0].mxu0
    %v2891 = vadd.f32 %v2321, %v2890
    %v2892 = vpop.f32.mrb[0].mxu0
    %v2893 = vadd.f32 %v2325, %v2892
    %v2894 = vpop.f32.mrb[0].mxu0
    %v2895 = vadd.f32 %v2321, %v2894
    %v2896 = vpop.f32.mrb[0].mxu0
    %v2897 = vadd.f32 %v2325, %v2896
    %2898 = vdwg.mxu0
    %2899 = vmatprep.subr.bf16.mxu0 %v2526
    %2900 = vmatpush1.bf16.msra.mxu0 %v2525
    %2901 = vmatprep.subr.bf16.mxu0 %v2533
    %2902 = vmatpush1.bf16.msra.mxu0 %v2532
    %2903 = vmatprep.subr.bf16.mxu0 %v2540
    %2904 = vmatpush1.bf16.msra.mxu0 %v2539
    %2905 = vmatprep.subr.bf16.mxu0 %v2547
    %2906 = vmatpush1.bf16.msra.mxu0 %v2546
    %2907 = vmatprep.subr.bf16.mxu0 %v2554
    %2908 = vmatpush1.bf16.msra.mxu0 %v2553
    %2909 = vmatprep.subr.bf16.mxu0 %v2561
    %2910 = vmatpush1.bf16.msra.mxu0 %v2560
    %2911 = vmatprep.subr.bf16.mxu0 %v2568
    %2912 = vmatpush1.bf16.msra.mxu0 %v2567
    %2913 = vmatprep.subr.bf16.mxu0 %v2575
    %2914 = vmatpush1.bf16.msra.mxu0 %v2574
    %2915 = vmatprep.subr.bf16.mxu0 0
    %2916 = vmatpush1.bf16.msra.mxu0 0
    %2917 = vmatprep.subr.bf16.mxu0 0
    %2918 = vmatpush1.bf16.msra.mxu0 0
    %2919 = vmatprep.subr.bf16.mxu0 0
    %2920 = vmatpush1.bf16.msra.mxu0 0
    %2921 = vmatprep.subr.bf16.mxu0 0
    %2922 = vmatpush1.bf16.msra.mxu0 0
    %2923 = vmatprep.subr.bf16.mxu0 0
    %2924 = vmatpush1.bf16.msra.mxu0 0
    %2925 = vmatprep.subr.bf16.mxu0 0
    %2926 = vmatpush1.bf16.msra.mxu0 0
    %2927 = vmatprep.subr.bf16.mxu0 0
    %2928 = vmatpush1.bf16.msra.mxu0 0
    %2929 = vmatprep.subr.bf16.mxu0 0
    %2930 = vmatpush1.bf16.msra.mxu0 0
    %2931 = vmatprep.mubr.bf16.mxu0 0
    %2932 = vmatmul.mubr.bf16.gmra.mrb[0].mxu0 %v2234
    %v2933 = vpop.f32.mrb[0].mxu0
    %v2934 = vadd.f32 %v2329, %v2933
    %v2935 = vpop.f32.mrb[0].mxu0
    %v2936 = vadd.f32 %v2333, %v2935
    %v2937 = vpop.f32.mrb[0].mxu0
    %v2938 = vadd.f32 %v2329, %v2937
    %v2939 = vpop.f32.mrb[0].mxu0
    %v2940 = vadd.f32 %v2333, %v2939
    %2941 = vmatprep.mubr.bf16.mxu0 0
    %2942 = vmatmul.mubr.bf16.gmra.mrb[0].mxu0 %v2235
    %v2943 = vpop.f32.mrb[0].mxu0
    %v2944 = vadd.f32 %v2329, %v2943
    %v2945 = vpop.f32.mrb[0].mxu0
    %v2946 = vadd.f32 %v2333, %v2945
    %v2947 = vpop.f32.mrb[0].mxu0
    %v2948 = vadd.f32 %v2329, %v2947
    %v2949 = vpop.f32.mrb[0].mxu0
    %v2950 = vadd.f32 %v2333, %v2949
    %2951 = vmatprep.mubr.bf16.mxu0 0
    %2952 = vmatmul.mubr.bf16.gmra.mrb[0].mxu0 %v2236
    %v2953 = vpop.f32.mrb[0].mxu0
    %v2954 = vadd.f32 %v2329, %v2953
    %v2955 = vpop.f32.mrb[0].mxu0
    %v2956 = vadd.f32 %v2333, %v2955
    %v2957 = vpop.f32.mrb[0].mxu0
    %v2958 = vadd.f32 %v2329, %v2957
    %v2959 = vpop.f32.mrb[0].mxu0
    %v2960 = vadd.f32 %v2333, %v2959
    %2961 = vmatprep.mubr.bf16.mxu0 0
    %2962 = vmatmul.mubr.bf16.gmra.mrb[0].mxu0 %v2237
    %v2963 = vpop.f32.mrb[0].mxu0
    %v2964 = vadd.f32 %v2329, %v2963
    %v2965 = vpop.f32.mrb[0].mxu0
    %v2966 = vadd.f32 %v2333, %v2965
    %v2967 = vpop.f32.mrb[0].mxu0
    %v2968 = vadd.f32 %v2329, %v2967
    %v2969 = vpop.f32.mrb[0].mxu0
    %v2970 = vadd.f32 %v2333, %v2969
    %2971 = vmatprep.mubr.bf16.mxu0 0
    %2972 = vmatmul.mubr.bf16.gmra.mrb[0].mxu0 %v2238
    %v2973 = vpop.f32.mrb[0].mxu0
    %v2974 = vadd.f32 %v2329, %v2973
    %v2975 = vpop.f32.mrb[0].mxu0
    %v2976 = vadd.f32 %v2333, %v2975
    %v2977 = vpop.f32.mrb[0].mxu0
    %v2978 = vadd.f32 %v2329, %v2977
    %v2979 = vpop.f32.mrb[0].mxu0
    %v2980 = vadd.f32 %v2333, %v2979
    %2981 = vmatprep.mubr.bf16.mxu0 0
    %2982 = vmatmul.mubr.bf16.gmra.mrb[0].mxu0 %v2239
    %v2983 = vpop.f32.mrb[0].mxu0
    %v2984 = vadd.f32 %v2329, %v2983
    %v2985 = vpop.f32.mrb[0].mxu0
    %v2986 = vadd.f32 %v2333, %v2985
    %v2987 = vpop.f32.mrb[0].mxu0
    %v2988 = vadd.f32 %v2329, %v2987
    %v2989 = vpop.f32.mrb[0].mxu0
    %v2990 = vadd.f32 %v2333, %v2989
    %2991 = vmatprep.mubr.bf16.mxu0 0
    %2992 = vmatmul.mubr.bf16.gmra.mrb[0].mxu0 %v2240
    %v2993 = vpop.f32.mrb[0].mxu0
    %v2994 = vadd.f32 %v2329, %v2993
    %v2995 = vpop.f32.mrb[0].mxu0
    %v2996 = vadd.f32 %v2333, %v2995
    %v2997 = vpop.f32.mrb[0].mxu0
    %v2998 = vadd.f32 %v2329, %v2997
    %v2999 = vpop.f32.mrb[0].mxu0
    %v3000 = vadd.f32 %v2333, %v2999
    %3001 = vmatprep.mubr.bf16.mxu0 0
    %3002 = vmatmul.mubr.bf16.gmra.mrb[0].mxu0 %v2241
    %v3003 = vpop.f32.mrb[0].mxu0
    %v3004 = vadd.f32 %v2329, %v3003
    %v3005 = vpop.f32.mrb[0].mxu0
    %v3006 = vadd.f32 %v2333, %v3005
    %v3007 = vpop.f32.mrb[0].mxu0
    %v3008 = vadd.f32 %v2329, %v3007
    %v3009 = vpop.f32.mrb[0].mxu0
    %v3010 = vadd.f32 %v2333, %v3009
    %3011 = vmatprep.mubr.bf16.mxu0 0
    %3012 = vmatmul.mubr.bf16.gmra.mrb[0].mxu0 %v2242
    %v3013 = vpop.f32.mrb[0].mxu0
    %v3014 = vadd.f32 %v2329, %v3013
    %v3015 = vpop.f32.mrb[0].mxu0
    %v3016 = vadd.f32 %v2333, %v3015
    %v3017 = vpop.f32.mrb[0].mxu0
    %v3018 = vadd.f32 %v2329, %v3017
    %v3019 = vpop.f32.mrb[0].mxu0
    %v3020 = vadd.f32 %v2333, %v3019
    %3021 = vmatprep.mubr.bf16.mxu0 0
    %3022 = vmatmul.mubr.bf16.gmra.mrb[0].mxu0 %v2243
    %v3023 = vpop.f32.mrb[0].mxu0
    %v3024 = vadd.f32 %v2329, %v3023
    %v3025 = vpop.f32.mrb[0].mxu0
    %v3026 = vadd.f32 %v2333, %v3025
    %v3027 = vpop.f32.mrb[0].mxu0
    %v3028 = vadd.f32 %v2329, %v3027
    %v3029 = vpop.f32.mrb[0].mxu0
    %v3030 = vadd.f32 %v2333, %v3029
    %3031 = vdwg.mxu0
    %3032 = vmatprep.subr.bf16.mxu0 0
    %3033 = vmatpush1.bf16.msra.mxu0 %v2527
    %3034 = vmatprep.subr.bf16.mxu0 0
    %3035 = vmatpush1.bf16.msra.mxu0 %v2534
    %3036 = vmatprep.subr.bf16.mxu0 0
    %3037 = vmatpush1.bf16.msra.mxu0 %v2541
    %3038 = vmatprep.subr.bf16.mxu0 0
    %3039 = vmatpush1.bf16.msra.mxu0 %v2548
    %3040 = vmatprep.subr.bf16.mxu0 0
    %3041 = vmatpush1.bf16.msra.mxu0 %v2555
    %3042 = vmatprep.subr.bf16.mxu0 0
    %3043 = vmatpush1.bf16.msra.mxu0 %v2562
    %3044 = vmatprep.subr.bf16.mxu0 0
    %3045 = vmatpush1.bf16.msra.mxu0 %v2569
    %3046 = vmatprep.subr.bf16.mxu0 0
    %3047 = vmatpush1.bf16.msra.mxu0 %v2576
    %3048 = vmatprep.subr.bf16.mxu0 0
    %3049 = vmatpush1.bf16.msra.mxu0 0
    %3050 = vmatprep.subr.bf16.mxu0 0
    %3051 = vmatpush1.bf16.msra.mxu0 0
    %3052 = vmatprep.subr.bf16.mxu0 0
    %3053 = vmatpush1.bf16.msra.mxu0 0
    %3054 = vmatprep.subr.bf16.mxu0 0
    %3055 = vmatpush1.bf16.msra.mxu0 0
    %3056 = vmatprep.subr.bf16.mxu0 0
    %3057 = vmatpush1.bf16.msra.mxu0 0
    %3058 = vmatprep.subr.bf16.mxu0 0
    %3059 = vmatpush1.bf16.msra.mxu0 0
    %3060 = vmatprep.subr.bf16.mxu0 0
    %3061 = vmatpush1.bf16.msra.mxu0 0
    %3062 = vmatprep.subr.bf16.mxu0 0
    %3063 = vmatpush1.bf16.msra.mxu0 0
    %3064 = vmatprep.mubr.bf16.mxu0 0
    %3065 = vmatmul.mubr.bf16.gmra.mrb[0].mxu0 %v2234
    %v3066 = vpop.f32.mrb[0].mxu0
    %v3067 = vadd.f32 %v2337, %v3066
    %v3068 = vpop.f32.mrb[0].mxu0
    %v3069 = vpop.f32.mrb[0].mxu0
    %v3070 = vadd.f32 %v2337, %v3069
    %v3071 = vpop.f32.mrb[0].mxu0
    %3072 = vmatprep.mubr.bf16.mxu0 0
    %3073 = vmatmul.mubr.bf16.gmra.mrb[0].mxu0 %v2235
    %v3074 = vpop.f32.mrb[0].mxu0
    %v3075 = vadd.f32 %v2337, %v3074
    %v3076 = vpop.f32.mrb[0].mxu0
    %v3077 = vpop.f32.mrb[0].mxu0
    %v3078 = vadd.f32 %v2337, %v3077
    %v3079 = vpop.f32.mrb[0].mxu0
    %3080 = vmatprep.mubr.bf16.mxu0 0
    %3081 = vmatmul.mubr.bf16.gmra.mrb[0].mxu0 %v2236
    %v3082 = vpop.f32.mrb[0].mxu0
    %v3083 = vadd.f32 %v2337, %v3082
    %v3084 = vpop.f32.mrb[0].mxu0
    %v3085 = vpop.f32.mrb[0].mxu0
    %v3086 = vadd.f32 %v2337, %v3085
    %v3087 = vpop.f32.mrb[0].mxu0
    %3088 = vmatprep.mubr.bf16.mxu0 0
    %3089 = vmatmul.mubr.bf16.gmra.mrb[0].mxu0 %v2237
    %v3090 = vpop.f32.mrb[0].mxu0
    %v3091 = vadd.f32 %v2337, %v3090
    %v3092 = vpop.f32.mrb[0].mxu0
    %v3093 = vpop.f32.mrb[0].mxu0
    %v3094 = vadd.f32 %v2337, %v3093
    %v3095 = vpop.f32.mrb[0].mxu0
    %3096 = vmatprep.mubr.bf16.mxu0 0
    %3097 = vmatmul.mubr.bf16.gmra.mrb[0].mxu0 %v2238
    %v3098 = vpop.f32.mrb[0].mxu0
    %v3099 = vadd.f32 %v2337, %v3098
    %v3100 = vpop.f32.mrb[0].mxu0
    %v3101 = vpop.f32.mrb[0].mxu0
    %v3102 = vadd.f32 %v2337, %v3101
    %v3103 = vpop.f32.mrb[0].mxu0
    %3104 = vmatprep.mubr.bf16.mxu0 0
    %3105 = vmatmul.mubr.bf16.gmra.mrb[0].mxu0 %v2239
    %v3106 = vpop.f32.mrb[0].mxu0
    %v3107 = vadd.f32 %v2337, %v3106
    %v3108 = vpop.f32.mrb[0].mxu0
    %v3109 = vpop.f32.mrb[0].mxu0
    %v3110 = vadd.f32 %v2337, %v3109
    %v3111 = vpop.f32.mrb[0].mxu0
    %3112 = vmatprep.mubr.bf16.mxu0 0
    %3113 = vmatmul.mubr.bf16.gmra.mrb[0].mxu0 %v2240
    %v3114 = vpop.f32.mrb[0].mxu0
    %v3115 = vadd.f32 %v2337, %v3114
    %v3116 = vpop.f32.mrb[0].mxu0
    %v3117 = vpop.f32.mrb[0].mxu0
    %v3118 = vadd.f32 %v2337, %v3117
    %v3119 = vpop.f32.mrb[0].mxu0
    %3120 = vmatprep.mubr.bf16.mxu0 0
    %3121 = vmatmul.mubr.bf16.gmra.mrb[0].mxu0 %v2241
    %v3122 = vpop.f32.mrb[0].mxu0
    %v3123 = vadd.f32 %v2337, %v3122
    %v3124 = vpop.f32.mrb[0].mxu0
    %v3125 = vpop.f32.mrb[0].mxu0
    %v3126 = vadd.f32 %v2337, %v3125
    %v3127 = vpop.f32.mrb[0].mxu0
    %3128 = vmatprep.mubr.bf16.mxu0 0
    %3129 = vmatmul.mubr.bf16.gmra.mrb[0].mxu0 %v2242
    %v3130 = vpop.f32.mrb[0].mxu0
    %v3131 = vadd.f32 %v2337, %v3130
    %v3132 = vpop.f32.mrb[0].mxu0
    %v3133 = vpop.f32.mrb[0].mxu0
    %v3134 = vadd.f32 %v2337, %v3133
    %v3135 = vpop.f32.mrb[0].mxu0
    %3136 = vmatprep.mubr.bf16.mxu0 0
    %3137 = vmatmul.mubr.bf16.gmra.mrb[0].mxu0 %v2243
    %v3138 = vpop.f32.mrb[0].mxu0
    %v3139 = vadd.f32 %v2337, %v3138
    %v3140 = vpop.f32.mrb[0].mxu0
    %v3141 = vpop.f32.mrb[0].mxu0
    %v3142 = vadd.f32 %v2337, %v3141
    %v3143 = vpop.f32.mrb[0].mxu0
    %3144 = vdwg.mxu0
    %v3145 = vpack.c.bf16 %v2672, %v2668
    %v3146 = vpack.c.bf16 %v2674, %v2670
    %v3147 = vpack.c.bf16 %v2805, %v2801
    %v3148 = vpack.c.bf16 %v2807, %v2803
    %v3149 = vpack.c.bf16 %v2938, %v2934
    %v3150 = vpack.c.bf16 %v2940, %v2936
    %v3151 = vpack.c.bf16 %v3070, %v3067
    %v3152 = vpack.c.bf16 %v2682, %v2678
    %v3153 = vpack.c.bf16 %v2684, %v2680
    %v3154 = vpack.c.bf16 %v2815, %v2811
    %v3155 = vpack.c.bf16 %v2817, %v2813
    %v3156 = vpack.c.bf16 %v2948, %v2944
    %v3157 = vpack.c.bf16 %v2950, %v2946
    %v3158 = vpack.c.bf16 %v3078, %v3075
    %v3159 = vpack.c.bf16 %v2692, %v2688
    %v3160 = vpack.c.bf16 %v2694, %v2690
    %v3161 = vpack.c.bf16 %v2825, %v2821
    %v3162 = vpack.c.bf16 %v2827, %v2823
    %v3163 = vpack.c.bf16 %v2958, %v2954
    %v3164 = vpack.c.bf16 %v2960, %v2956
    %v3165 = vpack.c.bf16 %v3086, %v3083
    %v3166 = vpack.c.bf16 %v2702, %v2698
    %v3167 = vpack.c.bf16 %v2704, %v2700
    %v3168 = vpack.c.bf16 %v2835, %v2831
    %v3169 = vpack.c.bf16 %v2837, %v2833
    %v3170 = vpack.c.bf16 %v2968, %v2964
    %v3171 = vpack.c.bf16 %v2970, %v2966
    %v3172 = vpack.c.bf16 %v3094, %v3091
    %v3173 = vpack.c.bf16 %v2712, %v2708
    %v3174 = vpack.c.bf16 %v2714, %v2710
    %v3175 = vpack.c.bf16 %v2845, %v2841
    %v3176 = vpack.c.bf16 %v2847, %v2843
    %v3177 = vpack.c.bf16 %v2978, %v2974
    %v3178 = vpack.c.bf16 %v2980, %v2976
    %v3179 = vpack.c.bf16 %v3102, %v3099
    %v3180 = vpack.c.bf16 %v2722, %v2718
    %v3181 = vpack.c.bf16 %v2724, %v2720
    %v3182 = vpack.c.bf16 %v2855, %v2851
    %v3183 = vpack.c.bf16 %v2857, %v2853
    %v3184 = vpack.c.bf16 %v2988, %v2984
    %v3185 = vpack.c.bf16 %v2990, %v2986
    %v3186 = vpack.c.bf16 %v3110, %v3107
    %v3187 = vpack.c.bf16 %v2732, %v2728
    %v3188 = vpack.c.bf16 %v2734, %v2730
    %v3189 = vpack.c.bf16 %v2865, %v2861
    %v3190 = vpack.c.bf16 %v2867, %v2863
    %v3191 = vpack.c.bf16 %v2998, %v2994
    %v3192 = vpack.c.bf16 %v3000, %v2996
    %v3193 = vpack.c.bf16 %v3118, %v3115
    %v3194 = vpack.c.bf16 %v2742, %v2738
    %v3195 = vpack.c.bf16 %v2744, %v2740
    %v3196 = vpack.c.bf16 %v2875, %v2871
    %v3197 = vpack.c.bf16 %v2877, %v2873
    %v3198 = vpack.c.bf16 %v3008, %v3004
    %v3199 = vpack.c.bf16 %v3010, %v3006
    %v3200 = vpack.c.bf16 %v3126, %v3123
    %v3201 = vpack.c.bf16 %v2752, %v2748
    %v3202 = vpack.c.bf16 %v2754, %v2750
    %v3203 = vpack.c.bf16 %v2885, %v2881
    %v3204 = vpack.c.bf16 %v2887, %v2883
    %v3205 = vpack.c.bf16 %v3018, %v3014
    %v3206 = vpack.c.bf16 %v3020, %v3016
    %v3207 = vpack.c.bf16 %v3134, %v3131
    %v3208 = vpack.c.bf16 %v2762, %v2758
    %v3209 = vpack.c.bf16 %v2764, %v2760
    %v3210 = vpack.c.bf16 %v2895, %v2891
    %v3211 = vpack.c.bf16 %v2897, %v2893
    %v3212 = vpack.c.bf16 %v3028, %v3024
    %v3213 = vpack.c.bf16 %v3030, %v3026
    %v3214 = vpack.c.bf16 %v3142, %v3139
    %v3285 = vunpack.c.l.b16 %v3145
    %v3286 = vunpack.c.l.b16 %v3146
    %v3287 = vunpack.c.l.b16 %v3147
    %v3288 = vunpack.c.l.b16 %v3148
    %v3289 = vunpack.c.l.b16 %v3149
    %v3290 = vunpack.c.l.b16 %v3150
    %v3291 = vunpack.c.l.b16 %v3151
    %v3292 = vunpack.c.h.b16 %v3145
    %v3293 = vunpack.c.h.b16 %v3146
    %v3294 = vunpack.c.h.b16 %v3147
    %v3295 = vunpack.c.h.b16 %v3148
    %v3296 = vunpack.c.h.b16 %v3149
    %v3297 = vunpack.c.h.b16 %v3150
    %v3298 = vunpack.c.h.b16 %v3151
    %v3299 = vunpack.c.l.b16 %v3152
    %v3300 = vunpack.c.l.b16 %v3153
    %v3301 = vunpack.c.l.b16 %v3154
    %v3302 = vunpack.c.l.b16 %v3155
    %v3303 = vunpack.c.l.b16 %v3156
    %v3304 = vunpack.c.l.b16 %v3157
    %v3305 = vunpack.c.l.b16 %v3158
    %v3306 = vunpack.c.h.b16 %v3152
    %v3307 = vunpack.c.h.b16 %v3153
    %v3308 = vunpack.c.h.b16 %v3154
    %v3309 = vunpack.c.h.b16 %v3155
    %v3310 = vunpack.c.h.b16 %v3156
    %v3311 = vunpack.c.h.b16 %v3157
    %v3312 = vunpack.c.h.b16 %v3158
    %v3313 = vunpack.c.l.b16 %v3159
    %v3314 = vunpack.c.l.b16 %v3160
    %v3315 = vunpack.c.l.b16 %v3161
    %v3316 = vunpack.c.l.b16 %v3162
    %v3317 = vunpack.c.l.b16 %v3163
    %v3318 = vunpack.c.l.b16 %v3164
    %v3319 = vunpack.c.l.b16 %v3165
    %v3320 = vunpack.c.h.b16 %v3159
    %v3321 = vunpack.c.h.b16 %v3160
    %v3322 = vunpack.c.h.b16 %v3161
    %v3323 = vunpack.c.h.b16 %v3162
    %v3324 = vunpack.c.h.b16 %v3163
    %v3325 = vunpack.c.h.b16 %v3164
    %v3326 = vunpack.c.h.b16 %v3165
    %v3327 = vunpack.c.l.b16 %v3166
    %v3328 = vunpack.c.l.b16 %v3167
    %v3329 = vunpack.c.l.b16 %v3168
    %v3330 = vunpack.c.l.b16 %v3169
    %v3331 = vunpack.c.l.b16 %v3170
    %v3332 = vunpack.c.l.b16 %v3171
    %v3333 = vunpack.c.l.b16 %v3172
    %v3334 = vunpack.c.h.b16 %v3166
    %v3335 = vunpack.c.h.b16 %v3167
    %v3336 = vunpack.c.h.b16 %v3168
    %v3337 = vunpack.c.h.b16 %v3169
    %v3338 = vunpack.c.h.b16 %v3170
    %v3339 = vunpack.c.h.b16 %v3171
    %v3340 = vunpack.c.h.b16 %v3172
    %v3341 = vunpack.c.l.b16 %v3173
    %v3342 = vunpack.c.l.b16 %v3174
    %v3343 = vunpack.c.l.b16 %v3175
    %v3344 = vunpack.c.l.b16 %v3176
    %v3345 = vunpack.c.l.b16 %v3177
    %v3346 = vunpack.c.l.b16 %v3178
    %v3347 = vunpack.c.l.b16 %v3179
    %v3348 = vunpack.c.h.b16 %v3173
    %v3349 = vunpack.c.h.b16 %v3174
    %v3350 = vunpack.c.h.b16 %v3175
    %v3351 = vunpack.c.h.b16 %v3176
    %v3352 = vunpack.c.h.b16 %v3177
    %v3353 = vunpack.c.h.b16 %v3178
    %v3354 = vunpack.c.h.b16 %v3179
    %v3355 = vunpack.c.l.b16 %v3180
    %v3356 = vunpack.c.l.b16 %v3181
    %v3357 = vunpack.c.l.b16 %v3182
    %v3358 = vunpack.c.l.b16 %v3183
    %v3359 = vunpack.c.l.b16 %v3184
    %v3360 = vunpack.c.l.b16 %v3185
    %v3361 = vunpack.c.l.b16 %v3186
    %v3362 = vunpack.c.h.b16 %v3180
    %v3363 = vunpack.c.h.b16 %v3181
    %v3364 = vunpack.c.h.b16 %v3182
    %v3365 = vunpack.c.h.b16 %v3183
    %v3366 = vunpack.c.h.b16 %v3184
    %v3367 = vunpack.c.h.b16 %v3185
    %v3368 = vunpack.c.h.b16 %v3186
    %v3369 = vunpack.c.l.b16 %v3187
    %v3370 = vunpack.c.l.b16 %v3188
    %v3371 = vunpack.c.l.b16 %v3189
    %v3372 = vunpack.c.l.b16 %v3190
    %v3373 = vunpack.c.l.b16 %v3191
    %v3374 = vunpack.c.l.b16 %v3192
    %v3375 = vunpack.c.l.b16 %v3193
    %v3376 = vunpack.c.h.b16 %v3187
    %v3377 = vunpack.c.h.b16 %v3188
    %v3378 = vunpack.c.h.b16 %v3189
    %v3379 = vunpack.c.h.b16 %v3190
    %v3380 = vunpack.c.h.b16 %v3191
    %v3381 = vunpack.c.h.b16 %v3192
    %v3382 = vunpack.c.h.b16 %v3193
    %v3383 = vunpack.c.l.b16 %v3194
    %v3384 = vunpack.c.l.b16 %v3195
    %v3385 = vunpack.c.l.b16 %v3196
    %v3386 = vunpack.c.l.b16 %v3197
    %v3387 = vunpack.c.l.b16 %v3198
    %v3388 = vunpack.c.l.b16 %v3199
    %v3389 = vunpack.c.l.b16 %v3200
    %v3390 = vunpack.c.h.b16 %v3194
    %v3391 = vunpack.c.h.b16 %v3195
    %v3392 = vunpack.c.h.b16 %v3196
    %v3393 = vunpack.c.h.b16 %v3197
    %v3394 = vunpack.c.h.b16 %v3198
    %v3395 = vunpack.c.h.b16 %v3199
    %v3396 = vunpack.c.h.b16 %v3200
    %v3397 = vunpack.c.l.b16 %v3201
    %v3398 = vunpack.c.l.b16 %v3202
    %v3399 = vunpack.c.l.b16 %v3203
    %v3400 = vunpack.c.l.b16 %v3204
    %v3401 = vunpack.c.l.b16 %v3205
    %v3402 = vunpack.c.l.b16 %v3206
    %v3403 = vunpack.c.l.b16 %v3207
    %v3404 = vunpack.c.h.b16 %v3201
    %v3405 = vunpack.c.h.b16 %v3202
    %v3406 = vunpack.c.h.b16 %v3203
    %v3407 = vunpack.c.h.b16 %v3204
    %v3408 = vunpack.c.h.b16 %v3205
    %v3409 = vunpack.c.h.b16 %v3206
    %v3410 = vunpack.c.h.b16 %v3207
    %v3411 = vunpack.c.l.b16 %v3208
    %v3412 = vunpack.c.l.b16 %v3209
    %v3413 = vunpack.c.l.b16 %v3210
    %v3414 = vunpack.c.l.b16 %v3211
    %v3415 = vunpack.c.l.b16 %v3212
    %v3416 = vunpack.c.l.b16 %v3213
    %v3417 = vunpack.c.l.b16 %v3214
    %v3418 = vunpack.c.h.b16 %v3208
    %v3419 = vunpack.c.h.b16 %v3209
    %v3420 = vunpack.c.h.b16 %v3210
    %v3421 = vunpack.c.h.b16 %v3211
    %v3422 = vunpack.c.h.b16 %v3212
    %v3423 = vunpack.c.h.b16 %v3213
    %v3424 = vunpack.c.h.b16 %v3214
    %v3425 = vpack.c.b16 %v3286, %v3285
    %v3426 = vpack.c.b16 %v3288, %v3287
    %v3427 = vpack.c.b16 %v3290, %v3289
    %v3428 = vpack.c.b16 %v3291, %v3291
    %v3429 = vpack.c.b16 %v3293, %v3292
    %v3430 = vpack.c.b16 %v3295, %v3294
    %v3431 = vpack.c.b16 %v3297, %v3296
    %v3432 = vpack.c.b16 %v3298, %v3298
    %v3433 = vpack.c.b16 %v3300, %v3299
    %v3434 = vpack.c.b16 %v3302, %v3301
    %v3435 = vpack.c.b16 %v3304, %v3303
    %v3436 = vpack.c.b16 %v3305, %v3305
    %v3437 = vpack.c.b16 %v3307, %v3306
    %v3438 = vpack.c.b16 %v3309, %v3308
    %v3439 = vpack.c.b16 %v3311, %v3310
    %v3440 = vpack.c.b16 %v3312, %v3312
    %v3441 = vpack.c.b16 %v3314, %v3313
    %v3442 = vpack.c.b16 %v3316, %v3315
    %v3443 = vpack.c.b16 %v3318, %v3317
    %v3444 = vpack.c.b16 %v3319, %v3319
    %v3445 = vpack.c.b16 %v3321, %v3320
    %v3446 = vpack.c.b16 %v3323, %v3322
    %v3447 = vpack.c.b16 %v3325, %v3324
    %v3448 = vpack.c.b16 %v3326, %v3326
    %v3449 = vpack.c.b16 %v3328, %v3327
    %v3450 = vpack.c.b16 %v3330, %v3329
    %v3451 = vpack.c.b16 %v3332, %v3331
    %v3452 = vpack.c.b16 %v3333, %v3333
    %v3453 = vpack.c.b16 %v3335, %v3334
    %v3454 = vpack.c.b16 %v3337, %v3336
    %v3455 = vpack.c.b16 %v3339, %v3338
    %v3456 = vpack.c.b16 %v3340, %v3340
    %v3457 = vpack.c.b16 %v3342, %v3341
    %v3458 = vpack.c.b16 %v3344, %v3343
    %v3459 = vpack.c.b16 %v3346, %v3345
    %v3460 = vpack.c.b16 %v3347, %v3347
    %v3461 = vpack.c.b16 %v3349, %v3348
    %v3462 = vpack.c.b16 %v3351, %v3350
    %v3463 = vpack.c.b16 %v3353, %v3352
    %v3464 = vpack.c.b16 %v3354, %v3354
    %v3465 = vpack.c.b16 %v3356, %v3355
    %v3466 = vpack.c.b16 %v3358, %v3357
    %v3467 = vpack.c.b16 %v3360, %v3359
    %v3468 = vpack.c.b16 %v3361, %v3361
    %v3469 = vpack.c.b16 %v3363, %v3362
    %v3470 = vpack.c.b16 %v3365, %v3364
    %v3471 = vpack.c.b16 %v3367, %v3366
    %v3472 = vpack.c.b16 %v3368, %v3368
    %v3473 = vpack.c.b16 %v3370, %v3369
    %v3474 = vpack.c.b16 %v3372, %v3371
    %v3475 = vpack.c.b16 %v3374, %v3373
    %v3476 = vpack.c.b16 %v3375, %v3375
    %v3477 = vpack.c.b16 %v3377, %v3376
    %v3478 = vpack.c.b16 %v3379, %v3378
    %v3479 = vpack.c.b16 %v3381, %v3380
    %v3480 = vpack.c.b16 %v3382, %v3382
    %v3481 = vpack.c.b16 %v3384, %v3383
    %v3482 = vpack.c.b16 %v3386, %v3385
    %v3483 = vpack.c.b16 %v3388, %v3387
    %v3484 = vpack.c.b16 %v3389, %v3389
    %v3485 = vpack.c.b16 %v3391, %v3390
    %v3486 = vpack.c.b16 %v3393, %v3392
    %v3487 = vpack.c.b16 %v3395, %v3394
    %v3488 = vpack.c.b16 %v3396, %v3396
    %v3489 = vpack.c.b16 %v3398, %v3397
    %v3490 = vpack.c.b16 %v3400, %v3399
    %v3491 = vpack.c.b16 %v3402, %v3401
    %v3492 = vpack.c.b16 %v3403, %v3403
    %v3493 = vpack.c.b16 %v3405, %v3404
    %v3494 = vpack.c.b16 %v3407, %v3406
    %v3495 = vpack.c.b16 %v3409, %v3408
    %v3496 = vpack.c.b16 %v3410, %v3410
    %v3497 = vpack.c.b16 %v3412, %v3411
    %v3498 = vpack.c.b16 %v3414, %v3413
    %v3499 = vpack.c.b16 %v3416, %v3415
    %v3500 = vpack.c.b16 %v3417, %v3417
    %v3501 = vpack.c.b16 %v3419, %v3418
    %v3502 = vpack.c.b16 %v3421, %v3420
    %v3503 = vpack.c.b16 %v3423, %v3422
    %v3504 = vpack.c.b16 %v3424, %v3424
    %3585 = vst [vmem:[#allocation2] sm:$0xff] %v3425
    %3586 = vst [vmem:[#allocation2 + $0x8] sm:$0xff] %v3426
    %3587 = vst [vmem:[#allocation2 + $0x10] sm:$0xff] %v3427
    %vm3588 = vcmask 125952
    %3589 = vst.msk [vmem:[#allocation2 + $0x18] sm:$0xf] %vm3588, %v3428
    %3590 = vst [vmem:[#allocation2 + $0x1c] sm:$0xff] %v3429
    %3591 = vst [vmem:[#allocation2 + $0x24] sm:$0xff] %v3430
    %3592 = vst [vmem:[#allocation2 + $0x2c] sm:$0xff] %v3431
    %3593 = vst.msk [vmem:[#allocation2 + $0x34] sm:$0xf] %vm3588, %v3432
    %3594 = vst [vmem:[#allocation2 + $0x38] sm:$0xff] %v3433
    %3595 = vst [vmem:[#allocation2 + $0x40] sm:$0xff] %v3434
    %3596 = vst [vmem:[#allocation2 + $0x48] sm:$0xff] %v3435
    %3597 = vst.msk [vmem:[#allocation2 + $0x50] sm:$0xf] %vm3588, %v3436
    %3598 = vst [vmem:[#allocation2 + $0x54] sm:$0xff] %v3437
    %3599 = vst [vmem:[#allocation2 + $0x5c] sm:$0xff] %v3438
    %3600 = vst [vmem:[#allocation2 + $0x64] sm:$0xff] %v3439
    %3601 = vst.msk [vmem:[#allocation2 + $0x6c] sm:$0xf] %vm3588, %v3440
    %3602 = vst [vmem:[#allocation2 + $0x70] sm:$0xff] %v3441
    %3603 = vst [vmem:[#allocation2 + $0x78] sm:$0xff] %v3442
    %3604 = vst [vmem:[#allocation2 + $0x80] sm:$0xff] %v3443
    %3605 = vst.msk [vmem:[#allocation2 + $0x88] sm:$0xf] %vm3588, %v3444
    %3606 = vst [vmem:[#allocation2 + $0x8c] sm:$0xff] %v3445
    %3607 = vst [vmem:[#allocation2 + $0x94] sm:$0xff] %v3446
    %3608 = vst [vmem:[#allocation2 + $0x9c] sm:$0xff] %v3447
    %3609 = vst.msk [vmem:[#allocation2 + $0xa4] sm:$0xf] %vm3588, %v3448
    %3610 = vst [vmem:[#allocation2 + $0xa8] sm:$0xff] %v3449
    %3611 = vst [vmem:[#allocation2 + $0xb0] sm:$0xff] %v3450
    %3612 = vst [vmem:[#allocation2 + $0xb8] sm:$0xff] %v3451
    %3613 = vst.msk [vmem:[#allocation2 + $0xc0] sm:$0xf] %vm3588, %v3452
    %3614 = vst [vmem:[#allocation2 + $0xc4] sm:$0xff] %v3453
    %3615 = vst [vmem:[#allocation2 + $0xcc] sm:$0xff] %v3454
    %3616 = vst [vmem:[#allocation2 + $0xd4] sm:$0xff] %v3455
    %3617 = vst.msk [vmem:[#allocation2 + $0xdc] sm:$0xf] %vm3588, %v3456
    %3618 = vst [vmem:[#allocation2 + $0xe0] sm:$0xff] %v3457
    %3619 = vst [vmem:[#allocation2 + $0xe8] sm:$0xff] %v3458
    %3620 = vst [vmem:[#allocation2 + $0xf0] sm:$0xff] %v3459
    %3621 = vst.msk [vmem:[#allocation2 + $0xf8] sm:$0xf] %vm3588, %v3460
    %3622 = vst [vmem:[#allocation2 + $0xfc] sm:$0xff] %v3461
    %3623 = vst [vmem:[#allocation2 + $0x104] sm:$0xff] %v3462
    %3624 = vst [vmem:[#allocation2 + $0x10c] sm:$0xff] %v3463
    %3625 = vst.msk [vmem:[#allocation2 + $0x114] sm:$0xf] %vm3588, %v3464
    %3626 = vst [vmem:[#allocation2 + $0x118] sm:$0xff] %v3465
    %3627 = vst [vmem:[#allocation2 + $0x120] sm:$0xff] %v3466
    %3628 = vst [vmem:[#allocation2 + $0x128] sm:$0xff] %v3467
    %3629 = vst.msk [vmem:[#allocation2 + $0x130] sm:$0xf] %vm3588, %v3468
    %3630 = vst [vmem:[#allocation2 + $0x134] sm:$0xff] %v3469
    %3631 = vst [vmem:[#allocation2 + $0x13c] sm:$0xff] %v3470
    %3632 = vst [vmem:[#allocation2 + $0x144] sm:$0xff] %v3471
    %3633 = vst.msk [vmem:[#allocation2 + $0x14c] sm:$0xf] %vm3588, %v3472
    %3634 = vst [vmem:[#allocation2 + $0x150] sm:$0xff] %v3473
    %3635 = vst [vmem:[#allocation2 + $0x158] sm:$0xff] %v3474
    %3636 = vst [vmem:[#allocation2 + $0x160] sm:$0xff] %v3475
    %3637 = vst.msk [vmem:[#allocation2 + $0x168] sm:$0xf] %vm3588, %v3476
    %3638 = vst [vmem:[#allocation2 + $0x16c] sm:$0xff] %v3477
    %3639 = vst [vmem:[#allocation2 + $0x174] sm:$0xff] %v3478
    %3640 = vst [vmem:[#allocation2 + $0x17c] sm:$0xff] %v3479
    %3641 = vst.msk [vmem:[#allocation2 + $0x184] sm:$0xf] %vm3588, %v3480
    %3642 = vst [vmem:[#allocation2 + $0x188] sm:$0xff] %v3481
    %3643 = vst [vmem:[#allocation2 + $0x190] sm:$0xff] %v3482
    %3644 = vst [vmem:[#allocation2 + $0x198] sm:$0xff] %v3483
    %3645 = vst.msk [vmem:[#allocation2 + $0x1a0] sm:$0xf] %vm3588, %v3484
    %3646 = vst [vmem:[#allocation2 + $0x1a4] sm:$0xff] %v3485
    %3647 = vst [vmem:[#allocation2 + $0x1ac] sm:$0xff] %v3486
    %3648 = vst [vmem:[#allocation2 + $0x1b4] sm:$0xff] %v3487
    %3649 = vst.msk [vmem:[#allocation2 + $0x1bc] sm:$0xf] %vm3588, %v3488
    %3650 = vst [vmem:[#allocation2 + $0x1c0] sm:$0xff] %v3489
    %3651 = vst [vmem:[#allocation2 + $0x1c8] sm:$0xff] %v3490
    %3652 = vst [vmem:[#allocation2 + $0x1d0] sm:$0xff] %v3491
    %3653 = vst.msk [vmem:[#allocation2 + $0x1d8] sm:$0xf] %vm3588, %v3492
    %3654 = vst [vmem:[#allocation2 + $0x1dc] sm:$0xff] %v3493
    %3655 = vst [vmem:[#allocation2 + $0x1e4] sm:$0xff] %v3494
    %3656 = vst [vmem:[#allocation2 + $0x1ec] sm:$0xff] %v3495
    %3657 = vst.msk [vmem:[#allocation2 + $0x1f4] sm:$0xf] %vm3588, %v3496
    %3658 = vst [vmem:[#allocation2 + $0x1f8] sm:$0xff] %v3497
    %3659 = vst [vmem:[#allocation2 + $0x200] sm:$0xff] %v3498
    %3660 = vst [vmem:[#allocation2 + $0x208] sm:$0xff] %v3499
    %3661 = vst.msk [vmem:[#allocation2 + $0x210] sm:$0xf] %vm3588, %v3500
    %3662 = vst [vmem:[#allocation2 + $0x214] sm:$0xff] %v3501
    %3663 = vst [vmem:[#allocation2 + $0x21c] sm:$0xff] %v3502
    %3664 = vst [vmem:[#allocation2 + $0x224] sm:$0xff] %v3503
    %3665 = vst.msk [vmem:[#allocation2 + $0x22c] sm:$0xf] %vm3588, %v3504
    // Predicated region
    $region62: #{linear_ae_forward.1} parent=1 // pred_check
      _
    $region63: #{linear_ae_forward.1} parent=1 // pred_check_branch
      %3667 = sbr.rel (0) target = $region65
    $region64: #{linear_ae_forward.1} parent=1 // pred_region
      %s3669 = ssub.s32 8960, 8960
      %3670 = vsyncadd [#allocation3], %s3669
      %s3671 = sshll.u32 [#allocation2], 4
      %s3672 = int_to_ptr.vmem [resolvable:$true] %s3671
      %3677 = dma.vmem_to_hbm [thread:$0]  %s3672, 8960, %s15, [#allocation3], 448, 448, 28
    $region65: #{linear_ae_forward.1} parent=1 // pred_fallthru
      _
    // Predicated region
    $region66: #{linear_ae_forward.1} parent=1 // pred_check
      _
    $region67: #{linear_ae_forward.1} parent=1 // pred_check_branch
      %3679 = sbr.rel (0) target = $region69
    $region68: #{linear_ae_forward.1} parent=1 // pred_region
      %3680 = dma.done [#allocation3], 8960
    $region69: #{linear_ae_forward.1} parent=1 // pred_fallthru
      _
    %3681 = vsyncpa [#allocation3], 1

</llo_original>
